<compile_context>
chip_gen: v6e
topology: v6e:2x2x1
jax: 0.10.0
libtpu: 0.0.40
codegen_flags: <defaults>
</compile_context>

<pallas_src>
import functools
import math

import jax
import jax.numpy as jnp
from jax.experimental import pallas as pl
from jax.experimental.pallas import tpu as pltpu


# ----------------------------- model config ---------------------------------
B = 2        # batch
S = 8        # sequence length
D = 32       # hidden size ("encoder_out_size" analogue, scaled down from 768)
H = 4        # attention heads
HD = D // H  # head dim
F = 64       # FFN inner dim
V = 50       # vocab size
NUM_LAYERS = 2
LN_EPS = 1e-5
NEG_INF = -1e9


# ----------------------------- in-kernel math --------------------------------
def _layer_norm(x, g, b):
    mu = jnp.mean(x, axis=-1, keepdims=True)
    xc = x - mu
    var = jnp.mean(xc * xc, axis=-1, keepdims=True)
    return xc * jax.lax.rsqrt(var + LN_EPS) * g + b


def _softmax(s):
    s = s - jnp.max(s, axis=-1, keepdims=True)
    e = jnp.exp(s)
    return e * pl.reciprocal(jnp.sum(e, axis=-1, keepdims=True), approx=True)


def _bf16(x):
    return x.astype(jnp.bfloat16)


# ----------------------------- fused Pallas kernel ---------------------------
def fused_encoder_kernel(x_ref, mask_ref, bias_ref, embg_ref, embb_ref,
                         wqkv_ref, bqkv_ref, wo_ref, bo_ref,
                         ln1g_ref, ln1b_ref, w1_ref, b1_ref, w2_ref, b2_ref,
                         ln2g_ref, ln2b_ref, out_ref, *, num_layers, num_heads):
    # Whole (B*S, D) activation slab stays resident for the entire forward.
    x = x_ref[...]                    # (BS, D) f32
    mask = mask_ref[...]              # (BS, 1) f32 (1 = keep, 0 = pad)
    bias = bias_ref[...]              # (BS, BS) f32 additive attention bias

    # --- embedding LayerNorm --------------------------------------------------
    x = _layer_norm(x, embg_ref[...], embb_ref[...])

    bs, dim = x.shape
    hd = dim // num_heads
    scale = 1.0 / math.sqrt(hd)
    dn = (((1,), (1,)), ((), ()))     # contract last dims: q @ k^T w/o transpose

    # Static unroll over layers; all weight indexing is static -> zero-cost.
    for li in range(num_layers):
        # --- fused QKV projection: one (BS,D)@(D,3D) MXU pass -----------------
        qkv = jnp.dot(_bf16(x), wqkv_ref[li],
                      preferred_element_type=jnp.float32) + bqkv_ref[li]
        q = qkv[:, 0 * dim:1 * dim]
        k = qkv[:, 1 * dim:2 * dim]
        v = qkv[:, 2 * dim:3 * dim]

        # --- multi-head attention; output projection accumulated per head ----
        #   concat_h(ctx_h) @ Wo == sum_h ctx_h @ Wo[h*hd:(h+1)*hd, :]
        attn = jnp.zeros((bs, dim), jnp.float32)
        for h in range(num_heads):
            lo = h * hd
            qh = _bf16(q[:, lo:lo + hd])
            kh = _bf16(k[:, lo:lo + hd])
            vh = _bf16(v[:, lo:lo + hd])
            scores = jax.lax.dot_general(qh, kh, dn,
                                         preferred_element_type=jnp.float32)
            scores = scores * scale + bias            # f32 softmax path
            probs = _softmax(scores)
            ctx = jnp.dot(_bf16(probs), vh,
                          preferred_element_type=jnp.float32)     # (BS, HD)
            attn = attn + jnp.dot(_bf16(ctx), wo_ref[li, h],
                                  preferred_element_type=jnp.float32)
        attn = attn + bo_ref[li]

        # post-LN residual (BART style)
        x = _layer_norm(x + attn, ln1g_ref[li], ln1b_ref[li])

        # --- feed-forward ------------------------------------------------------
        h1 = jnp.dot(_bf16(x), w1_ref[li],
                     preferred_element_type=jnp.float32) + b1_ref[li]
        h1 = jax.nn.gelu(h1, approximate=True)  # TODO(synk): HF BART uses exact erf GELU
        ffn = jnp.dot(_bf16(h1), w2_ref[li],
                      preferred_element_type=jnp.float32) + b2_ref[li]
        x = _layer_norm(x + ffn, ln2g_ref[li], ln2b_ref[li])

    # encoder_out = encoder_out * mask_input.unsqueeze(2) — single dense store.
    out_ref[...] = x * mask


# ----------------------------- pallas_call wrapper ----------------------------
def _full_spec(shape):
    nd = len(shape)
    return pl.BlockSpec(shape, lambda i, _nd=nd: (0,) * _nd)


def encoder_bart_forward(text_inputs, mask_input, params):
    Bn, Sn = text_inputs.shape
    Dn = params["tok_emb"].shape[1]
    BSn = Bn * Sn

    # Glue: embedding gather + positional embedding (plain JAX gather).
    x = params["tok_emb"][text_inputs] + params["pos_emb"][None, :, :]
    x2d = x.reshape(BSn, Dn).astype(jnp.float32)

    maskf = mask_input.astype(jnp.float32)
    mask2d = maskf.reshape(BSn, 1)

    # Combined additive attention bias built once in glue:
    #   block-diagonal (no cross-sequence attention after batch collapse)
    #   + key-padding mask.  exp(-1e9 - max) underflows to exactly 0 in f32,
    #   so this matches the per-sequence masked attention of the reference.
    batch_ids = jnp.repeat(jnp.arange(Bn, dtype=jnp.int32), Sn)
    same_seq = batch_ids[:, None] == batch_ids[None, :]
    key_keep = maskf.reshape(BSn) > 0.5
    attn_bias = jnp.where(same_seq & key_keep[None, :], 0.0,
                          NEG_INF).astype(jnp.float32)

    # bf16 MXU operands (accumulation stays f32 inside the kernel).
    wqkv = params["wqkv"].astype(jnp.bfloat16)                       # (L, D, 3D)
    wo4 = params["wo"].reshape(NUM_LAYERS, H, HD, Dn).astype(jnp.bfloat16)
    w1 = params["w1"].astype(jnp.bfloat16)                           # (L, D, F)
    w2 = params["w2"].astype(jnp.bfloat16)                           # (L, F, D)

    args = (x2d, mask2d, attn_bias,
            params["emb_ln_g"], params["emb_ln_b"],
            wqkv, params["bqkv"], wo4, params["bo"],
            params["ln1_g"], params["ln1_b"],
            w1, params["b1"], w2, params["b2"],
            params["ln2_g"], params["ln2_b"])

    out2d = pl.pallas_call(
        functools.partial(fused_encoder_kernel,
                          num_layers=NUM_LAYERS, num_heads=H),
        out_shape=jax.ShapeDtypeStruct((BSn, Dn), jnp.float32),
        grid=(1,),
        in_specs=[_full_spec(a.shape) for a in args],
        out_specs=_full_spec((BSn, Dn)),
        compiler_params=pltpu.CompilerParams(
            dimension_semantics=("arbitrary",)),
    )(*args)

    return out2d.reshape(Bn, Sn, Dn)


# ----------------------------- parameter init ---------------------------------
def init_params(key):
    # TODO(synk): pretrained BART/XLNet checkpoint weights are not loadable
    # here; this is a structurally equivalent, deterministically initialized
    # encoder.
    ks = jax.random.split(key, 6)

    def dense(k, shape, fan_in):
        return jax.random.normal(k, shape, jnp.float32) * (1.0 / math.sqrt(fan_in))

    L = NUM_LAYERS
    return {
        "tok_emb": jax.random.normal(ks[0], (V, D), jnp.float32) * 0.02,
        "pos_emb": jax.random.normal(ks[1], (S, D), jnp.float32) * 0.02,
        "emb_ln_g": jnp.ones((1, D), jnp.float32),
        "emb_ln_b": jnp.zeros((1, D), jnp.float32),
        # per-layer weights stacked on a leading layer axis
        "wqkv": dense(ks[2], (L, D, 3 * D), D),
        "bqkv": jnp.zeros((L, 1, 3 * D), jnp.float32),
        "wo": dense(ks[3], (L, D, D), D),
        "bo": jnp.zeros((L, 1, D), jnp.float32),
        "ln1_g": jnp.ones((L, 1, D), jnp.float32),
        "ln1_b": jnp.zeros((L, 1, D), jnp.float32),
        "w1": dense(ks[4], (L, D, F), D),
        "b1": jnp.zeros((L, 1, F), jnp.float32),
        "w2": dense(ks[5], (L, F, D), F),
        "b2": jnp.zeros((L, 1, D), jnp.float32),
        "ln2_g": jnp.ones((L, 1, D), jnp.float32),
        "ln2_b": jnp.zeros((L, 1, D), jnp.float32),
    }


# ----------------------------- main --------------------------------------------
if __name__ == "__main__":
    key = jax.random.PRNGKey(0)
    k_tok, k_param = jax.random.split(key)

    text_inputs = jax.random.randint(k_tok, (B, S), 0, V, dtype=jnp.int32)
    # padding mask: first sequence fully valid, second has 5 valid tokens
    lengths = jnp.array([S, 5], dtype=jnp.int32)
    mask_input = (jnp.arange(S)[None, :] < lengths[:, None]).astype(jnp.float32)
    len_seq = lengths  # kept for interface parity with the torch module

    params = init_params(k_param)

    encoder_out = encoder_bart_forward(text_inputs, mask_input, params)
    encoder_out = jax.block_until_ready(encoder_out)

    assert encoder_out.shape == (B, S, D)
    # padded positions must be exactly zero (masked out)
    assert float(jnp.max(jnp.abs(encoder_out[1, 5:, :]))) == 0.0

    print("KERNEL_OK")
</pallas_src>

<mosaic_0001>
module attributes {stable_mosaic.version = 11 : i64} {
  func.func @fused_encoder_kernel(%arg0: i32, %arg1: memref<16x32xf32, #tpu.memory_space<vmem>>, %arg2: memref<16x1xf32, #tpu.memory_space<vmem>>, %arg3: memref<16x16xf32, #tpu.memory_space<vmem>>, %arg4: memref<1x32xf32, #tpu.memory_space<vmem>>, %arg5: memref<1x32xf32, #tpu.memory_space<vmem>>, %arg6: memref<2x32x96xbf16, #tpu.memory_space<vmem>>, %arg7: memref<2x1x96xf32, #tpu.memory_space<vmem>>, %arg8: memref<2x4x8x32xbf16, #tpu.memory_space<vmem>>, %arg9: memref<2x1x32xf32, #tpu.memory_space<vmem>>, %arg10: memref<2x1x32xf32, #tpu.memory_space<vmem>>, %arg11: memref<2x1x32xf32, #tpu.memory_space<vmem>>, %arg12: memref<2x32x64xbf16, #tpu.memory_space<vmem>>, %arg13: memref<2x1x64xf32, #tpu.memory_space<vmem>>, %arg14: memref<2x64x32xbf16, #tpu.memory_space<vmem>>, %arg15: memref<2x1x32xf32, #tpu.memory_space<vmem>>, %arg16: memref<2x1x32xf32, #tpu.memory_space<vmem>>, %arg17: memref<2x1x32xf32, #tpu.memory_space<vmem>>, %arg18: memref<16x32xf32, #tpu.memory_space<vmem>>) attributes {dimension_semantics = [#tpu.dimension_semantics<arbitrary>], iteration_bounds = array<i64: 1>, scalar_prefetch = 0 : i64, scratch_operands = 0 : i64, tpu.core_type = #tpu.core_type<tc>, window_params = [{pipeline_mode = #tpu.pipeline_mode<synchronous>, transform_indices = @transform_0, window_bounds = array<i64: 16, 32>}, {pipeline_mode = #tpu.pipeline_mode<synchronous>, transform_indices = @transform_1, window_bounds = array<i64: 16, 1>}, {pipeline_mode = #tpu.pipeline_mode<synchronous>, transform_indices = @transform_2, window_bounds = array<i64: 16, 16>}, {pipeline_mode = #tpu.pipeline_mode<synchronous>, transform_indices = @transform_3, window_bounds = array<i64: 1, 32>}, {pipeline_mode = #tpu.pipeline_mode<synchronous>, transform_indices = @transform_4, window_bounds = array<i64: 1, 32>}, {pipeline_mode = #tpu.pipeline_mode<synchronous>, transform_indices = @transform_5, window_bounds = array<i64: 2, 32, 96>}, {pipeline_mode = #tpu.pipeline_mode<synchronous>, transform_indices = @transform_6, window_bounds = array<i64: 2, 1, 96>}, {pipeline_mode = #tpu.pipeline_mode<synchronous>, transform_indices = @transform_7, window_bounds = array<i64: 2, 4, 8, 32>}, {pipeline_mode = #tpu.pipeline_mode<synchronous>, transform_indices = @transform_8, window_bounds = array<i64: 2, 1, 32>}, {pipeline_mode = #tpu.pipeline_mode<synchronous>, transform_indices = @transform_9, window_bounds = array<i64: 2, 1, 32>}, {pipeline_mode = #tpu.pipeline_mode<synchronous>, transform_indices = @transform_10, window_bounds = array<i64: 2, 1, 32>}, {pipeline_mode = #tpu.pipeline_mode<synchronous>, transform_indices = @transform_11, window_bounds = array<i64: 2, 32, 64>}, {pipeline_mode = #tpu.pipeline_mode<synchronous>, transform_indices = @transform_12, window_bounds = array<i64: 2, 1, 64>}, {pipeline_mode = #tpu.pipeline_mode<synchronous>, transform_indices = @transform_13, window_bounds = array<i64: 2, 64, 32>}, {pipeline_mode = #tpu.pipeline_mode<synchronous>, transform_indices = @transform_14, window_bounds = array<i64: 2, 1, 32>}, {pipeline_mode = #tpu.pipeline_mode<synchronous>, transform_indices = @transform_15, window_bounds = array<i64: 2, 1, 32>}, {pipeline_mode = #tpu.pipeline_mode<synchronous>, transform_indices = @transform_16, window_bounds = array<i64: 2, 1, 32>}, {pipeline_mode = #tpu.pipeline_mode<synchronous>, transform_indices = @transform_17, window_bounds = array<i64: 16, 32>}]} {
    %c0 = arith.constant 0 : index
    %c0_0 = arith.constant 0 : index
    %0 = vector.load %arg1[%c0, %c0_0] : memref<16x32xf32, #tpu.memory_space<vmem>>, vector<16x32xf32>
    %c0_1 = arith.constant 0 : index
    %c0_2 = arith.constant 0 : index
    %1 = vector.load %arg2[%c0_1, %c0_2] : memref<16x1xf32, #tpu.memory_space<vmem>>, vector<16x1xf32>
    %c0_3 = arith.constant 0 : index
    %c0_4 = arith.constant 0 : index
    %2 = vector.load %arg3[%c0_3, %c0_4] : memref<16x16xf32, #tpu.memory_space<vmem>>, vector<16x16xf32>
    %c0_5 = arith.constant 0 : index
    %c0_6 = arith.constant 0 : index
    %3 = vector.load %arg4[%c0_5, %c0_6] : memref<1x32xf32, #tpu.memory_space<vmem>>, vector<1x32xf32>
    %c0_7 = arith.constant 0 : index
    %c0_8 = arith.constant 0 : index
    %4 = vector.load %arg5[%c0_7, %c0_8] : memref<1x32xf32, #tpu.memory_space<vmem>>, vector<1x32xf32>
    %cst = arith.constant dense<0.000000e+00> : vector<16xf32>
    %5 = vector.multi_reduction <add>, %0, %cst [1] : vector<16x32xf32> to vector<16xf32>
    %6 = vector.shape_cast %5 : vector<16xf32> to vector<16x1xf32>
    %cst_9 = arith.constant 3.200000e+01 : f32
    %7 = vector.broadcast %cst_9 : f32 to vector<16x1xf32>
    %8 = arith.divf %6, %7 : vector<16x1xf32>
    %9 = vector.broadcast %8 : vector<16x1xf32> to vector<16x32xf32>
    %10 = arith.subf %0, %9 : vector<16x32xf32>
    %11 = arith.mulf %10, %10 : vector<16x32xf32>
    %cst_10 = arith.constant dense<0.000000e+00> : vector<16xf32>
    %12 = vector.multi_reduction <add>, %11, %cst_10 [1] : vector<16x32xf32> to vector<16xf32>
    %13 = vector.shape_cast %12 : vector<16xf32> to vector<16x1xf32>
    %cst_11 = arith.constant 3.200000e+01 : f32
    %14 = vector.broadcast %cst_11 : f32 to vector<16x1xf32>
    %15 = arith.divf %13, %14 : vector<16x1xf32>
    %cst_12 = arith.constant 9.99999974E-6 : f32
    %16 = vector.broadcast %cst_12 : f32 to vector<16x1xf32>
    %17 = arith.addf %15, %16 : vector<16x1xf32>
    %18 = math.rsqrt %17 : vector<16x1xf32>
    %19 = vector.broadcast %18 : vector<16x1xf32> to vector<16x32xf32>
    %20 = arith.mulf %10, %19 : vector<16x32xf32>
    %21 = vector.broadcast %3 : vector<1x32xf32> to vector<16x32xf32>
    %22 = arith.mulf %20, %21 : vector<16x32xf32>
    %23 = vector.broadcast %4 : vector<1x32xf32> to vector<16x32xf32>
    %24 = arith.addf %22, %23 : vector<16x32xf32>
    %25 = arith.truncf %24 : vector<16x32xf32> to vector<16x32xbf16>
    %c0_13 = arith.constant 0 : index
    %c0_14 = arith.constant 0 : index
    %c0_15 = arith.constant 0 : index
    %26 = vector.load %arg6[%c0_13, %c0_14, %c0_15] : memref<2x32x96xbf16, #tpu.memory_space<vmem>>, vector<1x32x96xbf16>
    %27 = vector.shape_cast %26 : vector<1x32x96xbf16> to vector<32x96xbf16>
    %cst_16 = arith.constant dense<0.000000e+00> : vector<16x96xf32>
    %28 = tpu.matmul %25, %27, %cst_16 {dimension_numbers = #tpu.dot_dimension_numbers<[1], [0], [0], [1], [0, 0, 1, 1], [], []>} : vector<16x32xbf16>, vector<32x96xbf16>, vector<16x96xf32> -> vector<16x96xf32>
    %c0_17 = arith.constant 0 : index
    %c0_18 = arith.constant 0 : index
    %c0_19 = arith.constant 0 : index
    %29 = vector.load %arg7[%c0_17, %c0_18, %c0_19] : memref<2x1x96xf32, #tpu.memory_space<vmem>>, vector<1x1x96xf32>
    %30 = vector.shape_cast %29 : vector<1x1x96xf32> to vector<1x96xf32>
    %31 = vector.broadcast %30 : vector<1x96xf32> to vector<16x96xf32>
    %32 = arith.addf %28, %31 : vector<16x96xf32>
    %33 = vector.extract_strided_slice %32 {offsets = [0, 0], sizes = [16, 32], strides = [1, 1]} : vector<16x96xf32> to vector<16x32xf32>
    %34 = vector.extract_strided_slice %32 {offsets = [0, 32], sizes = [16, 32], strides = [1, 1]} : vector<16x96xf32> to vector<16x32xf32>
    %35 = vector.extract_strided_slice %32 {offsets = [0, 64], sizes = [16, 32], strides = [1, 1]} : vector<16x96xf32> to vector<16x32xf32>
    %cst_20 = arith.constant 0.000000e+00 : f32
    %36 = vector.broadcast %cst_20 : f32 to vector<16x32xf32>
    %37 = vector.extract_strided_slice %33 {offsets = [0, 0], sizes = [16, 8], strides = [1, 1]} : vector<16x32xf32> to vector<16x8xf32>
    %38 = arith.truncf %37 : vector<16x8xf32> to vector<16x8xbf16>
    %39 = vector.extract_strided_slice %34 {offsets = [0, 0], sizes = [16, 8], strides = [1, 1]} : vector<16x32xf32> to vector<16x8xf32>
    %40 = arith.truncf %39 : vector<16x8xf32> to vector<16x8xbf16>
    %41 = vector.extract_strided_slice %35 {offsets = [0, 0], sizes = [16, 8], strides = [1, 1]} : vector<16x32xf32> to vector<16x8xf32>
    %42 = arith.truncf %41 : vector<16x8xf32> to vector<16x8xbf16>
    %cst_21 = arith.constant dense<0.000000e+00> : vector<16x16xf32>
    %43 = tpu.matmul %38, %40, %cst_21 {dimension_numbers = #tpu.dot_dimension_numbers<[1], [1], [0], [0], [0, 0, 1, 0], [], []>} : vector<16x8xbf16>, vector<16x8xbf16>, vector<16x16xf32> -> vector<16x16xf32>
    %cst_22 = arith.constant 0.353553385 : f32
    %44 = vector.broadcast %cst_22 : f32 to vector<16x16xf32>
    %45 = arith.mulf %43, %44 : vector<16x16xf32>
    %46 = arith.addf %45, %2 : vector<16x16xf32>
    %cst_23 = arith.constant dense<0xFF800000> : vector<16xf32>
    %47 = vector.multi_reduction <maximumf>, %46, %cst_23 [1] : vector<16x16xf32> to vector<16xf32>
    %48 = vector.shape_cast %47 : vector<16xf32> to vector<16x1xf32>
    %49 = vector.broadcast %48 : vector<16x1xf32> to vector<16x16xf32>
    %50 = arith.subf %46, %49 : vector<16x16xf32>
    %51 = math.exp %50 : vector<16x16xf32>
    %cst_24 = arith.constant dense<0.000000e+00> : vector<16xf32>
    %52 = vector.multi_reduction <add>, %51, %cst_24 [1] : vector<16x16xf32> to vector<16xf32>
    %53 = vector.shape_cast %52 : vector<16xf32> to vector<16x1xf32>
    %54 = tpu.reciprocal %53 {approx = true} : vector<16x1xf32> -> vector<16x1xf32>
    %55 = vector.broadcast %54 : vector<16x1xf32> to vector<16x16xf32>
    %56 = arith.mulf %51, %55 : vector<16x16xf32>
    %57 = arith.truncf %56 : vector<16x16xf32> to vector<16x16xbf16>
    %cst_25 = arith.constant dense<0.000000e+00> : vector<16x8xf32>
    %58 = tpu.matmul %57, %42, %cst_25 {dimension_numbers = #tpu.dot_dimension_numbers<[1], [0], [0], [1], [0, 0, 1, 1], [], []>} : vector<16x16xbf16>, vector<16x8xbf16>, vector<16x8xf32> -> vector<16x8xf32>
    %59 = arith.truncf %58 : vector<16x8xf32> to vector<16x8xbf16>
    %c0_26 = arith.constant 0 : index
    %c0_27 = arith.constant 0 : index
    %c0_28 = arith.constant 0 : index
    %c0_29 = arith.constant 0 : index
    %60 = vector.load %arg8[%c0_26, %c0_27, %c0_28, %c0_29] : memref<2x4x8x32xbf16, #tpu.memory_space<vmem>>, vector<1x1x8x32xbf16>
    %61 = vector.shape_cast %60 : vector<1x1x8x32xbf16> to vector<8x32xbf16>
    %cst_30 = arith.constant dense<0.000000e+00> : vector<16x32xf32>
    %62 = tpu.matmul %59, %61, %cst_30 {dimension_numbers = #tpu.dot_dimension_numbers<[1], [0], [0], [1], [0, 0, 1, 1], [], []>} : vector<16x8xbf16>, vector<8x32xbf16>, vector<16x32xf32> -> vector<16x32xf32>
    %63 = arith.addf %36, %62 : vector<16x32xf32>
    %64 = vector.extract_strided_slice %33 {offsets = [0, 8], sizes = [16, 8], strides = [1, 1]} : vector<16x32xf32> to vector<16x8xf32>
    %65 = arith.truncf %64 : vector<16x8xf32> to vector<16x8xbf16>
    %66 = vector.extract_strided_slice %34 {offsets = [0, 8], sizes = [16, 8], strides = [1, 1]} : vector<16x32xf32> to vector<16x8xf32>
    %67 = arith.truncf %66 : vector<16x8xf32> to vector<16x8xbf16>
    %68 = vector.extract_strided_slice %35 {offsets = [0, 8], sizes = [16, 8], strides = [1, 1]} : vector<16x32xf32> to vector<16x8xf32>
    %69 = arith.truncf %68 : vector<16x8xf32> to vector<16x8xbf16>
    %cst_31 = arith.constant dense<0.000000e+00> : vector<16x16xf32>
    %70 = tpu.matmul %65, %67, %cst_31 {dimension_numbers = #tpu.dot_dimension_numbers<[1], [1], [0], [0], [0, 0, 1, 0], [], []>} : vector<16x8xbf16>, vector<16x8xbf16>, vector<16x16xf32> -> vector<16x16xf32>
    %cst_32 = arith.constant 0.353553385 : f32
    %71 = vector.broadcast %cst_32 : f32 to vector<16x16xf32>
    %72 = arith.mulf %70, %71 : vector<16x16xf32>
    %73 = arith.addf %72, %2 : vector<16x16xf32>
    %cst_33 = arith.constant dense<0xFF800000> : vector<16xf32>
    %74 = vector.multi_reduction <maximumf>, %73, %cst_33 [1] : vector<16x16xf32> to vector<16xf32>
    %75 = vector.shape_cast %74 : vector<16xf32> to vector<16x1xf32>
    %76 = vector.broadcast %75 : vector<16x1xf32> to vector<16x16xf32>
    %77 = arith.subf %73, %76 : vector<16x16xf32>
    %78 = math.exp %77 : vector<16x16xf32>
    %cst_34 = arith.constant dense<0.000000e+00> : vector<16xf32>
    %79 = vector.multi_reduction <add>, %78, %cst_34 [1] : vector<16x16xf32> to vector<16xf32>
    %80 = vector.shape_cast %79 : vector<16xf32> to vector<16x1xf32>
    %81 = tpu.reciprocal %80 {approx = true} : vector<16x1xf32> -> vector<16x1xf32>
    %82 = vector.broadcast %81 : vector<16x1xf32> to vector<16x16xf32>
    %83 = arith.mulf %78, %82 : vector<16x16xf32>
    %84 = arith.truncf %83 : vector<16x16xf32> to vector<16x16xbf16>
    %cst_35 = arith.constant dense<0.000000e+00> : vector<16x8xf32>
    %85 = tpu.matmul %84, %69, %cst_35 {dimension_numbers = #tpu.dot_dimension_numbers<[1], [0], [0], [1], [0, 0, 1, 1], [], []>} : vector<16x16xbf16>, vector<16x8xbf16>, vector<16x8xf32> -> vector<16x8xf32>
    %86 = arith.truncf %85 : vector<16x8xf32> to vector<16x8xbf16>
    %c0_36 = arith.constant 0 : index
    %c1 = arith.constant 1 : index
    %c0_37 = arith.constant 0 : index
    %c0_38 = arith.constant 0 : index
    %87 = vector.load %arg8[%c0_36, %c1, %c0_37, %c0_38] : memref<2x4x8x32xbf16, #tpu.memory_space<vmem>>, vector<1x1x8x32xbf16>
    %88 = vector.shape_cast %87 : vector<1x1x8x32xbf16> to vector<8x32xbf16>
    %cst_39 = arith.constant dense<0.000000e+00> : vector<16x32xf32>
    %89 = tpu.matmul %86, %88, %cst_39 {dimension_numbers = #tpu.dot_dimension_numbers<[1], [0], [0], [1], [0, 0, 1, 1], [], []>} : vector<16x8xbf16>, vector<8x32xbf16>, vector<16x32xf32> -> vector<16x32xf32>
    %90 = arith.addf %63, %89 : vector<16x32xf32>
    %91 = vector.extract_strided_slice %33 {offsets = [0, 16], sizes = [16, 8], strides = [1, 1]} : vector<16x32xf32> to vector<16x8xf32>
    %92 = arith.truncf %91 : vector<16x8xf32> to vector<16x8xbf16>
    %93 = vector.extract_strided_slice %34 {offsets = [0, 16], sizes = [16, 8], strides = [1, 1]} : vector<16x32xf32> to vector<16x8xf32>
    %94 = arith.truncf %93 : vector<16x8xf32> to vector<16x8xbf16>
    %95 = vector.extract_strided_slice %35 {offsets = [0, 16], sizes = [16, 8], strides = [1, 1]} : vector<16x32xf32> to vector<16x8xf32>
    %96 = arith.truncf %95 : vector<16x8xf32> to vector<16x8xbf16>
    %cst_40 = arith.constant dense<0.000000e+00> : vector<16x16xf32>
    %97 = tpu.matmul %92, %94, %cst_40 {dimension_numbers = #tpu.dot_dimension_numbers<[1], [1], [0], [0], [0, 0, 1, 0], [], []>} : vector<16x8xbf16>, vector<16x8xbf16>, vector<16x16xf32> -> vector<16x16xf32>
    %cst_41 = arith.constant 0.353553385 : f32
    %98 = vector.broadcast %cst_41 : f32 to vector<16x16xf32>
    %99 = arith.mulf %97, %98 : vector<16x16xf32>
    %100 = arith.addf %99, %2 : vector<16x16xf32>
    %cst_42 = arith.constant dense<0xFF800000> : vector<16xf32>
    %101 = vector.multi_reduction <maximumf>, %100, %cst_42 [1] : vector<16x16xf32> to vector<16xf32>
    %102 = vector.shape_cast %101 : vector<16xf32> to vector<16x1xf32>
    %103 = vector.broadcast %102 : vector<16x1xf32> to vector<16x16xf32>
    %104 = arith.subf %100, %103 : vector<16x16xf32>
    %105 = math.exp %104 : vector<16x16xf32>
    %cst_43 = arith.constant dense<0.000000e+00> : vector<16xf32>
    %106 = vector.multi_reduction <add>, %105, %cst_43 [1] : vector<16x16xf32> to vector<16xf32>
    %107 = vector.shape_cast %106 : vector<16xf32> to vector<16x1xf32>
    %108 = tpu.reciprocal %107 {approx = true} : vector<16x1xf32> -> vector<16x1xf32>
    %109 = vector.broadcast %108 : vector<16x1xf32> to vector<16x16xf32>
    %110 = arith.mulf %105, %109 : vector<16x16xf32>
    %111 = arith.truncf %110 : vector<16x16xf32> to vector<16x16xbf16>
    %cst_44 = arith.constant dense<0.000000e+00> : vector<16x8xf32>
    %112 = tpu.matmul %111, %96, %cst_44 {dimension_numbers = #tpu.dot_dimension_numbers<[1], [0], [0], [1], [0, 0, 1, 1], [], []>} : vector<16x16xbf16>, vector<16x8xbf16>, vector<16x8xf32> -> vector<16x8xf32>
    %113 = arith.truncf %112 : vector<16x8xf32> to vector<16x8xbf16>
    %c0_45 = arith.constant 0 : index
    %c2 = arith.constant 2 : index
    %c0_46 = arith.constant 0 : index
    %c0_47 = arith.constant 0 : index
    %114 = vector.load %arg8[%c0_45, %c2, %c0_46, %c0_47] : memref<2x4x8x32xbf16, #tpu.memory_space<vmem>>, vector<1x1x8x32xbf16>
    %115 = vector.shape_cast %114 : vector<1x1x8x32xbf16> to vector<8x32xbf16>
    %cst_48 = arith.constant dense<0.000000e+00> : vector<16x32xf32>
    %116 = tpu.matmul %113, %115, %cst_48 {dimension_numbers = #tpu.dot_dimension_numbers<[1], [0], [0], [1], [0, 0, 1, 1], [], []>} : vector<16x8xbf16>, vector<8x32xbf16>, vector<16x32xf32> -> vector<16x32xf32>
    %117 = arith.addf %90, %116 : vector<16x32xf32>
    %118 = vector.extract_strided_slice %33 {offsets = [0, 24], sizes = [16, 8], strides = [1, 1]} : vector<16x32xf32> to vector<16x8xf32>
    %119 = arith.truncf %118 : vector<16x8xf32> to vector<16x8xbf16>
    %120 = vector.extract_strided_slice %34 {offsets = [0, 24], sizes = [16, 8], strides = [1, 1]} : vector<16x32xf32> to vector<16x8xf32>
    %121 = arith.truncf %120 : vector<16x8xf32> to vector<16x8xbf16>
    %122 = vector.extract_strided_slice %35 {offsets = [0, 24], sizes = [16, 8], strides = [1, 1]} : vector<16x32xf32> to vector<16x8xf32>
    %123 = arith.truncf %122 : vector<16x8xf32> to vector<16x8xbf16>
    %cst_49 = arith.constant dense<0.000000e+00> : vector<16x16xf32>
    %124 = tpu.matmul %119, %121, %cst_49 {dimension_numbers = #tpu.dot_dimension_numbers<[1], [1], [0], [0], [0, 0, 1, 0], [], []>} : vector<16x8xbf16>, vector<16x8xbf16>, vector<16x16xf32> -> vector<16x16xf32>
    %cst_50 = arith.constant 0.353553385 : f32
    %125 = vector.broadcast %cst_50 : f32 to vector<16x16xf32>
    %126 = arith.mulf %124, %125 : vector<16x16xf32>
    %127 = arith.addf %126, %2 : vector<16x16xf32>
    %cst_51 = arith.constant dense<0xFF800000> : vector<16xf32>
    %128 = vector.multi_reduction <maximumf>, %127, %cst_51 [1] : vector<16x16xf32> to vector<16xf32>
    %129 = vector.shape_cast %128 : vector<16xf32> to vector<16x1xf32>
    %130 = vector.broadcast %129 : vector<16x1xf32> to vector<16x16xf32>
    %131 = arith.subf %127, %130 : vector<16x16xf32>
    %132 = math.exp %131 : vector<16x16xf32>
    %cst_52 = arith.constant dense<0.000000e+00> : vector<16xf32>
    %133 = vector.multi_reduction <add>, %132, %cst_52 [1] : vector<16x16xf32> to vector<16xf32>
    %134 = vector.shape_cast %133 : vector<16xf32> to vector<16x1xf32>
    %135 = tpu.reciprocal %134 {approx = true} : vector<16x1xf32> -> vector<16x1xf32>
    %136 = vector.broadcast %135 : vector<16x1xf32> to vector<16x16xf32>
    %137 = arith.mulf %132, %136 : vector<16x16xf32>
    %138 = arith.truncf %137 : vector<16x16xf32> to vector<16x16xbf16>
    %cst_53 = arith.constant dense<0.000000e+00> : vector<16x8xf32>
    %139 = tpu.matmul %138, %123, %cst_53 {dimension_numbers = #tpu.dot_dimension_numbers<[1], [0], [0], [1], [0, 0, 1, 1], [], []>} : vector<16x16xbf16>, vector<16x8xbf16>, vector<16x8xf32> -> vector<16x8xf32>
    %140 = arith.truncf %139 : vector<16x8xf32> to vector<16x8xbf16>
    %c0_54 = arith.constant 0 : index
    %c3 = arith.constant 3 : index
    %c0_55 = arith.constant 0 : index
    %c0_56 = arith.constant 0 : index
    %141 = vector.load %arg8[%c0_54, %c3, %c0_55, %c0_56] : memref<2x4x8x32xbf16, #tpu.memory_space<vmem>>, vector<1x1x8x32xbf16>
    %142 = vector.shape_cast %141 : vector<1x1x8x32xbf16> to vector<8x32xbf16>
    %cst_57 = arith.constant dense<0.000000e+00> : vector<16x32xf32>
    %143 = tpu.matmul %140, %142, %cst_57 {dimension_numbers = #tpu.dot_dimension_numbers<[1], [0], [0], [1], [0, 0, 1, 1], [], []>} : vector<16x8xbf16>, vector<8x32xbf16>, vector<16x32xf32> -> vector<16x32xf32>
    %144 = arith.addf %117, %143 : vector<16x32xf32>
    %c0_58 = arith.constant 0 : index
    %c0_59 = arith.constant 0 : index
    %c0_60 = arith.constant 0 : index
    %145 = vector.load %arg9[%c0_58, %c0_59, %c0_60] : memref<2x1x32xf32, #tpu.memory_space<vmem>>, vector<1x1x32xf32>
    %146 = vector.shape_cast %145 : vector<1x1x32xf32> to vector<1x32xf32>
    %147 = vector.broadcast %146 : vector<1x32xf32> to vector<16x32xf32>
    %148 = arith.addf %144, %147 : vector<16x32xf32>
    %149 = arith.addf %24, %148 : vector<16x32xf32>
    %c0_61 = arith.constant 0 : index
    %c0_62 = arith.constant 0 : index
    %c0_63 = arith.constant 0 : index
    %150 = vector.load %arg10[%c0_61, %c0_62, %c0_63] : memref<2x1x32xf32, #tpu.memory_space<vmem>>, vector<1x1x32xf32>
    %151 = vector.shape_cast %150 : vector<1x1x32xf32> to vector<1x32xf32>
    %c0_64 = arith.constant 0 : index
    %c0_65 = arith.constant 0 : index
    %c0_66 = arith.constant 0 : index
    %152 = vector.load %arg11[%c0_64, %c0_65, %c0_66] : memref<2x1x32xf32, #tpu.memory_space<vmem>>, vector<1x1x32xf32>
    %153 = vector.shape_cast %152 : vector<1x1x32xf32> to vector<1x32xf32>
    %cst_67 = arith.constant dense<0.000000e+00> : vector<16xf32>
    %154 = vector.multi_reduction <add>, %149, %cst_67 [1] : vector<16x32xf32> to vector<16xf32>
    %155 = vector.shape_cast %154 : vector<16xf32> to vector<16x1xf32>
    %cst_68 = arith.constant 3.200000e+01 : f32
    %156 = vector.broadcast %cst_68 : f32 to vector<16x1xf32>
    %157 = arith.divf %155, %156 : vector<16x1xf32>
    %158 = vector.broadcast %157 : vector<16x1xf32> to vector<16x32xf32>
    %159 = arith.subf %149, %158 : vector<16x32xf32>
    %160 = arith.mulf %159, %159 : vector<16x32xf32>
    %cst_69 = arith.constant dense<0.000000e+00> : vector<16xf32>
    %161 = vector.multi_reduction <add>, %160, %cst_69 [1] : vector<16x32xf32> to vector<16xf32>
    %162 = vector.shape_cast %161 : vector<16xf32> to vector<16x1xf32>
    %cst_70 = arith.constant 3.200000e+01 : f32
    %163 = vector.broadcast %cst_70 : f32 to vector<16x1xf32>
    %164 = arith.divf %162, %163 : vector<16x1xf32>
    %cst_71 = arith.constant 9.99999974E-6 : f32
    %165 = vector.broadcast %cst_71 : f32 to vector<16x1xf32>
    %166 = arith.addf %164, %165 : vector<16x1xf32>
    %167 = math.rsqrt %166 : vector<16x1xf32>
    %168 = vector.broadcast %167 : vector<16x1xf32> to vector<16x32xf32>
    %169 = arith.mulf %159, %168 : vector<16x32xf32>
    %170 = vector.broadcast %151 : vector<1x32xf32> to vector<16x32xf32>
    %171 = arith.mulf %169, %170 : vector<16x32xf32>
    %172 = vector.broadcast %153 : vector<1x32xf32> to vector<16x32xf32>
    %173 = arith.addf %171, %172 : vector<16x32xf32>
    %174 = arith.truncf %173 : vector<16x32xf32> to vector<16x32xbf16>
    %c0_72 = arith.constant 0 : index
    %c0_73 = arith.constant 0 : index
    %c0_74 = arith.constant 0 : index
    %175 = vector.load %arg12[%c0_72, %c0_73, %c0_74] : memref<2x32x64xbf16, #tpu.memory_space<vmem>>, vector<1x32x64xbf16>
    %176 = vector.shape_cast %175 : vector<1x32x64xbf16> to vector<32x64xbf16>
    %cst_75 = arith.constant dense<0.000000e+00> : vector<16x64xf32>
    %177 = tpu.matmul %174, %176, %cst_75 {dimension_numbers = #tpu.dot_dimension_numbers<[1], [0], [0], [1], [0, 0, 1, 1], [], []>} : vector<16x32xbf16>, vector<32x64xbf16>, vector<16x64xf32> -> vector<16x64xf32>
    %c0_76 = arith.constant 0 : index
    %c0_77 = arith.constant 0 : index
    %c0_78 = arith.constant 0 : index
    %178 = vector.load %arg13[%c0_76, %c0_77, %c0_78] : memref<2x1x64xf32, #tpu.memory_space<vmem>>, vector<1x1x64xf32>
    %179 = vector.shape_cast %178 : vector<1x1x64xf32> to vector<1x64xf32>
    %180 = vector.broadcast %179 : vector<1x64xf32> to vector<16x64xf32>
    %181 = arith.addf %177, %180 : vector<16x64xf32>
    %182 = arith.mulf %181, %181 : vector<16x64xf32>
    %183 = arith.mulf %181, %182 : vector<16x64xf32>
    %cst_79 = arith.constant 4.471500e-02 : f32
    %184 = vector.broadcast %cst_79 : f32 to vector<16x64xf32>
    %185 = arith.mulf %184, %183 : vector<16x64xf32>
    %186 = arith.addf %181, %185 : vector<16x64xf32>
    %cst_80 = arith.constant 0.797884583 : f32
    %187 = vector.broadcast %cst_80 : f32 to vector<16x64xf32>
    %188 = arith.mulf %187, %186 : vector<16x64xf32>
    %189 = math.tanh %188 : vector<16x64xf32>
    %cst_81 = arith.constant 1.000000e+00 : f32
    %190 = vector.broadcast %cst_81 : f32 to vector<16x64xf32>
    %191 = arith.addf %190, %189 : vector<16x64xf32>
    %cst_82 = arith.constant 5.000000e-01 : f32
    %192 = vector.broadcast %cst_82 : f32 to vector<16x64xf32>
    %193 = arith.mulf %192, %191 : vector<16x64xf32>
    %194 = arith.mulf %181, %193 : vector<16x64xf32>
    %195 = arith.truncf %194 : vector<16x64xf32> to vector<16x64xbf16>
    %c0_83 = arith.constant 0 : index
    %c0_84 = arith.constant 0 : index
    %c0_85 = arith.constant 0 : index
    %196 = vector.load %arg14[%c0_83, %c0_84, %c0_85] : memref<2x64x32xbf16, #tpu.memory_space<vmem>>, vector<1x64x32xbf16>
    %197 = vector.shape_cast %196 : vector<1x64x32xbf16> to vector<64x32xbf16>
    %cst_86 = arith.constant dense<0.000000e+00> : vector<16x32xf32>
    %198 = tpu.matmul %195, %197, %cst_86 {dimension_numbers = #tpu.dot_dimension_numbers<[1], [0], [0], [1], [0, 0, 1, 1], [], []>} : vector<16x64xbf16>, vector<64x32xbf16>, vector<16x32xf32> -> vector<16x32xf32>
    %c0_87 = arith.constant 0 : index
    %c0_88 = arith.constant 0 : index
    %c0_89 = arith.constant 0 : index
    %199 = vector.load %arg15[%c0_87, %c0_88, %c0_89] : memref<2x1x32xf32, #tpu.memory_space<vmem>>, vector<1x1x32xf32>
    %200 = vector.shape_cast %199 : vector<1x1x32xf32> to vector<1x32xf32>
    %201 = vector.broadcast %200 : vector<1x32xf32> to vector<16x32xf32>
    %202 = arith.addf %198, %201 : vector<16x32xf32>
    %203 = arith.addf %173, %202 : vector<16x32xf32>
    %c0_90 = arith.constant 0 : index
    %c0_91 = arith.constant 0 : index
    %c0_92 = arith.constant 0 : index
    %204 = vector.load %arg16[%c0_90, %c0_91, %c0_92] : memref<2x1x32xf32, #tpu.memory_space<vmem>>, vector<1x1x32xf32>
    %205 = vector.shape_cast %204 : vector<1x1x32xf32> to vector<1x32xf32>
    %c0_93 = arith.constant 0 : index
    %c0_94 = arith.constant 0 : index
    %c0_95 = arith.constant 0 : index
    %206 = vector.load %arg17[%c0_93, %c0_94, %c0_95] : memref<2x1x32xf32, #tpu.memory_space<vmem>>, vector<1x1x32xf32>
    %207 = vector.shape_cast %206 : vector<1x1x32xf32> to vector<1x32xf32>
    %cst_96 = arith.constant dense<0.000000e+00> : vector<16xf32>
    %208 = vector.multi_reduction <add>, %203, %cst_96 [1] : vector<16x32xf32> to vector<16xf32>
    %209 = vector.shape_cast %208 : vector<16xf32> to vector<16x1xf32>
    %cst_97 = arith.constant 3.200000e+01 : f32
    %210 = vector.broadcast %cst_97 : f32 to vector<16x1xf32>
    %211 = arith.divf %209, %210 : vector<16x1xf32>
    %212 = vector.broadcast %211 : vector<16x1xf32> to vector<16x32xf32>
    %213 = arith.subf %203, %212 : vector<16x32xf32>
    %214 = arith.mulf %213, %213 : vector<16x32xf32>
    %cst_98 = arith.constant dense<0.000000e+00> : vector<16xf32>
    %215 = vector.multi_reduction <add>, %214, %cst_98 [1] : vector<16x32xf32> to vector<16xf32>
    %216 = vector.shape_cast %215 : vector<16xf32> to vector<16x1xf32>
    %cst_99 = arith.constant 3.200000e+01 : f32
    %217 = vector.broadcast %cst_99 : f32 to vector<16x1xf32>
    %218 = arith.divf %216, %217 : vector<16x1xf32>
    %cst_100 = arith.constant 9.99999974E-6 : f32
    %219 = vector.broadcast %cst_100 : f32 to vector<16x1xf32>
    %220 = arith.addf %218, %219 : vector<16x1xf32>
    %221 = math.rsqrt %220 : vector<16x1xf32>
    %222 = vector.broadcast %221 : vector<16x1xf32> to vector<16x32xf32>
    %223 = arith.mulf %213, %222 : vector<16x32xf32>
    %224 = vector.broadcast %205 : vector<1x32xf32> to vector<16x32xf32>
    %225 = arith.mulf %223, %224 : vector<16x32xf32>
    %226 = vector.broadcast %207 : vector<1x32xf32> to vector<16x32xf32>
    %227 = arith.addf %225, %226 : vector<16x32xf32>
    %228 = arith.truncf %227 : vector<16x32xf32> to vector<16x32xbf16>
    %c1_101 = arith.constant 1 : index
    %c0_102 = arith.constant 0 : index
    %c0_103 = arith.constant 0 : index
    %229 = vector.load %arg6[%c1_101, %c0_102, %c0_103] : memref<2x32x96xbf16, #tpu.memory_space<vmem>>, vector<1x32x96xbf16>
    %230 = vector.shape_cast %229 : vector<1x32x96xbf16> to vector<32x96xbf16>
    %cst_104 = arith.constant dense<0.000000e+00> : vector<16x96xf32>
    %231 = tpu.matmul %228, %230, %cst_104 {dimension_numbers = #tpu.dot_dimension_numbers<[1], [0], [0], [1], [0, 0, 1, 1], [], []>} : vector<16x32xbf16>, vector<32x96xbf16>, vector<16x96xf32> -> vector<16x96xf32>
    %c1_105 = arith.constant 1 : index
    %c0_106 = arith.constant 0 : index
    %c0_107 = arith.constant 0 : index
    %232 = vector.load %arg7[%c1_105, %c0_106, %c0_107] : memref<2x1x96xf32, #tpu.memory_space<vmem>>, vector<1x1x96xf32>
    %233 = vector.shape_cast %232 : vector<1x1x96xf32> to vector<1x96xf32>
    %234 = vector.broadcast %233 : vector<1x96xf32> to vector<16x96xf32>
    %235 = arith.addf %231, %234 : vector<16x96xf32>
    %236 = vector.extract_strided_slice %235 {offsets = [0, 0], sizes = [16, 32], strides = [1, 1]} : vector<16x96xf32> to vector<16x32xf32>
    %237 = vector.extract_strided_slice %235 {offsets = [0, 32], sizes = [16, 32], strides = [1, 1]} : vector<16x96xf32> to vector<16x32xf32>
    %238 = vector.extract_strided_slice %235 {offsets = [0, 64], sizes = [16, 32], strides = [1, 1]} : vector<16x96xf32> to vector<16x32xf32>
    %cst_108 = arith.constant 0.000000e+00 : f32
    %239 = vector.broadcast %cst_108 : f32 to vector<16x32xf32>
    %240 = vector.extract_strided_slice %236 {offsets = [0, 0], sizes = [16, 8], strides = [1, 1]} : vector<16x32xf32> to vector<16x8xf32>
    %241 = arith.truncf %240 : vector<16x8xf32> to vector<16x8xbf16>
    %242 = vector.extract_strided_slice %237 {offsets = [0, 0], sizes = [16, 8], strides = [1, 1]} : vector<16x32xf32> to vector<16x8xf32>
    %243 = arith.truncf %242 : vector<16x8xf32> to vector<16x8xbf16>
    %244 = vector.extract_strided_slice %238 {offsets = [0, 0], sizes = [16, 8], strides = [1, 1]} : vector<16x32xf32> to vector<16x8xf32>
    %245 = arith.truncf %244 : vector<16x8xf32> to vector<16x8xbf16>
    %cst_109 = arith.constant dense<0.000000e+00> : vector<16x16xf32>
    %246 = tpu.matmul %241, %243, %cst_109 {dimension_numbers = #tpu.dot_dimension_numbers<[1], [1], [0], [0], [0, 0, 1, 0], [], []>} : vector<16x8xbf16>, vector<16x8xbf16>, vector<16x16xf32> -> vector<16x16xf32>
    %cst_110 = arith.constant 0.353553385 : f32
    %247 = vector.broadcast %cst_110 : f32 to vector<16x16xf32>
    %248 = arith.mulf %246, %247 : vector<16x16xf32>
    %249 = arith.addf %248, %2 : vector<16x16xf32>
    %cst_111 = arith.constant dense<0xFF800000> : vector<16xf32>
    %250 = vector.multi_reduction <maximumf>, %249, %cst_111 [1] : vector<16x16xf32> to vector<16xf32>
    %251 = vector.shape_cast %250 : vector<16xf32> to vector<16x1xf32>
    %252 = vector.broadcast %251 : vector<16x1xf32> to vector<16x16xf32>
    %253 = arith.subf %249, %252 : vector<16x16xf32>
    %254 = math.exp %253 : vector<16x16xf32>
    %cst_112 = arith.constant dense<0.000000e+00> : vector<16xf32>
    %255 = vector.multi_reduction <add>, %254, %cst_112 [1] : vector<16x16xf32> to vector<16xf32>
    %256 = vector.shape_cast %255 : vector<16xf32> to vector<16x1xf32>
    %257 = tpu.reciprocal %256 {approx = true} : vector<16x1xf32> -> vector<16x1xf32>
    %258 = vector.broadcast %257 : vector<16x1xf32> to vector<16x16xf32>
    %259 = arith.mulf %254, %258 : vector<16x16xf32>
    %260 = arith.truncf %259 : vector<16x16xf32> to vector<16x16xbf16>
    %cst_113 = arith.constant dense<0.000000e+00> : vector<16x8xf32>
    %261 = tpu.matmul %260, %245, %cst_113 {dimension_numbers = #tpu.dot_dimension_numbers<[1], [0], [0], [1], [0, 0, 1, 1], [], []>} : vector<16x16xbf16>, vector<16x8xbf16>, vector<16x8xf32> -> vector<16x8xf32>
    %262 = arith.truncf %261 : vector<16x8xf32> to vector<16x8xbf16>
    %c1_114 = arith.constant 1 : index
    %c0_115 = arith.constant 0 : index
    %c0_116 = arith.constant 0 : index
    %c0_117 = arith.constant 0 : index
    %263 = vector.load %arg8[%c1_114, %c0_115, %c0_116, %c0_117] : memref<2x4x8x32xbf16, #tpu.memory_space<vmem>>, vector<1x1x8x32xbf16>
    %264 = vector.shape_cast %263 : vector<1x1x8x32xbf16> to vector<8x32xbf16>
    %cst_118 = arith.constant dense<0.000000e+00> : vector<16x32xf32>
    %265 = tpu.matmul %262, %264, %cst_118 {dimension_numbers = #tpu.dot_dimension_numbers<[1], [0], [0], [1], [0, 0, 1, 1], [], []>} : vector<16x8xbf16>, vector<8x32xbf16>, vector<16x32xf32> -> vector<16x32xf32>
    %266 = arith.addf %239, %265 : vector<16x32xf32>
    %267 = vector.extract_strided_slice %236 {offsets = [0, 8], sizes = [16, 8], strides = [1, 1]} : vector<16x32xf32> to vector<16x8xf32>
    %268 = arith.truncf %267 : vector<16x8xf32> to vector<16x8xbf16>
    %269 = vector.extract_strided_slice %237 {offsets = [0, 8], sizes = [16, 8], strides = [1, 1]} : vector<16x32xf32> to vector<16x8xf32>
    %270 = arith.truncf %269 : vector<16x8xf32> to vector<16x8xbf16>
    %271 = vector.extract_strided_slice %238 {offsets = [0, 8], sizes = [16, 8], strides = [1, 1]} : vector<16x32xf32> to vector<16x8xf32>
    %272 = arith.truncf %271 : vector<16x8xf32> to vector<16x8xbf16>
    %cst_119 = arith.constant dense<0.000000e+00> : vector<16x16xf32>
    %273 = tpu.matmul %268, %270, %cst_119 {dimension_numbers = #tpu.dot_dimension_numbers<[1], [1], [0], [0], [0, 0, 1, 0], [], []>} : vector<16x8xbf16>, vector<16x8xbf16>, vector<16x16xf32> -> vector<16x16xf32>
    %cst_120 = arith.constant 0.353553385 : f32
    %274 = vector.broadcast %cst_120 : f32 to vector<16x16xf32>
    %275 = arith.mulf %273, %274 : vector<16x16xf32>
    %276 = arith.addf %275, %2 : vector<16x16xf32>
    %cst_121 = arith.constant dense<0xFF800000> : vector<16xf32>
    %277 = vector.multi_reduction <maximumf>, %276, %cst_121 [1] : vector<16x16xf32> to vector<16xf32>
    %278 = vector.shape_cast %277 : vector<16xf32> to vector<16x1xf32>
    %279 = vector.broadcast %278 : vector<16x1xf32> to vector<16x16xf32>
    %280 = arith.subf %276, %279 : vector<16x16xf32>
    %281 = math.exp %280 : vector<16x16xf32>
    %cst_122 = arith.constant dense<0.000000e+00> : vector<16xf32>
    %282 = vector.multi_reduction <add>, %281, %cst_122 [1] : vector<16x16xf32> to vector<16xf32>
    %283 = vector.shape_cast %282 : vector<16xf32> to vector<16x1xf32>
    %284 = tpu.reciprocal %283 {approx = true} : vector<16x1xf32> -> vector<16x1xf32>
    %285 = vector.broadcast %284 : vector<16x1xf32> to vector<16x16xf32>
    %286 = arith.mulf %281, %285 : vector<16x16xf32>
    %287 = arith.truncf %286 : vector<16x16xf32> to vector<16x16xbf16>
    %cst_123 = arith.constant dense<0.000000e+00> : vector<16x8xf32>
    %288 = tpu.matmul %287, %272, %cst_123 {dimension_numbers = #tpu.dot_dimension_numbers<[1], [0], [0], [1], [0, 0, 1, 1], [], []>} : vector<16x16xbf16>, vector<16x8xbf16>, vector<16x8xf32> -> vector<16x8xf32>
    %289 = arith.truncf %288 : vector<16x8xf32> to vector<16x8xbf16>
    %c1_124 = arith.constant 1 : index
    %c1_125 = arith.constant 1 : index
    %c0_126 = arith.constant 0 : index
    %c0_127 = arith.constant 0 : index
    %290 = vector.load %arg8[%c1_124, %c1_125, %c0_126, %c0_127] : memref<2x4x8x32xbf16, #tpu.memory_space<vmem>>, vector<1x1x8x32xbf16>
    %291 = vector.shape_cast %290 : vector<1x1x8x32xbf16> to vector<8x32xbf16>
    %cst_128 = arith.constant dense<0.000000e+00> : vector<16x32xf32>
    %292 = tpu.matmul %289, %291, %cst_128 {dimension_numbers = #tpu.dot_dimension_numbers<[1], [0], [0], [1], [0, 0, 1, 1], [], []>} : vector<16x8xbf16>, vector<8x32xbf16>, vector<16x32xf32> -> vector<16x32xf32>
    %293 = arith.addf %266, %292 : vector<16x32xf32>
    %294 = vector.extract_strided_slice %236 {offsets = [0, 16], sizes = [16, 8], strides = [1, 1]} : vector<16x32xf32> to vector<16x8xf32>
    %295 = arith.truncf %294 : vector<16x8xf32> to vector<16x8xbf16>
    %296 = vector.extract_strided_slice %237 {offsets = [0, 16], sizes = [16, 8], strides = [1, 1]} : vector<16x32xf32> to vector<16x8xf32>
    %297 = arith.truncf %296 : vector<16x8xf32> to vector<16x8xbf16>
    %298 = vector.extract_strided_slice %238 {offsets = [0, 16], sizes = [16, 8], strides = [1, 1]} : vector<16x32xf32> to vector<16x8xf32>
    %299 = arith.truncf %298 : vector<16x8xf32> to vector<16x8xbf16>
    %cst_129 = arith.constant dense<0.000000e+00> : vector<16x16xf32>
    %300 = tpu.matmul %295, %297, %cst_129 {dimension_numbers = #tpu.dot_dimension_numbers<[1], [1], [0], [0], [0, 0, 1, 0], [], []>} : vector<16x8xbf16>, vector<16x8xbf16>, vector<16x16xf32> -> vector<16x16xf32>
    %cst_130 = arith.constant 0.353553385 : f32
    %301 = vector.broadcast %cst_130 : f32 to vector<16x16xf32>
    %302 = arith.mulf %300, %301 : vector<16x16xf32>
    %303 = arith.addf %302, %2 : vector<16x16xf32>
    %cst_131 = arith.constant dense<0xFF800000> : vector<16xf32>
    %304 = vector.multi_reduction <maximumf>, %303, %cst_131 [1] : vector<16x16xf32> to vector<16xf32>
    %305 = vector.shape_cast %304 : vector<16xf32> to vector<16x1xf32>
    %306 = vector.broadcast %305 : vector<16x1xf32> to vector<16x16xf32>
    %307 = arith.subf %303, %306 : vector<16x16xf32>
    %308 = math.exp %307 : vector<16x16xf32>
    %cst_132 = arith.constant dense<0.000000e+00> : vector<16xf32>
    %309 = vector.multi_reduction <add>, %308, %cst_132 [1] : vector<16x16xf32> to vector<16xf32>
    %310 = vector.shape_cast %309 : vector<16xf32> to vector<16x1xf32>
    %311 = tpu.reciprocal %310 {approx = true} : vector<16x1xf32> -> vector<16x1xf32>
    %312 = vector.broadcast %311 : vector<16x1xf32> to vector<16x16xf32>
    %313 = arith.mulf %308, %312 : vector<16x16xf32>
    %314 = arith.truncf %313 : vector<16x16xf32> to vector<16x16xbf16>
    %cst_133 = arith.constant dense<0.000000e+00> : vector<16x8xf32>
    %315 = tpu.matmul %314, %299, %cst_133 {dimension_numbers = #tpu.dot_dimension_numbers<[1], [0], [0], [1], [0, 0, 1, 1], [], []>} : vector<16x16xbf16>, vector<16x8xbf16>, vector<16x8xf32> -> vector<16x8xf32>
    %316 = arith.truncf %315 : vector<16x8xf32> to vector<16x8xbf16>
    %c1_134 = arith.constant 1 : index
    %c2_135 = arith.constant 2 : index
    %c0_136 = arith.constant 0 : index
    %c0_137 = arith.constant 0 : index
    %317 = vector.load %arg8[%c1_134, %c2_135, %c0_136, %c0_137] : memref<2x4x8x32xbf16, #tpu.memory_space<vmem>>, vector<1x1x8x32xbf16>
    %318 = vector.shape_cast %317 : vector<1x1x8x32xbf16> to vector<8x32xbf16>
    %cst_138 = arith.constant dense<0.000000e+00> : vector<16x32xf32>
    %319 = tpu.matmul %316, %318, %cst_138 {dimension_numbers = #tpu.dot_dimension_numbers<[1], [0], [0], [1], [0, 0, 1, 1], [], []>} : vector<16x8xbf16>, vector<8x32xbf16>, vector<16x32xf32> -> vector<16x32xf32>
    %320 = arith.addf %293, %319 : vector<16x32xf32>
    %321 = vector.extract_strided_slice %236 {offsets = [0, 24], sizes = [16, 8], strides = [1, 1]} : vector<16x32xf32> to vector<16x8xf32>
    %322 = arith.truncf %321 : vector<16x8xf32> to vector<16x8xbf16>
    %323 = vector.extract_strided_slice %237 {offsets = [0, 24], sizes = [16, 8], strides = [1, 1]} : vector<16x32xf32> to vector<16x8xf32>
    %324 = arith.truncf %323 : vector<16x8xf32> to vector<16x8xbf16>
    %325 = vector.extract_strided_slice %238 {offsets = [0, 24], sizes = [16, 8], strides = [1, 1]} : vector<16x32xf32> to vector<16x8xf32>
    %326 = arith.truncf %325 : vector<16x8xf32> to vector<16x8xbf16>
    %cst_139 = arith.constant dense<0.000000e+00> : vector<16x16xf32>
    %327 = tpu.matmul %322, %324, %cst_139 {dimension_numbers = #tpu.dot_dimension_numbers<[1], [1], [0], [0], [0, 0, 1, 0], [], []>} : vector<16x8xbf16>, vector<16x8xbf16>, vector<16x16xf32> -> vector<16x16xf32>
    %cst_140 = arith.constant 0.353553385 : f32
    %328 = vector.broadcast %cst_140 : f32 to vector<16x16xf32>
    %329 = arith.mulf %327, %328 : vector<16x16xf32>
    %330 = arith.addf %329, %2 : vector<16x16xf32>
    %cst_141 = arith.constant dense<0xFF800000> : vector<16xf32>
    %331 = vector.multi_reduction <maximumf>, %330, %cst_141 [1] : vector<16x16xf32> to vector<16xf32>
    %332 = vector.shape_cast %331 : vector<16xf32> to vector<16x1xf32>
    %333 = vector.broadcast %332 : vector<16x1xf32> to vector<16x16xf32>
    %334 = arith.subf %330, %333 : vector<16x16xf32>
    %335 = math.exp %334 : vector<16x16xf32>
    %cst_142 = arith.constant dense<0.000000e+00> : vector<16xf32>
    %336 = vector.multi_reduction <add>, %335, %cst_142 [1] : vector<16x16xf32> to vector<16xf32>
    %337 = vector.shape_cast %336 : vector<16xf32> to vector<16x1xf32>
    %338 = tpu.reciprocal %337 {approx = true} : vector<16x1xf32> -> vector<16x1xf32>
    %339 = vector.broadcast %338 : vector<16x1xf32> to vector<16x16xf32>
    %340 = arith.mulf %335, %339 : vector<16x16xf32>
    %341 = arith.truncf %340 : vector<16x16xf32> to vector<16x16xbf16>
    %cst_143 = arith.constant dense<0.000000e+00> : vector<16x8xf32>
    %342 = tpu.matmul %341, %326, %cst_143 {dimension_numbers = #tpu.dot_dimension_numbers<[1], [0], [0], [1], [0, 0, 1, 1], [], []>} : vector<16x16xbf16>, vector<16x8xbf16>, vector<16x8xf32> -> vector<16x8xf32>
    %343 = arith.truncf %342 : vector<16x8xf32> to vector<16x8xbf16>
    %c1_144 = arith.constant 1 : index
    %c3_145 = arith.constant 3 : index
    %c0_146 = arith.constant 0 : index
    %c0_147 = arith.constant 0 : index
    %344 = vector.load %arg8[%c1_144, %c3_145, %c0_146, %c0_147] : memref<2x4x8x32xbf16, #tpu.memory_space<vmem>>, vector<1x1x8x32xbf16>
    %345 = vector.shape_cast %344 : vector<1x1x8x32xbf16> to vector<8x32xbf16>
    %cst_148 = arith.constant dense<0.000000e+00> : vector<16x32xf32>
    %346 = tpu.matmul %343, %345, %cst_148 {dimension_numbers = #tpu.dot_dimension_numbers<[1], [0], [0], [1], [0, 0, 1, 1], [], []>} : vector<16x8xbf16>, vector<8x32xbf16>, vector<16x32xf32> -> vector<16x32xf32>
    %347 = arith.addf %320, %346 : vector<16x32xf32>
    %c1_149 = arith.constant 1 : index
    %c0_150 = arith.constant 0 : index
    %c0_151 = arith.constant 0 : index
    %348 = vector.load %arg9[%c1_149, %c0_150, %c0_151] : memref<2x1x32xf32, #tpu.memory_space<vmem>>, vector<1x1x32xf32>
    %349 = vector.shape_cast %348 : vector<1x1x32xf32> to vector<1x32xf32>
    %350 = vector.broadcast %349 : vector<1x32xf32> to vector<16x32xf32>
    %351 = arith.addf %347, %350 : vector<16x32xf32>
    %352 = arith.addf %227, %351 : vector<16x32xf32>
    %c1_152 = arith.constant 1 : index
    %c0_153 = arith.constant 0 : index
    %c0_154 = arith.constant 0 : index
    %353 = vector.load %arg10[%c1_152, %c0_153, %c0_154] : memref<2x1x32xf32, #tpu.memory_space<vmem>>, vector<1x1x32xf32>
    %354 = vector.shape_cast %353 : vector<1x1x32xf32> to vector<1x32xf32>
    %c1_155 = arith.constant 1 : index
    %c0_156 = arith.constant 0 : index
    %c0_157 = arith.constant 0 : index
    %355 = vector.load %arg11[%c1_155, %c0_156, %c0_157] : memref<2x1x32xf32, #tpu.memory_space<vmem>>, vector<1x1x32xf32>
    %356 = vector.shape_cast %355 : vector<1x1x32xf32> to vector<1x32xf32>
    %cst_158 = arith.constant dense<0.000000e+00> : vector<16xf32>
    %357 = vector.multi_reduction <add>, %352, %cst_158 [1] : vector<16x32xf32> to vector<16xf32>
    %358 = vector.shape_cast %357 : vector<16xf32> to vector<16x1xf32>
    %cst_159 = arith.constant 3.200000e+01 : f32
    %359 = vector.broadcast %cst_159 : f32 to vector<16x1xf32>
    %360 = arith.divf %358, %359 : vector<16x1xf32>
    %361 = vector.broadcast %360 : vector<16x1xf32> to vector<16x32xf32>
    %362 = arith.subf %352, %361 : vector<16x32xf32>
    %363 = arith.mulf %362, %362 : vector<16x32xf32>
    %cst_160 = arith.constant dense<0.000000e+00> : vector<16xf32>
    %364 = vector.multi_reduction <add>, %363, %cst_160 [1] : vector<16x32xf32> to vector<16xf32>
    %365 = vector.shape_cast %364 : vector<16xf32> to vector<16x1xf32>
    %cst_161 = arith.constant 3.200000e+01 : f32
    %366 = vector.broadcast %cst_161 : f32 to vector<16x1xf32>
    %367 = arith.divf %365, %366 : vector<16x1xf32>
    %cst_162 = arith.constant 9.99999974E-6 : f32
    %368 = vector.broadcast %cst_162 : f32 to vector<16x1xf32>
    %369 = arith.addf %367, %368 : vector<16x1xf32>
    %370 = math.rsqrt %369 : vector<16x1xf32>
    %371 = vector.broadcast %370 : vector<16x1xf32> to vector<16x32xf32>
    %372 = arith.mulf %362, %371 : vector<16x32xf32>
    %373 = vector.broadcast %354 : vector<1x32xf32> to vector<16x32xf32>
    %374 = arith.mulf %372, %373 : vector<16x32xf32>
    %375 = vector.broadcast %356 : vector<1x32xf32> to vector<16x32xf32>
    %376 = arith.addf %374, %375 : vector<16x32xf32>
    %377 = arith.truncf %376 : vector<16x32xf32> to vector<16x32xbf16>
    %c1_163 = arith.constant 1 : index
    %c0_164 = arith.constant 0 : index
    %c0_165 = arith.constant 0 : index
    %378 = vector.load %arg12[%c1_163, %c0_164, %c0_165] : memref<2x32x64xbf16, #tpu.memory_space<vmem>>, vector<1x32x64xbf16>
    %379 = vector.shape_cast %378 : vector<1x32x64xbf16> to vector<32x64xbf16>
    %cst_166 = arith.constant dense<0.000000e+00> : vector<16x64xf32>
    %380 = tpu.matmul %377, %379, %cst_166 {dimension_numbers = #tpu.dot_dimension_numbers<[1], [0], [0], [1], [0, 0, 1, 1], [], []>} : vector<16x32xbf16>, vector<32x64xbf16>, vector<16x64xf32> -> vector<16x64xf32>
    %c1_167 = arith.constant 1 : index
    %c0_168 = arith.constant 0 : index
    %c0_169 = arith.constant 0 : index
    %381 = vector.load %arg13[%c1_167, %c0_168, %c0_169] : memref<2x1x64xf32, #tpu.memory_space<vmem>>, vector<1x1x64xf32>
    %382 = vector.shape_cast %381 : vector<1x1x64xf32> to vector<1x64xf32>
    %383 = vector.broadcast %382 : vector<1x64xf32> to vector<16x64xf32>
    %384 = arith.addf %380, %383 : vector<16x64xf32>
    %385 = arith.mulf %384, %384 : vector<16x64xf32>
    %386 = arith.mulf %384, %385 : vector<16x64xf32>
    %cst_170 = arith.constant 4.471500e-02 : f32
    %387 = vector.broadcast %cst_170 : f32 to vector<16x64xf32>
    %388 = arith.mulf %387, %386 : vector<16x64xf32>
    %389 = arith.addf %384, %388 : vector<16x64xf32>
    %cst_171 = arith.constant 0.797884583 : f32
    %390 = vector.broadcast %cst_171 : f32 to vector<16x64xf32>
    %391 = arith.mulf %390, %389 : vector<16x64xf32>
    %392 = math.tanh %391 : vector<16x64xf32>
    %cst_172 = arith.constant 1.000000e+00 : f32
    %393 = vector.broadcast %cst_172 : f32 to vector<16x64xf32>
    %394 = arith.addf %393, %392 : vector<16x64xf32>
    %cst_173 = arith.constant 5.000000e-01 : f32
    %395 = vector.broadcast %cst_173 : f32 to vector<16x64xf32>
    %396 = arith.mulf %395, %394 : vector<16x64xf32>
    %397 = arith.mulf %384, %396 : vector<16x64xf32>
    %398 = arith.truncf %397 : vector<16x64xf32> to vector<16x64xbf16>
    %c1_174 = arith.constant 1 : index
    %c0_175 = arith.constant 0 : index
    %c0_176 = arith.constant 0 : index
    %399 = vector.load %arg14[%c1_174, %c0_175, %c0_176] : memref<2x64x32xbf16, #tpu.memory_space<vmem>>, vector<1x64x32xbf16>
    %400 = vector.shape_cast %399 : vector<1x64x32xbf16> to vector<64x32xbf16>
    %cst_177 = arith.constant dense<0.000000e+00> : vector<16x32xf32>
    %401 = tpu.matmul %398, %400, %cst_177 {dimension_numbers = #tpu.dot_dimension_numbers<[1], [0], [0], [1], [0, 0, 1, 1], [], []>} : vector<16x64xbf16>, vector<64x32xbf16>, vector<16x32xf32> -> vector<16x32xf32>
    %c1_178 = arith.constant 1 : index
    %c0_179 = arith.constant 0 : index
    %c0_180 = arith.constant 0 : index
    %402 = vector.load %arg15[%c1_178, %c0_179, %c0_180] : memref<2x1x32xf32, #tpu.memory_space<vmem>>, vector<1x1x32xf32>
    %403 = vector.shape_cast %402 : vector<1x1x32xf32> to vector<1x32xf32>
    %404 = vector.broadcast %403 : vector<1x32xf32> to vector<16x32xf32>
    %405 = arith.addf %401, %404 : vector<16x32xf32>
    %406 = arith.addf %376, %405 : vector<16x32xf32>
    %c1_181 = arith.constant 1 : index
    %c0_182 = arith.constant 0 : index
    %c0_183 = arith.constant 0 : index
    %407 = vector.load %arg16[%c1_181, %c0_182, %c0_183] : memref<2x1x32xf32, #tpu.memory_space<vmem>>, vector<1x1x32xf32>
    %408 = vector.shape_cast %407 : vector<1x1x32xf32> to vector<1x32xf32>
    %c1_184 = arith.constant 1 : index
    %c0_185 = arith.constant 0 : index
    %c0_186 = arith.constant 0 : index
    %409 = vector.load %arg17[%c1_184, %c0_185, %c0_186] : memref<2x1x32xf32, #tpu.memory_space<vmem>>, vector<1x1x32xf32>
    %410 = vector.shape_cast %409 : vector<1x1x32xf32> to vector<1x32xf32>
    %cst_187 = arith.constant dense<0.000000e+00> : vector<16xf32>
    %411 = vector.multi_reduction <add>, %406, %cst_187 [1] : vector<16x32xf32> to vector<16xf32>
    %412 = vector.shape_cast %411 : vector<16xf32> to vector<16x1xf32>
    %cst_188 = arith.constant 3.200000e+01 : f32
    %413 = vector.broadcast %cst_188 : f32 to vector<16x1xf32>
    %414 = arith.divf %412, %413 : vector<16x1xf32>
    %415 = vector.broadcast %414 : vector<16x1xf32> to vector<16x32xf32>
    %416 = arith.subf %406, %415 : vector<16x32xf32>
    %417 = arith.mulf %416, %416 : vector<16x32xf32>
    %cst_189 = arith.constant dense<0.000000e+00> : vector<16xf32>
    %418 = vector.multi_reduction <add>, %417, %cst_189 [1] : vector<16x32xf32> to vector<16xf32>
    %419 = vector.shape_cast %418 : vector<16xf32> to vector<16x1xf32>
    %cst_190 = arith.constant 3.200000e+01 : f32
    %420 = vector.broadcast %cst_190 : f32 to vector<16x1xf32>
    %421 = arith.divf %419, %420 : vector<16x1xf32>
    %cst_191 = arith.constant 9.99999974E-6 : f32
    %422 = vector.broadcast %cst_191 : f32 to vector<16x1xf32>
    %423 = arith.addf %421, %422 : vector<16x1xf32>
    %424 = math.rsqrt %423 : vector<16x1xf32>
    %425 = vector.broadcast %424 : vector<16x1xf32> to vector<16x32xf32>
    %426 = arith.mulf %416, %425 : vector<16x32xf32>
    %427 = vector.broadcast %408 : vector<1x32xf32> to vector<16x32xf32>
    %428 = arith.mulf %426, %427 : vector<16x32xf32>
    %429 = vector.broadcast %410 : vector<1x32xf32> to vector<16x32xf32>
    %430 = arith.addf %428, %429 : vector<16x32xf32>
    %431 = vector.broadcast %1 : vector<16x1xf32> to vector<16x32xf32>
    %432 = arith.mulf %430, %431 : vector<16x32xf32>
    %c0_192 = arith.constant 0 : index
    %c0_193 = arith.constant 0 : index
    %433 = vector.load %arg18[%c0_192, %c0_193] : memref<16x32xf32, #tpu.memory_space<vmem>>, vector<16x32xf32>
    tpu.vector_store %arg18[%c0_192, %c0_193], %432 {strides = array<i32>} : memref<16x32xf32, #tpu.memory_space<vmem>>, vector<16x32xf32>,
    return
  }
  func.func @transform_0(%arg0: i32) -> (i32, i32) {
    %c0_i32 = arith.constant 0 : i32
    %c0_i32_0 = arith.constant 0 : i32
    %c0_i32_1 = arith.constant 0 : i32
    return %c0_i32, %c0_i32_0 : i32, i32
  }
  func.func @transform_1(%arg0: i32) -> (i32, i32) {
    %c0_i32 = arith.constant 0 : i32
    %c0_i32_0 = arith.constant 0 : i32
    %c0_i32_1 = arith.constant 0 : i32
    return %c0_i32, %c0_i32_0 : i32, i32
  }
  func.func @transform_2(%arg0: i32) -> (i32, i32) {
    %c0_i32 = arith.constant 0 : i32
    %c0_i32_0 = arith.constant 0 : i32
    %c0_i32_1 = arith.constant 0 : i32
    return %c0_i32, %c0_i32_0 : i32, i32
  }
  func.func @transform_3(%arg0: i32) -> (i32, i32) {
    %c0_i32 = arith.constant 0 : i32
    %c0_i32_0 = arith.constant 0 : i32
    %c0_i32_1 = arith.constant 0 : i32
    return %c0_i32, %c0_i32_0 : i32, i32
  }
  func.func @transform_4(%arg0: i32) -> (i32, i32) {
    %c0_i32 = arith.constant 0 : i32
    %c0_i32_0 = arith.constant 0 : i32
    %c0_i32_1 = arith.constant 0 : i32
    return %c0_i32, %c0_i32_0 : i32, i32
  }
  func.func @transform_5(%arg0: i32) -> (i32, i32, i32) {
    %c0_i32 = arith.constant 0 : i32
    %c0_i32_0 = arith.constant 0 : i32
    %c0_i32_1 = arith.constant 0 : i32
    %c0_i32_2 = arith.constant 0 : i32
    return %c0_i32, %c0_i32_0, %c0_i32_1 : i32, i32, i32
  }
  func.func @transform_6(%arg0: i32) -> (i32, i32, i32) {
    %c0_i32 = arith.constant 0 : i32
    %c0_i32_0 = arith.constant 0 : i32
    %c0_i32_1 = arith.constant 0 : i32
    %c0_i32_2 = arith.constant 0 : i32
    return %c0_i32, %c0_i32_0, %c0_i32_1 : i32, i32, i32
  }
  func.func @transform_7(%arg0: i32) -> (i32, i32, i32, i32) {
    %c0_i32 = arith.constant 0 : i32
    %c0_i32_0 = arith.constant 0 : i32
    %c0_i32_1 = arith.constant 0 : i32
    %c0_i32_2 = arith.constant 0 : i32
    %c0_i32_3 = arith.constant 0 : i32
    return %c0_i32, %c0_i32_0, %c0_i32_1, %c0_i32_2 : i32, i32, i32, i32
  }
  func.func @transform_8(%arg0: i32) -> (i32, i32, i32) {
    %c0_i32 = arith.constant 0 : i32
    %c0_i32_0 = arith.constant 0 : i32
    %c0_i32_1 = arith.constant 0 : i32
    %c0_i32_2 = arith.constant 0 : i32
    return %c0_i32, %c0_i32_0, %c0_i32_1 : i32, i32, i32
  }
  func.func @transform_9(%arg0: i32) -> (i32, i32, i32) {
    %c0_i32 = arith.constant 0 : i32
    %c0_i32_0 = arith.constant 0 : i32
    %c0_i32_1 = arith.constant 0 : i32
    %c0_i32_2 = arith.constant 0 : i32
    return %c0_i32, %c0_i32_0, %c0_i32_1 : i32, i32, i32
  }
  func.func @transform_10(%arg0: i32) -> (i32, i32, i32) {
    %c0_i32 = arith.constant 0 : i32
    %c0_i32_0 = arith.constant 0 : i32
    %c0_i32_1 = arith.constant 0 : i32
    %c0_i32_2 = arith.constant 0 : i32
    return %c0_i32, %c0_i32_0, %c0_i32_1 : i32, i32, i32
  }
  func.func @transform_11(%arg0: i32) -> (i32, i32, i32) {
    %c0_i32 = arith.constant 0 : i32
    %c0_i32_0 = arith.constant 0 : i32
    %c0_i32_1 = arith.constant 0 : i32
    %c0_i32_2 = arith.constant 0 : i32
    return %c0_i32, %c0_i32_0, %c0_i32_1 : i32, i32, i32
  }
  func.func @transform_12(%arg0: i32) -> (i32, i32, i32) {
    %c0_i32 = arith.constant 0 : i32
    %c0_i32_0 = arith.constant 0 : i32
    %c0_i32_1 = arith.constant 0 : i32
    %c0_i32_2 = arith.constant 0 : i32
    return %c0_i32, %c0_i32_0, %c0_i32_1 : i32, i32, i32
  }
  func.func @transform_13(%arg0: i32) -> (i32, i32, i32) {
    %c0_i32 = arith.constant 0 : i32
    %c0_i32_0 = arith.constant 0 : i32
    %c0_i32_1 = arith.constant 0 : i32
    %c0_i32_2 = arith.constant 0 : i32
    return %c0_i32, %c0_i32_0, %c0_i32_1 : i32, i32, i32
  }
  func.func @transform_14(%arg0: i32) -> (i32, i32, i32) {
    %c0_i32 = arith.constant 0 : i32
    %c0_i32_0 = arith.constant 0 : i32
    %c0_i32_1 = arith.constant 0 : i32
    %c0_i32_2 = arith.constant 0 : i32
    return %c0_i32, %c0_i32_0, %c0_i32_1 : i32, i32, i32
  }
  func.func @transform_15(%arg0: i32) -> (i32, i32, i32) {
    %c0_i32 = arith.constant 0 : i32
    %c0_i32_0 = arith.constant 0 : i32
    %c0_i32_1 = arith.constant 0 : i32
    %c0_i32_2 = arith.constant 0 : i32
    return %c0_i32, %c0_i32_0, %c0_i32_1 : i32, i32, i32
  }
  func.func @transform_16(%arg0: i32) -> (i32, i32, i32) {
    %c0_i32 = arith.constant 0 : i32
    %c0_i32_0 = arith.constant 0 : i32
    %c0_i32_1 = arith.constant 0 : i32
    %c0_i32_2 = arith.constant 0 : i32
    return %c0_i32, %c0_i32_0, %c0_i32_1 : i32, i32, i32
  }
  func.func @transform_17(%arg0: i32) -> (i32, i32) {
    %c0_i32 = arith.constant 0 : i32
    %c0_i32_0 = arith.constant 0 : i32
    %c0_i32_1 = arith.constant 0 : i32
    return %c0_i32, %c0_i32_0 : i32, i32
  }
}

</mosaic_0001>

<llo_original>
// kernel: tpu_custom_call.1
$region0: #{tpu_custom_call.1}
  #allocation0 [shape = 'u32[]', space=smem, size = 0x4, offset = 0x4, fixed_abs, tag = 'smem constant byte address 0x4 - core index']
  #allocation1 [shape = 'u32[144,128]{1,0:T(1,128)}', space=vmem, size = 0x12000, scoped, tag = 'internal scratch']
  %s0 = inlined_call_operand.hbm [shape: f32[16,32], index: 0, kind: input, shape index: {}]
  %s1 = inlined_call_operand.vmem [shape: f32[16,1], index: 1, kind: input, shape index: {}]
  %s2 = inlined_call_operand.hbm [shape: f32[16,16], index: 2, kind: input, shape index: {}]
  %s3 = inlined_call_operand.hbm [shape: f32[1,32], index: 3, kind: input, shape index: {}]
  %s4 = inlined_call_operand.hbm [shape: f32[1,32], index: 4, kind: input, shape index: {}]
  %s5 = inlined_call_operand.vmem [shape: bf16[2,32,96], index: 5, kind: input, shape index: {}]
  %s6 = inlined_call_operand.vmem [shape: f32[2,1,96], index: 6, kind: input, shape index: {}]
  %s7 = inlined_call_operand.vmem [shape: bf16[2,4,8,32], index: 7, kind: input, shape index: {}]
  %s8 = inlined_call_operand.vmem [shape: f32[2,1,32], index: 8, kind: input, shape index: {}]
  %s9 = inlined_call_operand.vmem [shape: f32[2,1,32], index: 9, kind: input, shape index: {}]
  %s10 = inlined_call_operand.vmem [shape: f32[2,1,32], index: 10, kind: input, shape index: {}]
  %s11 = inlined_call_operand.vmem [shape: bf16[2,32,64], index: 11, kind: input, shape index: {}]
  %s12 = inlined_call_operand.hbm [shape: f32[2,1,64], index: 12, kind: input, shape index: {}]
  %s13 = inlined_call_operand.vmem [shape: bf16[2,64,32], index: 13, kind: input, shape index: {}]
  %s14 = inlined_call_operand.vmem [shape: f32[2,1,32], index: 14, kind: input, shape index: {}]
  %s15 = inlined_call_operand.vmem [shape: f32[2,1,32], index: 15, kind: input, shape index: {}]
  %s16 = inlined_call_operand.vmem [shape: f32[2,1,32], index: 16, kind: input, shape index: {}]
  %s17 = inlined_call_operand.hbm [shape: f32[16,32], index: 17, kind: output, shape index: {}]
  %s18 = sld [smem:[#allocation0]]
  $region98: #{tpu_custom_call.1} parent=0
    _
  %s20 = ssub.s32 1, %s18
  %s21 = scalar_select 0, %s20, %s18
  $region1: #{tpu_custom_call.1} parent=0
    #allocation2 [shape = 'u8[8192]{0}', space=vmem, size = 0x2000, scoped, tag = 'input window, operand 0, single buffered']
    #allocation3 [shape = 's32[1]{0}', space=sflag, size = 0x4, scoped, tag = 'scoped memory for tpu_custom_call.1']
    #allocation4 [shape = 's32[1]{0}', space=sflag, size = 0x4, scoped, tag = 'scoped memory for tpu_custom_call.1']
    #allocation5 [shape = 'u8[8192]{0}', space=vmem, size = 0x2000, scoped, tag = 'input window, operand 2, single buffered']
    #allocation6 [shape = 's32[1]{0}', space=sflag, size = 0x4, scoped, tag = 'scoped memory for tpu_custom_call.1']
    #allocation7 [shape = 'u8[512]{0}', space=vmem, size = 0x400, scoped, tag = 'input window, operand 3, single buffered']
    #allocation8 [shape = 'u8[512]{0}', space=vmem, size = 0x400, scoped, tag = 'input window, operand 4, single buffered']
    #allocation9 [shape = 's32[1]{0}', space=sflag, size = 0x4, scoped, tag = 'scoped memory for tpu_custom_call.1']
    #allocation10 [shape = 'u8[1024]{0}', space=vmem, size = 0x400, scoped, tag = 'input window, operand 12, single buffered']
    #allocation11 [shape = 'u8[8192]{0}', space=vmem, size = 0x2000, scoped, tag = 'output window, operand 0, single buffered']
    %22 = vsyncpa [#allocation3], 0
    %23 = vsyncpa [#allocation6], 0
    %24 = vsyncpa [#allocation9], 0
    %25 = vsyncpa [#allocation4], 0
    // Predicated region
    $region2: #{tpu_custom_call.1} parent=1 // pred_check
      _
    $region3: #{tpu_custom_call.1} parent=1 // pred_check_branch
      %27 = sbr.rel (0) target = $region5
    $region4: #{tpu_custom_call.1} parent=1 // pred_region
      %s29 = ssub.s32 256, 256
      %30 = vsyncadd [#allocation3], %s29
      %s31 = sshll.u32 [#allocation2], 4
      %s32 = int_to_ptr.vmem [resolvable:$true] %s31
      %37 = dma.hbm_to_vmem [thread:$0]  %s0, 256, %s32, [#allocation3], 128, 128, 8
    $region5: #{tpu_custom_call.1} parent=1 // pred_fallthru
      _
    // Predicated region
    $region6: #{tpu_custom_call.1} parent=1 // pred_check
      _
    $region7: #{tpu_custom_call.1} parent=1 // pred_check_branch
      %39 = sbr.rel (0) target = $region9
    $region8: #{tpu_custom_call.1} parent=1 // pred_region
      _
    $region9: #{tpu_custom_call.1} parent=1 // pred_fallthru
      _
    // Predicated region
    $region10: #{tpu_custom_call.1} parent=1 // pred_check
      _
    $region11: #{tpu_custom_call.1} parent=1 // pred_check_branch
      %41 = sbr.rel (0) target = $region13
    $region12: #{tpu_custom_call.1} parent=1 // pred_region
      %s43 = ssub.s32 256, 256
      %44 = vsyncadd [#allocation6], %s43
      %s45 = sshll.u32 [#allocation5], 4
      %s46 = int_to_ptr.vmem [resolvable:$true] %s45
      %51 = dma.hbm_to_vmem [thread:$0]  %s2, 256, %s46, [#allocation6], 128, 128, 8
    $region13: #{tpu_custom_call.1} parent=1 // pred_fallthru
      _
    // Predicated region
    $region14: #{tpu_custom_call.1} parent=1 // pred_check
      _
    $region15: #{tpu_custom_call.1} parent=1 // pred_check_branch
      %53 = sbr.rel (0) target = $region17
    $region16: #{tpu_custom_call.1} parent=1 // pred_region
      %s55 = ssub.s32 16, 16
      %56 = vsyncadd [#allocation6], %s55
      %s58 = sshll.u32 [#allocation7], 4
      %s59 = int_to_ptr.vmem [resolvable:$true] %s58
      %61 = dma.hbm_to_vmem [thread:$0]  %s3, 16, %s59, [#allocation6]
    $region17: #{tpu_custom_call.1} parent=1 // pred_fallthru
      _
    // Predicated region
    $region18: #{tpu_custom_call.1} parent=1 // pred_check
      _
    $region19: #{tpu_custom_call.1} parent=1 // pred_check_branch
      %63 = sbr.rel (0) target = $region21
    $region20: #{tpu_custom_call.1} parent=1 // pred_region
      %s65 = ssub.s32 16, 16
      %66 = vsyncadd [#allocation9], %s65
      %s68 = sshll.u32 [#allocation8], 4
      %s69 = int_to_ptr.vmem [resolvable:$true] %s68
      %71 = dma.hbm_to_vmem [thread:$0]  %s4, 16, %s69, [#allocation9]
    $region21: #{tpu_custom_call.1} parent=1 // pred_fallthru
      _
    // Predicated region
    $region22: #{tpu_custom_call.1} parent=1 // pred_check
      _
    $region23: #{tpu_custom_call.1} parent=1 // pred_check_branch
      %73 = sbr.rel (0) target = $region25
    $region24: #{tpu_custom_call.1} parent=1 // pred_region
      _
    $region25: #{tpu_custom_call.1} parent=1 // pred_fallthru
      _
    // Predicated region
    $region26: #{tpu_custom_call.1} parent=1 // pred_check
      _
    $region27: #{tpu_custom_call.1} parent=1 // pred_check_branch
      %75 = sbr.rel (0) target = $region29
    $region28: #{tpu_custom_call.1} parent=1 // pred_region
      _
    $region29: #{tpu_custom_call.1} parent=1 // pred_fallthru
      _
    // Predicated region
    $region30: #{tpu_custom_call.1} parent=1 // pred_check
      _
    $region31: #{tpu_custom_call.1} parent=1 // pred_check_branch
      %77 = sbr.rel (0) target = $region33
    $region32: #{tpu_custom_call.1} parent=1 // pred_region
      _
    $region33: #{tpu_custom_call.1} parent=1 // pred_fallthru
      _
    // Predicated region
    $region34: #{tpu_custom_call.1} parent=1 // pred_check
      _
    $region35: #{tpu_custom_call.1} parent=1 // pred_check_branch
      %79 = sbr.rel (0) target = $region37
    $region36: #{tpu_custom_call.1} parent=1 // pred_region
      _
    $region37: #{tpu_custom_call.1} parent=1 // pred_fallthru
      _
    // Predicated region
    $region38: #{tpu_custom_call.1} parent=1 // pred_check
      _
    $region39: #{tpu_custom_call.1} parent=1 // pred_check_branch
      %81 = sbr.rel (0) target = $region41
    $region40: #{tpu_custom_call.1} parent=1 // pred_region
      _
    $region41: #{tpu_custom_call.1} parent=1 // pred_fallthru
      _
    // Predicated region
    $region42: #{tpu_custom_call.1} parent=1 // pred_check
      _
    $region43: #{tpu_custom_call.1} parent=1 // pred_check_branch
      %83 = sbr.rel (0) target = $region45
    $region44: #{tpu_custom_call.1} parent=1 // pred_region
      _
    $region45: #{tpu_custom_call.1} parent=1 // pred_fallthru
      _
    // Predicated region
    $region46: #{tpu_custom_call.1} parent=1 // pred_check
      _
    $region47: #{tpu_custom_call.1} parent=1 // pred_check_branch
      %85 = sbr.rel (0) target = $region49
    $region48: #{tpu_custom_call.1} parent=1 // pred_region
      _
    $region49: #{tpu_custom_call.1} parent=1 // pred_fallthru
      _
    // Predicated region
    $region50: #{tpu_custom_call.1} parent=1 // pred_check
      _
    $region51: #{tpu_custom_call.1} parent=1 // pred_check_branch
      %87 = sbr.rel (0) target = $region53
    $region52: #{tpu_custom_call.1} parent=1 // pred_region
      %s89 = ssub.s32 32, 32
      %90 = vsyncadd [#allocation9], %s89
      %s91 = sshll.u32 [#allocation10], 4
      %s92 = int_to_ptr.vmem [resolvable:$true] %s91
      %97 = dma.hbm_to_vmem [thread:$0]  %s12, 32, %s92, [#allocation9], 16, 16, 1
    $region53: #{tpu_custom_call.1} parent=1 // pred_fallthru
      _
    // Predicated region
    $region54: #{tpu_custom_call.1} parent=1 // pred_check
      _
    $region55: #{tpu_custom_call.1} parent=1 // pred_check_branch
      %99 = sbr.rel (0) target = $region57
    $region56: #{tpu_custom_call.1} parent=1 // pred_region
      _
    $region57: #{tpu_custom_call.1} parent=1 // pred_fallthru
      _
    // Predicated region
    $region58: #{tpu_custom_call.1} parent=1 // pred_check
      _
    $region59: #{tpu_custom_call.1} parent=1 // pred_check_branch
      %101 = sbr.rel (0) target = $region61
    $region60: #{tpu_custom_call.1} parent=1 // pred_region
      _
    $region61: #{tpu_custom_call.1} parent=1 // pred_fallthru
      _
    // Predicated region
    $region62: #{tpu_custom_call.1} parent=1 // pred_check
      _
    $region63: #{tpu_custom_call.1} parent=1 // pred_check_branch
      %103 = sbr.rel (0) target = $region65
    $region64: #{tpu_custom_call.1} parent=1 // pred_region
      _
    $region65: #{tpu_custom_call.1} parent=1 // pred_fallthru
      _
    // Predicated region
    $region66: #{tpu_custom_call.1} parent=1 // pred_check
      _
    $region67: #{tpu_custom_call.1} parent=1 // pred_check_branch
      %105 = sbr.rel (0) target = $region69
    $region68: #{tpu_custom_call.1} parent=1 // pred_region
      _
    $region69: #{tpu_custom_call.1} parent=1 // pred_fallthru
      _
    // Predicated region
    $region70: #{tpu_custom_call.1} parent=1 // pred_check
      _
    $region71: #{tpu_custom_call.1} parent=1 // pred_check_branch
      %107 = sbr.rel (0) target = $region73
    $region72: #{tpu_custom_call.1} parent=1 // pred_region
      %108 = dma.done [#allocation3], 256
    $region73: #{tpu_custom_call.1} parent=1 // pred_fallthru
      _
    // Predicated region
    $region74: #{tpu_custom_call.1} parent=1 // pred_check
      _
    $region75: #{tpu_custom_call.1} parent=1 // pred_check_branch
      %110 = sbr.rel (0) target = $region77
    $region76: #{tpu_custom_call.1} parent=1 // pred_region
      %111 = dma.done [#allocation6], 256
    $region77: #{tpu_custom_call.1} parent=1 // pred_fallthru
      _
    // Predicated region
    $region78: #{tpu_custom_call.1} parent=1 // pred_check
      _
    $region79: #{tpu_custom_call.1} parent=1 // pred_check_branch
      %113 = sbr.rel (0) target = $region81
    $region80: #{tpu_custom_call.1} parent=1 // pred_region
      %114 = dma.done [#allocation6], 16
    $region81: #{tpu_custom_call.1} parent=1 // pred_fallthru
      _
    // Predicated region
    $region82: #{tpu_custom_call.1} parent=1 // pred_check
      _
    $region83: #{tpu_custom_call.1} parent=1 // pred_check_branch
      %116 = sbr.rel (0) target = $region85
    $region84: #{tpu_custom_call.1} parent=1 // pred_region
      %117 = dma.done [#allocation9], 16
    $region85: #{tpu_custom_call.1} parent=1 // pred_fallthru
      _
    // Predicated region
    $region86: #{tpu_custom_call.1} parent=1 // pred_check
      _
    $region87: #{tpu_custom_call.1} parent=1 // pred_check_branch
      %119 = sbr.rel (0) target = $region89
    $region88: #{tpu_custom_call.1} parent=1 // pred_region
      %120 = dma.done [#allocation9], 32
    $region89: #{tpu_custom_call.1} parent=1 // pred_fallthru
      _
    %v122 = vld [vmem:[#allocation2] sm:$0xff]
    %v123 = vld [vmem:[#allocation2 + $0x8] sm:$0xff]
    %v124 = vld [vmem:[%s1] sm:$0xff]
    %v125 = vld [vmem:[%s1 + $0x8] sm:$0xff]
    %v126 = vld [vmem:[#allocation5] sm:$0xff]
    %v127 = vld [vmem:[#allocation5 + $0x8] sm:$0xff]
    %v128 = vld [vmem:[#allocation7] sm:$0x1]
    %v129 = vld [vmem:[#allocation8] sm:$0x1]
    %vm130 = vcmask 261120
    %v131 = vsel %vm130, %v122, 0.0
    %132 = vadd.xlane.f32.xlu0 %v131
    %v133 = vpop.xlane.xlu0 %132
    %v134 = vsel %vm130, %v123, 0.0
    %135 = vadd.xlane.f32.xlu0 %v134
    %v136 = vpop.xlane.xlu0 %135
    %v137 = vrcp.pop 32.0
    %v138 = vmul.f32 %v133, %v137
    %v139 = vmul.f32 %v136, %v137
    %v140 = vsub.f32 %v122, %v138
    %v141 = vsub.f32 %v123, %v139
    %v142 = vmul.f32 %v140, %v140
    %v143 = vmul.f32 %v141, %v141
    %v144 = vsel %vm130, %v142, 0.0
    %145 = vadd.xlane.f32.xlu0 %v144
    %v146 = vpop.xlane.xlu0 %145
    %v147 = vsel %vm130, %v143, 0.0
    %148 = vadd.xlane.f32.xlu0 %v147
    %v149 = vpop.xlane.xlu0 %148
    %v150 = vmul.f32 %v146, %v137
    %v151 = vmul.f32 %v149, %v137
    %v152 = vadd.f32 %v150, 1e-05
    %v153 = vadd.f32 %v151, 1e-05
    %v154 = vrsqrt.pop %v152
    %v155 = vrsqrt.pop %v153
    %v156 = vmul.f32 %v140, %v154
    %v157 = vmul.f32 %v141, %v155
    %v159 = vlaneseq
    %v160 = vshrl.u32 %v159, 7
    %v161 = vsub.s32 0, %v160
    %v162 = vrot.slane %v128, %v161
    %v164 = vmul.f32 %v156, %v162
    %v165 = vmul.f32 %v157, %v162
    %v167 = vlaneseq
    %v168 = vshrl.u32 %v167, 7
    %v169 = vsub.s32 0, %v168
    %v170 = vrot.slane %v129, %v169
    %v172 = vadd.f32 %v164, %v170
    %v173 = vadd.f32 %v165, %v170
    %v174 = vpack.c.bf16 %v173, %v172
    %v175 = vld [vmem:[%s5] sm:$0xf]
    %v176 = vld [vmem:[%s5 + $0x4] sm:$0xf]
    %v177 = vld [vmem:[%s5 + $0x8] sm:$0xf]
    %v178 = vld [vmem:[%s5 + $0xc] sm:$0xf]
    %v179 = vld [vmem:[%s6] sm:$0x1]
    %v181 = vlaneseq
    %v182 = vshrl.u32 %v181, 7
    %v183 = vsub.s32 0, %v182
    %v184 = vrot.slane %v179, %v183
    %v190 = vunpack.c.l.b16 %v175
    %v191 = vunpack.c.l.b16 %v176
    %v192 = vunpack.c.l.b16 %v177
    %v193 = vunpack.c.l.b16 %v178
    %v194 = vpack.c.b16 %v191, %v190
    %v195 = vpack.c.b16 %v193, %v192
    %v199 = vsel %vm130, %v174, 0
    %201 = vmatprep.subr.bf16.mxu0 0
    %202 = vmatpush1.bf16.msra.mxu0 0
    %203 = vmatprep.subr.bf16.mxu0 0
    %204 = vmatpush1.bf16.msra.mxu0 0
    %205 = vmatprep.subr.bf16.mxu0 0
    %206 = vmatpush1.bf16.msra.mxu0 0
    %207 = vmatprep.subr.bf16.mxu0 0
    %208 = vmatpush1.bf16.msra.mxu0 0
    %209 = vmatprep.subr.bf16.mxu0 0
    %210 = vmatpush1.bf16.msra.mxu0 0
    %211 = vmatprep.subr.bf16.mxu0 0
    %212 = vmatpush1.bf16.msra.mxu0 0
    %213 = vmatprep.subr.bf16.mxu0 0
    %214 = vmatpush1.bf16.msra.mxu0 %v195
    %215 = vmatprep.subr.bf16.mxu0 0
    %216 = vmatpush1.bf16.msra.mxu0 %v194
    %217 = vmatprep.subr.bf16.mxu0 0
    %218 = vmatpush2.bf16.msra.mxu0 0
    %219 = vmatprep.subr.bf16.mxu0 0
    %220 = vmatpush2.bf16.msra.mxu0 0
    %221 = vmatprep.subr.bf16.mxu0 0
    %222 = vmatpush2.bf16.msra.mxu0 0
    %223 = vmatprep.subr.bf16.mxu0 0
    %224 = vmatpush2.bf16.msra.mxu0 0
    %225 = vmatprep.subr.bf16.mxu0 0
    %226 = vmatpush2.bf16.msra.mxu0 0
    %227 = vmatprep.subr.bf16.mxu0 0
    %228 = vmatpush2.bf16.msra.mxu0 0
    %229 = vmatprep.subr.bf16.mxu0 0
    %230 = vmatpush2.bf16.msra.mxu0 0
    %231 = vmatprep.subr.bf16.mxu0 0
    %232 = vmatpush2.bf16.msra.mxu0 0
    %233 = vmatprep.mubr.bf16.mxu0 0
    %234 = vmatmul.mubr.bf16.gmra.mxu0 %v199
    %v235 = vpop.f32.mrf.mxu0
    %v236 = vadd.f32 %v184, %v235
    %v237 = vpop.f32.mrf.mxu0
    %v238 = vpop.f32.mrf.mxu0
    %v239 = vadd.f32 %v184, %v238
    %v240 = vpop.f32.mrf.mxu0
    %241 = vdwg.mxu0
    %v242 = vpack.c.bf16 %v239, %v236
    %244 = vrot.lane.b32.xlu0 %v242, 96
    %v245 = vpop.permute.xlu0 %244
    %vm246 = vcmask 64512
    %v248 = vsel %vm246, %v242, 0
    %v251 = vsel %vm246, %v245, 0
    %253 = vmatprep.subr.bf16.mxu0 0
    %254 = vmatpush1.bf16.xpose.msra.mxu0 0
    %255 = vmatprep.subr.bf16.mxu0 0
    %256 = vmatpush1.bf16.xpose.msra.mxu0 0
    %257 = vmatprep.subr.bf16.mxu0 0
    %258 = vmatpush1.bf16.xpose.msra.mxu0 0
    %259 = vmatprep.subr.bf16.mxu0 0
    %260 = vmatpush1.bf16.xpose.msra.mxu0 0
    %261 = vmatprep.subr.bf16.mxu0 0
    %262 = vmatpush1.bf16.xpose.msra.mxu0 0
    %263 = vmatprep.subr.bf16.mxu0 0
    %264 = vmatpush1.bf16.xpose.msra.mxu0 0
    %265 = vmatprep.subr.bf16.mxu0 0
    %266 = vmatpush1.bf16.xpose.msra.mxu0 0
    %267 = vmatprep.subr.bf16.mxu0 0
    %268 = vmatpush1.bf16.xpose.msra.mxu0 %v251
    %269 = vmatprep.subr.bf16.mxu0 0
    %270 = vmatpush2.bf16.xpose.msra.mxu0 0
    %271 = vmatprep.subr.bf16.mxu0 0
    %272 = vmatpush2.bf16.xpose.msra.mxu0 0
    %273 = vmatprep.subr.bf16.mxu0 0
    %274 = vmatpush2.bf16.xpose.msra.mxu0 0
    %275 = vmatprep.subr.bf16.mxu0 0
    %276 = vmatpush2.bf16.xpose.msra.mxu0 0
    %277 = vmatprep.subr.bf16.mxu0 0
    %278 = vmatpush2.bf16.xpose.msra.mxu0 0
    %279 = vmatprep.subr.bf16.mxu0 0
    %280 = vmatpush2.bf16.xpose.msra.mxu0 0
    %281 = vmatprep.subr.bf16.mxu0 0
    %282 = vmatpush2.bf16.xpose.msra.mxu0 0
    %283 = vmatprep.subr.bf16.mxu0 0
    %284 = vmatpush2.bf16.xpose.msra.mxu0 0
    %285 = vmatprep.mubr.bf16.mxu0 0
    %286 = vmatmul.mubr.bf16.gmra.mxu0 %v248
    %v287 = vpop.f32.mrf.mxu0
    %v288 = vadd.f32 0.0, %v287
    %v289 = vpop.f32.mrf.mxu0
    %v290 = vpop.f32.mrf.mxu0
    %v291 = vadd.f32 0.0, %v290
    %v292 = vpop.f32.mrf.mxu0
    %293 = vdwg.mxu0
    %v294 = vmul.f32 %v288, 0.35355338
    %v295 = vmul.f32 %v291, 0.35355338
    %v296 = vadd.f32 %v294, %v126
    %v297 = vadd.f32 %v295, %v127
    %vm298 = vcmask 130048
    %v299 = vsel %vm298, %v296, -inf
    %300 = vmax.xlane.f32.xlu0 %v299
    %v301 = vpop.xlane.xlu0 %300
    %v302 = vsel %vm298, %v297, -inf
    %303 = vmax.xlane.f32.xlu0 %v302
    %v304 = vpop.xlane.xlu0 %303
    %v305 = vsub.f32 %v296, %v301
    %v306 = vsub.f32 %v297, %v304
    %v307 = vmul.f32 %v305, 1.442695
    %v308 = vpow.pop %v307
    %v309 = vmul.f32 %v306, 1.442695
    %v310 = vpow.pop %v309
    %v311 = vsel %vm298, %v308, 0.0
    %312 = vadd.xlane.f32.xlu0 %v311
    %v313 = vpop.xlane.xlu0 %312
    %v314 = vsel %vm298, %v310, 0.0
    %315 = vadd.xlane.f32.xlu0 %v314
    %v316 = vpop.xlane.xlu0 %315
    %v317 = vrcp.pop %v313
    %v318 = vrcp.pop %v316
    %v319 = vmul.f32 %v308, %v317
    %v320 = vmul.f32 %v310, %v318
    %v321 = vpack.c.bf16 %v320, %v319
    %322 = vrot.lane.b32.xlu0 %v242, 64
    %v323 = vpop.permute.xlu0 %322
    %v326 = vsel %vm298, %v321, 0
    %328 = vmatprep.subr.bf16.mxu0 0
    %329 = vmatpush1.bf16.msra.mxu0 0
    %330 = vmatprep.subr.bf16.mxu0 0
    %331 = vmatpush1.bf16.msra.mxu0 0
    %332 = vmatprep.subr.bf16.mxu0 0
    %333 = vmatpush1.bf16.msra.mxu0 0
    %334 = vmatprep.subr.bf16.mxu0 0
    %335 = vmatpush1.bf16.msra.mxu0 0
    %336 = vmatprep.subr.bf16.mxu0 0
    %337 = vmatpush1.bf16.msra.mxu0 0
    %338 = vmatprep.subr.bf16.mxu0 0
    %339 = vmatpush1.bf16.msra.mxu0 0
    %340 = vmatprep.subr.bf16.mxu0 0
    %341 = vmatpush1.bf16.msra.mxu0 0
    %342 = vmatprep.subr.bf16.mxu0 0
    %343 = vmatpush1.bf16.msra.mxu0 %v323
    %344 = vmatprep.subr.bf16.mxu0 0
    %345 = vmatpush2.bf16.msra.mxu0 0
    %346 = vmatprep.subr.bf16.mxu0 0
    %347 = vmatpush2.bf16.msra.mxu0 0
    %348 = vmatprep.subr.bf16.mxu0 0
    %349 = vmatpush2.bf16.msra.mxu0 0
    %350 = vmatprep.subr.bf16.mxu0 0
    %351 = vmatpush2.bf16.msra.mxu0 0
    %352 = vmatprep.subr.bf16.mxu0 0
    %353 = vmatpush2.bf16.msra.mxu0 0
    %354 = vmatprep.subr.bf16.mxu0 0
    %355 = vmatpush2.bf16.msra.mxu0 0
    %356 = vmatprep.subr.bf16.mxu0 0
    %357 = vmatpush2.bf16.msra.mxu0 0
    %358 = vmatprep.subr.bf16.mxu0 0
    %359 = vmatpush2.bf16.msra.mxu0 0
    %360 = vmatprep.mubr.bf16.mxu0 0
    %361 = vmatmul.mubr.bf16.gmra.mxu0 %v326
    %v362 = vpop.f32.mrf.mxu0
    %v363 = vadd.f32 0.0, %v362
    %v364 = vpop.f32.mrf.mxu0
    %v365 = vpop.f32.mrf.mxu0
    %v366 = vadd.f32 0.0, %v365
    %v367 = vpop.f32.mrf.mxu0
    %368 = vdwg.mxu0
    %v369 = vpack.c.bf16 %v366, %v363
    %v370 = vld [vmem:[%s7] sm:$0xf]
    %371 = vrot.lane.b32.xlu0 %v242, 120
    %v372 = vpop.permute.xlu0 %371
    %373 = vrot.lane.b32.xlu0 %v242, 88
    %v374 = vpop.permute.xlu0 %373
    %v376 = vsel %vm246, %v372, 0
    %v379 = vsel %vm246, %v374, 0
    %381 = vmatprep.subr.bf16.mxu0 0
    %382 = vmatpush1.bf16.xpose.msra.mxu0 0
    %383 = vmatprep.subr.bf16.mxu0 0
    %384 = vmatpush1.bf16.xpose.msra.mxu0 0
    %385 = vmatprep.subr.bf16.mxu0 0
    %386 = vmatpush1.bf16.xpose.msra.mxu0 0
    %387 = vmatprep.subr.bf16.mxu0 0
    %388 = vmatpush1.bf16.xpose.msra.mxu0 0
    %389 = vmatprep.subr.bf16.mxu0 0
    %390 = vmatpush1.bf16.xpose.msra.mxu0 0
    %391 = vmatprep.subr.bf16.mxu0 0
    %392 = vmatpush1.bf16.xpose.msra.mxu0 0
    %393 = vmatprep.subr.bf16.mxu0 0
    %394 = vmatpush1.bf16.xpose.msra.mxu0 0
    %395 = vmatprep.subr.bf16.mxu0 0
    %396 = vmatpush1.bf16.xpose.msra.mxu0 %v379
    %397 = vmatprep.subr.bf16.mxu0 0
    %398 = vmatpush2.bf16.xpose.msra.mxu0 0
    %399 = vmatprep.subr.bf16.mxu0 0
    %400 = vmatpush2.bf16.xpose.msra.mxu0 0
    %401 = vmatprep.subr.bf16.mxu0 0
    %402 = vmatpush2.bf16.xpose.msra.mxu0 0
    %403 = vmatprep.subr.bf16.mxu0 0
    %404 = vmatpush2.bf16.xpose.msra.mxu0 0
    %405 = vmatprep.subr.bf16.mxu0 0
    %406 = vmatpush2.bf16.xpose.msra.mxu0 0
    %407 = vmatprep.subr.bf16.mxu0 0
    %408 = vmatpush2.bf16.xpose.msra.mxu0 0
    %409 = vmatprep.subr.bf16.mxu0 0
    %410 = vmatpush2.bf16.xpose.msra.mxu0 0
    %411 = vmatprep.subr.bf16.mxu0 0
    %412 = vmatpush2.bf16.xpose.msra.mxu0 0
    %413 = vmatprep.mubr.bf16.mxu0 0
    %414 = vmatmul.mubr.bf16.gmra.mxu0 %v376
    %v415 = vpop.f32.mrf.mxu0
    %v416 = vadd.f32 0.0, %v415
    %v417 = vpop.f32.mrf.mxu0
    %v418 = vpop.f32.mrf.mxu0
    %v419 = vadd.f32 0.0, %v418
    %v420 = vpop.f32.mrf.mxu0
    %421 = vdwg.mxu0
    %v422 = vmul.f32 %v416, 0.35355338
    %v423 = vmul.f32 %v419, 0.35355338
    %v424 = vadd.f32 %v422, %v126
    %v425 = vadd.f32 %v423, %v127
    %v426 = vsel %vm298, %v424, -inf
    %427 = vmax.xlane.f32.xlu0 %v426
    %v428 = vpop.xlane.xlu0 %427
    %v429 = vsel %vm298, %v425, -inf
    %430 = vmax.xlane.f32.xlu0 %v429
    %v431 = vpop.xlane.xlu0 %430
    %v432 = vsub.f32 %v424, %v428
    %v433 = vsub.f32 %v425, %v431
    %v434 = vmul.f32 %v432, 1.442695
    %v435 = vpow.pop %v434
    %v436 = vmul.f32 %v433, 1.442695
    %v437 = vpow.pop %v436
    %v438 = vsel %vm298, %v435, 0.0
    %439 = vadd.xlane.f32.xlu0 %v438
    %v440 = vpop.xlane.xlu0 %439
    %v441 = vsel %vm298, %v437, 0.0
    %442 = vadd.xlane.f32.xlu0 %v441
    %v443 = vpop.xlane.xlu0 %442
    %v444 = vrcp.pop %v440
    %v445 = vrcp.pop %v443
    %v446 = vmul.f32 %v435, %v444
    %v447 = vmul.f32 %v437, %v445
    %v448 = vpack.c.bf16 %v447, %v446
    %449 = vrot.lane.b32.xlu0 %v242, 56
    %v450 = vpop.permute.xlu0 %449
    %v453 = vsel %vm298, %v448, 0
    %455 = vmatprep.subr.bf16.mxu0 0
    %456 = vmatpush1.bf16.msra.mxu0 0
    %457 = vmatprep.subr.bf16.mxu0 0
    %458 = vmatpush1.bf16.msra.mxu0 0
    %459 = vmatprep.subr.bf16.mxu0 0
    %460 = vmatpush1.bf16.msra.mxu0 0
    %461 = vmatprep.subr.bf16.mxu0 0
    %462 = vmatpush1.bf16.msra.mxu0 0
    %463 = vmatprep.subr.bf16.mxu0 0
    %464 = vmatpush1.bf16.msra.mxu0 0
    %465 = vmatprep.subr.bf16.mxu0 0
    %466 = vmatpush1.bf16.msra.mxu0 0
    %467 = vmatprep.subr.bf16.mxu0 0
    %468 = vmatpush1.bf16.msra.mxu0 0
    %469 = vmatprep.subr.bf16.mxu0 0
    %470 = vmatpush1.bf16.msra.mxu0 %v450
    %471 = vmatprep.subr.bf16.mxu0 0
    %472 = vmatpush2.bf16.msra.mxu0 0
    %473 = vmatprep.subr.bf16.mxu0 0
    %474 = vmatpush2.bf16.msra.mxu0 0
    %475 = vmatprep.subr.bf16.mxu0 0
    %476 = vmatpush2.bf16.msra.mxu0 0
    %477 = vmatprep.subr.bf16.mxu0 0
    %478 = vmatpush2.bf16.msra.mxu0 0
    %479 = vmatprep.subr.bf16.mxu0 0
    %480 = vmatpush2.bf16.msra.mxu0 0
    %481 = vmatprep.subr.bf16.mxu0 0
    %482 = vmatpush2.bf16.msra.mxu0 0
    %483 = vmatprep.subr.bf16.mxu0 0
    %484 = vmatpush2.bf16.msra.mxu0 0
    %485 = vmatprep.subr.bf16.mxu0 0
    %486 = vmatpush2.bf16.msra.mxu0 0
    %487 = vmatprep.mubr.bf16.mxu0 0
    %488 = vmatmul.mubr.bf16.gmra.mxu0 %v453
    %v489 = vpop.f32.mrf.mxu0
    %v490 = vadd.f32 0.0, %v489
    %v491 = vpop.f32.mrf.mxu0
    %v492 = vpop.f32.mrf.mxu0
    %v493 = vadd.f32 0.0, %v492
    %v494 = vpop.f32.mrf.mxu0
    %495 = vdwg.mxu0
    %v496 = vpack.c.bf16 %v493, %v490
    %s497 = scalar_lea.vmem %s7, 4
    %v498 = vld [vmem:[%s497] sm:$0xf]
    %v500 = vsel %vm246, %v496, 0
    %vm502 = vcmask 1043456
    %v504 = vsel %vm502, %v498, 0
    %506 = vmatprep.subr.bf16.mxu0 0
    %507 = vmatpush1.bf16.msra.mxu0 0
    %508 = vmatprep.subr.bf16.mxu0 0
    %509 = vmatpush1.bf16.msra.mxu0 0
    %510 = vmatprep.subr.bf16.mxu0 0
    %511 = vmatpush1.bf16.msra.mxu0 0
    %512 = vmatprep.subr.bf16.mxu0 0
    %513 = vmatpush1.bf16.msra.mxu0 0
    %514 = vmatprep.subr.bf16.mxu0 0
    %515 = vmatpush1.bf16.msra.mxu0 0
    %516 = vmatprep.subr.bf16.mxu0 0
    %517 = vmatpush1.bf16.msra.mxu0 0
    %518 = vmatprep.subr.bf16.mxu0 0
    %519 = vmatpush1.bf16.msra.mxu0 0
    %520 = vmatprep.subr.bf16.mxu0 0
    %521 = vmatpush1.bf16.msra.mxu0 %v504
    %522 = vmatprep.subr.bf16.mxu0 0
    %523 = vmatpush2.bf16.msra.mxu0 0
    %524 = vmatprep.subr.bf16.mxu0 0
    %525 = vmatpush2.bf16.msra.mxu0 0
    %526 = vmatprep.subr.bf16.mxu0 0
    %527 = vmatpush2.bf16.msra.mxu0 0
    %528 = vmatprep.subr.bf16.mxu0 0
    %529 = vmatpush2.bf16.msra.mxu0 0
    %530 = vmatprep.subr.bf16.mxu0 0
    %531 = vmatpush2.bf16.msra.mxu0 0
    %532 = vmatprep.subr.bf16.mxu0 0
    %533 = vmatpush2.bf16.msra.mxu0 0
    %534 = vmatprep.subr.bf16.mxu0 0
    %535 = vmatpush2.bf16.msra.mxu0 0
    %536 = vmatprep.subr.bf16.mxu0 0
    %537 = vmatpush2.bf16.msra.mxu0 0
    %538 = vmatprep.mubr.bf16.mxu0 0
    %539 = vmatmul.mubr.bf16.gmra.mxu0 %v500
    %v540 = vpop.f32.mrf.mxu0
    %v541 = vadd.f32 0.0, %v540
    %v542 = vpop.f32.mrf.mxu0
    %v543 = vpop.f32.mrf.mxu0
    %v544 = vadd.f32 0.0, %v543
    %v545 = vpop.f32.mrf.mxu0
    %546 = vdwg.mxu0
    %v548 = vsel %vm246, %v369, 0
    %v551 = vsel %vm502, %v370, 0
    %553 = vmatprep.subr.bf16.mxu0 0
    %554 = vmatpush1.bf16.msra.mxu0 0
    %555 = vmatprep.subr.bf16.mxu0 0
    %556 = vmatpush1.bf16.msra.mxu0 0
    %557 = vmatprep.subr.bf16.mxu0 0
    %558 = vmatpush1.bf16.msra.mxu0 0
    %559 = vmatprep.subr.bf16.mxu0 0
    %560 = vmatpush1.bf16.msra.mxu0 0
    %561 = vmatprep.subr.bf16.mxu0 0
    %562 = vmatpush1.bf16.msra.mxu0 0
    %563 = vmatprep.subr.bf16.mxu0 0
    %564 = vmatpush1.bf16.msra.mxu0 0
    %565 = vmatprep.subr.bf16.mxu0 0
    %566 = vmatpush1.bf16.msra.mxu0 0
    %567 = vmatprep.subr.bf16.mxu0 0
    %568 = vmatpush1.bf16.msra.mxu0 %v551
    %569 = vmatprep.subr.bf16.mxu0 0
    %570 = vmatpush2.bf16.msra.mxu0 0
    %571 = vmatprep.subr.bf16.mxu0 0
    %572 = vmatpush2.bf16.msra.mxu0 0
    %573 = vmatprep.subr.bf16.mxu0 0
    %574 = vmatpush2.bf16.msra.mxu0 0
    %575 = vmatprep.subr.bf16.mxu0 0
    %576 = vmatpush2.bf16.msra.mxu0 0
    %577 = vmatprep.subr.bf16.mxu0 0
    %578 = vmatpush2.bf16.msra.mxu0 0
    %579 = vmatprep.subr.bf16.mxu0 0
    %580 = vmatpush2.bf16.msra.mxu0 0
    %581 = vmatprep.subr.bf16.mxu0 0
    %582 = vmatpush2.bf16.msra.mxu0 0
    %583 = vmatprep.subr.bf16.mxu0 0
    %584 = vmatpush2.bf16.msra.mxu0 0
    %585 = vmatprep.mubr.bf16.mxu0 0
    %586 = vmatmul.mubr.bf16.gmra.mxu0 %v548
    %v587 = vpop.f32.mrf.mxu0
    %v588 = vadd.f32 %v541, %v587
    %v589 = vpop.f32.mrf.mxu0
    %v590 = vpop.f32.mrf.mxu0
    %v591 = vadd.f32 %v544, %v590
    %v592 = vpop.f32.mrf.mxu0
    %593 = vdwg.mxu0
    %594 = vrot.lane.b32.xlu0 %v242, 112
    %v595 = vpop.permute.xlu0 %594
    %596 = vrot.lane.b32.xlu0 %v242, 80
    %v597 = vpop.permute.xlu0 %596
    %v599 = vsel %vm246, %v595, 0
    %v602 = vsel %vm246, %v597, 0
    %604 = vmatprep.subr.bf16.mxu0 0
    %605 = vmatpush1.bf16.xpose.msra.mxu0 0
    %606 = vmatprep.subr.bf16.mxu0 0
    %607 = vmatpush1.bf16.xpose.msra.mxu0 0
    %608 = vmatprep.subr.bf16.mxu0 0
    %609 = vmatpush1.bf16.xpose.msra.mxu0 0
    %610 = vmatprep.subr.bf16.mxu0 0
    %611 = vmatpush1.bf16.xpose.msra.mxu0 0
    %612 = vmatprep.subr.bf16.mxu0 0
    %613 = vmatpush1.bf16.xpose.msra.mxu0 0
    %614 = vmatprep.subr.bf16.mxu0 0
    %615 = vmatpush1.bf16.xpose.msra.mxu0 0
    %616 = vmatprep.subr.bf16.mxu0 0
    %617 = vmatpush1.bf16.xpose.msra.mxu0 0
    %618 = vmatprep.subr.bf16.mxu0 0
    %619 = vmatpush1.bf16.xpose.msra.mxu0 %v602
    %620 = vmatprep.subr.bf16.mxu0 0
    %621 = vmatpush2.bf16.xpose.msra.mxu0 0
    %622 = vmatprep.subr.bf16.mxu0 0
    %623 = vmatpush2.bf16.xpose.msra.mxu0 0
    %624 = vmatprep.subr.bf16.mxu0 0
    %625 = vmatpush2.bf16.xpose.msra.mxu0 0
    %626 = vmatprep.subr.bf16.mxu0 0
    %627 = vmatpush2.bf16.xpose.msra.mxu0 0
    %628 = vmatprep.subr.bf16.mxu0 0
    %629 = vmatpush2.bf16.xpose.msra.mxu0 0
    %630 = vmatprep.subr.bf16.mxu0 0
    %631 = vmatpush2.bf16.xpose.msra.mxu0 0
    %632 = vmatprep.subr.bf16.mxu0 0
    %633 = vmatpush2.bf16.xpose.msra.mxu0 0
    %634 = vmatprep.subr.bf16.mxu0 0
    %635 = vmatpush2.bf16.xpose.msra.mxu0 0
    %636 = vmatprep.mubr.bf16.mxu0 0
    %637 = vmatmul.mubr.bf16.gmra.mxu0 %v599
    %v638 = vpop.f32.mrf.mxu0
    %v639 = vadd.f32 0.0, %v638
    %v640 = vpop.f32.mrf.mxu0
    %v641 = vpop.f32.mrf.mxu0
    %v642 = vadd.f32 0.0, %v641
    %v643 = vpop.f32.mrf.mxu0
    %644 = vdwg.mxu0
    %v645 = vmul.f32 %v639, 0.35355338
    %v646 = vmul.f32 %v642, 0.35355338
    %v647 = vadd.f32 %v645, %v126
    %v648 = vadd.f32 %v646, %v127
    %v649 = vsel %vm298, %v647, -inf
    %650 = vmax.xlane.f32.xlu0 %v649
    %v651 = vpop.xlane.xlu0 %650
    %v652 = vsel %vm298, %v648, -inf
    %653 = vmax.xlane.f32.xlu0 %v652
    %v654 = vpop.xlane.xlu0 %653
    %v655 = vsub.f32 %v647, %v651
    %v656 = vsub.f32 %v648, %v654
    %v657 = vmul.f32 %v655, 1.442695
    %v658 = vpow.pop %v657
    %v659 = vmul.f32 %v656, 1.442695
    %v660 = vpow.pop %v659
    %v661 = vsel %vm298, %v658, 0.0
    %662 = vadd.xlane.f32.xlu0 %v661
    %v663 = vpop.xlane.xlu0 %662
    %v664 = vsel %vm298, %v660, 0.0
    %665 = vadd.xlane.f32.xlu0 %v664
    %v666 = vpop.xlane.xlu0 %665
    %v667 = vrcp.pop %v663
    %v668 = vrcp.pop %v666
    %v669 = vmul.f32 %v658, %v667
    %v670 = vmul.f32 %v660, %v668
    %v671 = vpack.c.bf16 %v670, %v669
    %672 = vrot.lane.b32.xlu0 %v242, 48
    %v673 = vpop.permute.xlu0 %672
    %v676 = vsel %vm298, %v671, 0
    %678 = vmatprep.subr.bf16.mxu0 0
    %679 = vmatpush1.bf16.msra.mxu0 0
    %680 = vmatprep.subr.bf16.mxu0 0
    %681 = vmatpush1.bf16.msra.mxu0 0
    %682 = vmatprep.subr.bf16.mxu0 0
    %683 = vmatpush1.bf16.msra.mxu0 0
    %684 = vmatprep.subr.bf16.mxu0 0
    %685 = vmatpush1.bf16.msra.mxu0 0
    %686 = vmatprep.subr.bf16.mxu0 0
    %687 = vmatpush1.bf16.msra.mxu0 0
    %688 = vmatprep.subr.bf16.mxu0 0
    %689 = vmatpush1.bf16.msra.mxu0 0
    %690 = vmatprep.subr.bf16.mxu0 0
    %691 = vmatpush1.bf16.msra.mxu0 0
    %692 = vmatprep.subr.bf16.mxu0 0
    %693 = vmatpush1.bf16.msra.mxu0 %v673
    %694 = vmatprep.subr.bf16.mxu0 0
    %695 = vmatpush2.bf16.msra.mxu0 0
    %696 = vmatprep.subr.bf16.mxu0 0
    %697 = vmatpush2.bf16.msra.mxu0 0
    %698 = vmatprep.subr.bf16.mxu0 0
    %699 = vmatpush2.bf16.msra.mxu0 0
    %700 = vmatprep.subr.bf16.mxu0 0
    %701 = vmatpush2.bf16.msra.mxu0 0
    %702 = vmatprep.subr.bf16.mxu0 0
    %703 = vmatpush2.bf16.msra.mxu0 0
    %704 = vmatprep.subr.bf16.mxu0 0
    %705 = vmatpush2.bf16.msra.mxu0 0
    %706 = vmatprep.subr.bf16.mxu0 0
    %707 = vmatpush2.bf16.msra.mxu0 0
    %708 = vmatprep.subr.bf16.mxu0 0
    %709 = vmatpush2.bf16.msra.mxu0 0
    %710 = vmatprep.mubr.bf16.mxu0 0
    %711 = vmatmul.mubr.bf16.gmra.mxu0 %v676
    %v712 = vpop.f32.mrf.mxu0
    %v713 = vadd.f32 0.0, %v712
    %v714 = vpop.f32.mrf.mxu0
    %v715 = vpop.f32.mrf.mxu0
    %v716 = vadd.f32 0.0, %v715
    %v717 = vpop.f32.mrf.mxu0
    %718 = vdwg.mxu0
    %v719 = vpack.c.bf16 %v716, %v713
    %s720 = scalar_lea.vmem %s7, 8
    %v721 = vld [vmem:[%s720] sm:$0xf]
    %v723 = vsel %vm246, %v719, 0
    %v726 = vsel %vm502, %v721, 0
    %728 = vmatprep.subr.bf16.mxu0 0
    %729 = vmatpush1.bf16.msra.mxu0 0
    %730 = vmatprep.subr.bf16.mxu0 0
    %731 = vmatpush1.bf16.msra.mxu0 0
    %732 = vmatprep.subr.bf16.mxu0 0
    %733 = vmatpush1.bf16.msra.mxu0 0
    %734 = vmatprep.subr.bf16.mxu0 0
    %735 = vmatpush1.bf16.msra.mxu0 0
    %736 = vmatprep.subr.bf16.mxu0 0
    %737 = vmatpush1.bf16.msra.mxu0 0
    %738 = vmatprep.subr.bf16.mxu0 0
    %739 = vmatpush1.bf16.msra.mxu0 0
    %740 = vmatprep.subr.bf16.mxu0 0
    %741 = vmatpush1.bf16.msra.mxu0 0
    %742 = vmatprep.subr.bf16.mxu0 0
    %743 = vmatpush1.bf16.msra.mxu0 %v726
    %744 = vmatprep.subr.bf16.mxu0 0
    %745 = vmatpush2.bf16.msra.mxu0 0
    %746 = vmatprep.subr.bf16.mxu0 0
    %747 = vmatpush2.bf16.msra.mxu0 0
    %748 = vmatprep.subr.bf16.mxu0 0
    %749 = vmatpush2.bf16.msra.mxu0 0
    %750 = vmatprep.subr.bf16.mxu0 0
    %751 = vmatpush2.bf16.msra.mxu0 0
    %752 = vmatprep.subr.bf16.mxu0 0
    %753 = vmatpush2.bf16.msra.mxu0 0
    %754 = vmatprep.subr.bf16.mxu0 0
    %755 = vmatpush2.bf16.msra.mxu0 0
    %756 = vmatprep.subr.bf16.mxu0 0
    %757 = vmatpush2.bf16.msra.mxu0 0
    %758 = vmatprep.subr.bf16.mxu0 0
    %759 = vmatpush2.bf16.msra.mxu0 0
    %760 = vmatprep.mubr.bf16.mxu0 0
    %761 = vmatmul.mubr.bf16.gmra.mxu0 %v723
    %v762 = vpop.f32.mrf.mxu0
    %v763 = vadd.f32 0.0, %v762
    %v764 = vpop.f32.mrf.mxu0
    %v765 = vpop.f32.mrf.mxu0
    %v766 = vadd.f32 0.0, %v765
    %v767 = vpop.f32.mrf.mxu0
    %768 = vdwg.mxu0
    %v769 = vadd.f32 %v588, %v763
    %v770 = vadd.f32 %v591, %v766
    %771 = vrot.lane.b32.xlu0 %v242, 104
    %v772 = vpop.permute.xlu0 %771
    %773 = vrot.lane.b32.xlu0 %v242, 72
    %v774 = vpop.permute.xlu0 %773
    %v776 = vsel %vm246, %v772, 0
    %v779 = vsel %vm246, %v774, 0
    %781 = vmatprep.subr.bf16.mxu0 0
    %782 = vmatpush1.bf16.xpose.msra.mxu0 0
    %783 = vmatprep.subr.bf16.mxu0 0
    %784 = vmatpush1.bf16.xpose.msra.mxu0 0
    %785 = vmatprep.subr.bf16.mxu0 0
    %786 = vmatpush1.bf16.xpose.msra.mxu0 0
    %787 = vmatprep.subr.bf16.mxu0 0
    %788 = vmatpush1.bf16.xpose.msra.mxu0 0
    %789 = vmatprep.subr.bf16.mxu0 0
    %790 = vmatpush1.bf16.xpose.msra.mxu0 0
    %791 = vmatprep.subr.bf16.mxu0 0
    %792 = vmatpush1.bf16.xpose.msra.mxu0 0
    %793 = vmatprep.subr.bf16.mxu0 0
    %794 = vmatpush1.bf16.xpose.msra.mxu0 0
    %795 = vmatprep.subr.bf16.mxu0 0
    %796 = vmatpush1.bf16.xpose.msra.mxu0 %v779
    %797 = vmatprep.subr.bf16.mxu0 0
    %798 = vmatpush2.bf16.xpose.msra.mxu0 0
    %799 = vmatprep.subr.bf16.mxu0 0
    %800 = vmatpush2.bf16.xpose.msra.mxu0 0
    %801 = vmatprep.subr.bf16.mxu0 0
    %802 = vmatpush2.bf16.xpose.msra.mxu0 0
    %803 = vmatprep.subr.bf16.mxu0 0
    %804 = vmatpush2.bf16.xpose.msra.mxu0 0
    %805 = vmatprep.subr.bf16.mxu0 0
    %806 = vmatpush2.bf16.xpose.msra.mxu0 0
    %807 = vmatprep.subr.bf16.mxu0 0
    %808 = vmatpush2.bf16.xpose.msra.mxu0 0
    %809 = vmatprep.subr.bf16.mxu0 0
    %810 = vmatpush2.bf16.xpose.msra.mxu0 0
    %811 = vmatprep.subr.bf16.mxu0 0
    %812 = vmatpush2.bf16.xpose.msra.mxu0 0
    %813 = vmatprep.mubr.bf16.mxu0 0
    %814 = vmatmul.mubr.bf16.gmra.mxu0 %v776
    %v815 = vpop.f32.mrf.mxu0
    %v816 = vadd.f32 0.0, %v815
    %v817 = vpop.f32.mrf.mxu0
    %v818 = vpop.f32.mrf.mxu0
    %v819 = vadd.f32 0.0, %v818
    %v820 = vpop.f32.mrf.mxu0
    %821 = vdwg.mxu0
    %v822 = vmul.f32 %v816, 0.35355338
    %v823 = vmul.f32 %v819, 0.35355338
    %v824 = vadd.f32 %v822, %v126
    %v825 = vadd.f32 %v823, %v127
    %v826 = vsel %vm298, %v824, -inf
    %827 = vmax.xlane.f32.xlu0 %v826
    %v828 = vpop.xlane.xlu0 %827
    %v829 = vsel %vm298, %v825, -inf
    %830 = vmax.xlane.f32.xlu0 %v829
    %v831 = vpop.xlane.xlu0 %830
    %v832 = vsub.f32 %v824, %v828
    %v833 = vsub.f32 %v825, %v831
    %v834 = vmul.f32 %v832, 1.442695
    %v835 = vpow.pop %v834
    %v836 = vmul.f32 %v833, 1.442695
    %v837 = vpow.pop %v836
    %v838 = vsel %vm298, %v835, 0.0
    %839 = vadd.xlane.f32.xlu0 %v838
    %v840 = vpop.xlane.xlu0 %839
    %v841 = vsel %vm298, %v837, 0.0
    %842 = vadd.xlane.f32.xlu0 %v841
    %v843 = vpop.xlane.xlu0 %842
    %v844 = vrcp.pop %v840
    %v845 = vrcp.pop %v843
    %v846 = vmul.f32 %v835, %v844
    %v847 = vmul.f32 %v837, %v845
    %v848 = vpack.c.bf16 %v847, %v846
    %849 = vrot.lane.b32.xlu0 %v242, 40
    %v850 = vpop.permute.xlu0 %849
    %v853 = vsel %vm298, %v848, 0
    %855 = vmatprep.subr.bf16.mxu0 0
    %856 = vmatpush1.bf16.msra.mxu0 0
    %857 = vmatprep.subr.bf16.mxu0 0
    %858 = vmatpush1.bf16.msra.mxu0 0
    %859 = vmatprep.subr.bf16.mxu0 0
    %860 = vmatpush1.bf16.msra.mxu0 0
    %861 = vmatprep.subr.bf16.mxu0 0
    %862 = vmatpush1.bf16.msra.mxu0 0
    %863 = vmatprep.subr.bf16.mxu0 0
    %864 = vmatpush1.bf16.msra.mxu0 0
    %865 = vmatprep.subr.bf16.mxu0 0
    %866 = vmatpush1.bf16.msra.mxu0 0
    %867 = vmatprep.subr.bf16.mxu0 0
    %868 = vmatpush1.bf16.msra.mxu0 0
    %869 = vmatprep.subr.bf16.mxu0 0
    %870 = vmatpush1.bf16.msra.mxu0 %v850
    %871 = vmatprep.subr.bf16.mxu0 0
    %872 = vmatpush2.bf16.msra.mxu0 0
    %873 = vmatprep.subr.bf16.mxu0 0
    %874 = vmatpush2.bf16.msra.mxu0 0
    %875 = vmatprep.subr.bf16.mxu0 0
    %876 = vmatpush2.bf16.msra.mxu0 0
    %877 = vmatprep.subr.bf16.mxu0 0
    %878 = vmatpush2.bf16.msra.mxu0 0
    %879 = vmatprep.subr.bf16.mxu0 0
    %880 = vmatpush2.bf16.msra.mxu0 0
    %881 = vmatprep.subr.bf16.mxu0 0
    %882 = vmatpush2.bf16.msra.mxu0 0
    %883 = vmatprep.subr.bf16.mxu0 0
    %884 = vmatpush2.bf16.msra.mxu0 0
    %885 = vmatprep.subr.bf16.mxu0 0
    %886 = vmatpush2.bf16.msra.mxu0 0
    %887 = vmatprep.mubr.bf16.mxu0 0
    %888 = vmatmul.mubr.bf16.gmra.mxu0 %v853
    %v889 = vpop.f32.mrf.mxu0
    %v890 = vadd.f32 0.0, %v889
    %v891 = vpop.f32.mrf.mxu0
    %v892 = vpop.f32.mrf.mxu0
    %v893 = vadd.f32 0.0, %v892
    %v894 = vpop.f32.mrf.mxu0
    %895 = vdwg.mxu0
    %v896 = vpack.c.bf16 %v893, %v890
    %s897 = scalar_lea.vmem %s7, 12
    %v898 = vld [vmem:[%s897] sm:$0xf]
    %v900 = vsel %vm246, %v896, 0
    %v903 = vsel %vm502, %v898, 0
    %905 = vmatprep.subr.bf16.mxu0 0
    %906 = vmatpush1.bf16.msra.mxu0 0
    %907 = vmatprep.subr.bf16.mxu0 0
    %908 = vmatpush1.bf16.msra.mxu0 0
    %909 = vmatprep.subr.bf16.mxu0 0
    %910 = vmatpush1.bf16.msra.mxu0 0
    %911 = vmatprep.subr.bf16.mxu0 0
    %912 = vmatpush1.bf16.msra.mxu0 0
    %913 = vmatprep.subr.bf16.mxu0 0
    %914 = vmatpush1.bf16.msra.mxu0 0
    %915 = vmatprep.subr.bf16.mxu0 0
    %916 = vmatpush1.bf16.msra.mxu0 0
    %917 = vmatprep.subr.bf16.mxu0 0
    %918 = vmatpush1.bf16.msra.mxu0 0
    %919 = vmatprep.subr.bf16.mxu0 0
    %920 = vmatpush1.bf16.msra.mxu0 %v903
    %921 = vmatprep.subr.bf16.mxu0 0
    %922 = vmatpush2.bf16.msra.mxu0 0
    %923 = vmatprep.subr.bf16.mxu0 0
    %924 = vmatpush2.bf16.msra.mxu0 0
    %925 = vmatprep.subr.bf16.mxu0 0
    %926 = vmatpush2.bf16.msra.mxu0 0
    %927 = vmatprep.subr.bf16.mxu0 0
    %928 = vmatpush2.bf16.msra.mxu0 0
    %929 = vmatprep.subr.bf16.mxu0 0
    %930 = vmatpush2.bf16.msra.mxu0 0
    %931 = vmatprep.subr.bf16.mxu0 0
    %932 = vmatpush2.bf16.msra.mxu0 0
    %933 = vmatprep.subr.bf16.mxu0 0
    %934 = vmatpush2.bf16.msra.mxu0 0
    %935 = vmatprep.subr.bf16.mxu0 0
    %936 = vmatpush2.bf16.msra.mxu0 0
    %937 = vmatprep.mubr.bf16.mxu0 0
    %938 = vmatmul.mubr.bf16.gmra.mxu0 %v900
    %v939 = vpop.f32.mrf.mxu0
    %v940 = vadd.f32 0.0, %v939
    %v941 = vpop.f32.mrf.mxu0
    %v942 = vpop.f32.mrf.mxu0
    %v943 = vadd.f32 0.0, %v942
    %v944 = vpop.f32.mrf.mxu0
    %945 = vdwg.mxu0
    %v946 = vadd.f32 %v769, %v940
    %v947 = vadd.f32 %v770, %v943
    %v948 = vld [vmem:[%s8] sm:$0x1]
    %v950 = vlaneseq
    %v951 = vshrl.u32 %v950, 7
    %v952 = vsub.s32 0, %v951
    %v953 = vrot.slane %v948, %v952
    %v955 = vadd.f32 %v946, %v953
    %v956 = vadd.f32 %v947, %v953
    %v957 = vadd.f32 %v172, %v955
    %v958 = vadd.f32 %v173, %v956
    %v959 = vld [vmem:[%s9] sm:$0x1]
    %v960 = vld [vmem:[%s10] sm:$0x1]
    %v961 = vsel %vm130, %v957, 0.0
    %962 = vadd.xlane.f32.xlu0 %v961
    %v963 = vpop.xlane.xlu0 %962
    %v964 = vsel %vm130, %v958, 0.0
    %965 = vadd.xlane.f32.xlu0 %v964
    %v966 = vpop.xlane.xlu0 %965
    %v967 = vmul.f32 %v963, %v137
    %v968 = vmul.f32 %v966, %v137
    %v969 = vsub.f32 %v957, %v967
    %v970 = vsub.f32 %v958, %v968
    %v971 = vmul.f32 %v969, %v969
    %v972 = vmul.f32 %v970, %v970
    %v973 = vsel %vm130, %v971, 0.0
    %974 = vadd.xlane.f32.xlu0 %v973
    %v975 = vpop.xlane.xlu0 %974
    %v976 = vsel %vm130, %v972, 0.0
    %977 = vadd.xlane.f32.xlu0 %v976
    %v978 = vpop.xlane.xlu0 %977
    %v979 = vmul.f32 %v975, %v137
    %v980 = vmul.f32 %v978, %v137
    %v981 = vadd.f32 %v979, 1e-05
    %v982 = vadd.f32 %v980, 1e-05
    %v983 = vrsqrt.pop %v981
    %v984 = vrsqrt.pop %v982
    %v985 = vmul.f32 %v969, %v983
    %v986 = vmul.f32 %v970, %v984
    %v988 = vlaneseq
    %v989 = vshrl.u32 %v988, 7
    %v990 = vsub.s32 0, %v989
    %v991 = vrot.slane %v959, %v990
    %v993 = vmul.f32 %v985, %v991
    %v994 = vmul.f32 %v986, %v991
    %v996 = vlaneseq
    %v997 = vshrl.u32 %v996, 7
    %v998 = vsub.s32 0, %v997
    %v999 = vrot.slane %v960, %v998
    %v1001 = vadd.f32 %v993, %v999
    %v1002 = vadd.f32 %v994, %v999
    %v1003 = vpack.c.bf16 %v1002, %v1001
    %v1004 = vld [vmem:[%s11] sm:$0xf]
    %v1005 = vld [vmem:[%s11 + $0x4] sm:$0xf]
    %v1006 = vld [vmem:[%s11 + $0x8] sm:$0xf]
    %v1007 = vld [vmem:[%s11 + $0xc] sm:$0xf]
    %v1008 = vld [vmem:[#allocation10] sm:$0x1]
    %v1010 = vlaneseq
    %v1011 = vshrl.u32 %v1010, 7
    %v1012 = vsub.s32 0, %v1011
    %v1013 = vrot.slane %v1008, %v1012
    %v1019 = vunpack.c.l.b16 %v1004
    %v1020 = vunpack.c.l.b16 %v1005
    %v1021 = vunpack.c.l.b16 %v1006
    %v1022 = vunpack.c.l.b16 %v1007
    %v1023 = vpack.c.b16 %v1020, %v1019
    %v1024 = vpack.c.b16 %v1022, %v1021
    %v1028 = vsel %vm130, %v1003, 0
    %1030 = vmatprep.subr.bf16.mxu0 0
    %1031 = vmatpush1.bf16.msra.mxu0 0
    %1032 = vmatprep.subr.bf16.mxu0 0
    %1033 = vmatpush1.bf16.msra.mxu0 0
    %1034 = vmatprep.subr.bf16.mxu0 0
    %1035 = vmatpush1.bf16.msra.mxu0 0
    %1036 = vmatprep.subr.bf16.mxu0 0
    %1037 = vmatpush1.bf16.msra.mxu0 0
    %1038 = vmatprep.subr.bf16.mxu0 0
    %1039 = vmatpush1.bf16.msra.mxu0 0
    %1040 = vmatprep.subr.bf16.mxu0 0
    %1041 = vmatpush1.bf16.msra.mxu0 0
    %1042 = vmatprep.subr.bf16.mxu0 0
    %1043 = vmatpush1.bf16.msra.mxu0 %v1024
    %1044 = vmatprep.subr.bf16.mxu0 0
    %1045 = vmatpush1.bf16.msra.mxu0 %v1023
    %1046 = vmatprep.subr.bf16.mxu0 0
    %1047 = vmatpush2.bf16.msra.mxu0 0
    %1048 = vmatprep.subr.bf16.mxu0 0
    %1049 = vmatpush2.bf16.msra.mxu0 0
    %1050 = vmatprep.subr.bf16.mxu0 0
    %1051 = vmatpush2.bf16.msra.mxu0 0
    %1052 = vmatprep.subr.bf16.mxu0 0
    %1053 = vmatpush2.bf16.msra.mxu0 0
    %1054 = vmatprep.subr.bf16.mxu0 0
    %1055 = vmatpush2.bf16.msra.mxu0 0
    %1056 = vmatprep.subr.bf16.mxu0 0
    %1057 = vmatpush2.bf16.msra.mxu0 0
    %1058 = vmatprep.subr.bf16.mxu0 0
    %1059 = vmatpush2.bf16.msra.mxu0 0
    %1060 = vmatprep.subr.bf16.mxu0 0
    %1061 = vmatpush2.bf16.msra.mxu0 0
    %1062 = vmatprep.mubr.bf16.mxu0 0
    %1063 = vmatmul.mubr.bf16.gmra.mxu0 %v1028
    %v1064 = vpop.f32.mrf.mxu0
    %v1065 = vadd.f32 %v1013, %v1064
    %v1066 = vpop.f32.mrf.mxu0
    %v1067 = vpop.f32.mrf.mxu0
    %v1068 = vadd.f32 %v1013, %v1067
    %v1069 = vpop.f32.mrf.mxu0
    %1070 = vdwg.mxu0
    %v1071 = vmul.f32 %v1065, %v1065
    %v1072 = vmul.f32 %v1068, %v1068
    %v1073 = vmul.f32 %v1065, %v1071
    %v1074 = vmul.f32 %v1068, %v1072
    %v1075 = vmul.f32 %v1073, 0.044715
    %v1076 = vmul.f32 %v1074, 0.044715
    %v1077 = vadd.f32 %v1065, %v1075
    %v1078 = vadd.f32 %v1068, %v1076
    %v1079 = vmul.f32 %v1077, 0.7978846
    %v1080 = vmul.f32 %v1078, 0.7978846
    %v1081 = vtanh.pop %v1079
    %v1082 = vtanh.pop %v1080
    %v1083 = vadd.f32 %v1081, 1.0
    %v1084 = vadd.f32 %v1082, 1.0
    %v1085 = vmul.f32 %v1083, 0.5
    %v1086 = vmul.f32 %v1084, 0.5
    %v1087 = vmul.f32 %v1065, %v1085
    %v1088 = vmul.f32 %v1068, %v1086
    %v1089 = vpack.c.bf16 %v1088, %v1087
    %v1090 = vld [vmem:[%s13] sm:$0xf]
    %v1091 = vld [vmem:[%s13 + $0x4] sm:$0xf]
    %v1092 = vld [vmem:[%s13 + $0x8] sm:$0xf]
    %v1093 = vld [vmem:[%s13 + $0xc] sm:$0xf]
    %v1094 = vld [vmem:[%s13 + $0x10] sm:$0xf]
    %v1095 = vld [vmem:[%s13 + $0x14] sm:$0xf]
    %v1096 = vld [vmem:[%s13 + $0x18] sm:$0xf]
    %v1097 = vld [vmem:[%s13 + $0x1c] sm:$0xf]
    %v1098 = vld [vmem:[%s14] sm:$0x1]
    %v1100 = vlaneseq
    %v1101 = vshrl.u32 %v1100, 7
    %v1102 = vsub.s32 0, %v1101
    %v1103 = vrot.slane %v1098, %v1102
    %v1113 = vunpack.c.l.b16 %v1090
    %v1114 = vunpack.c.l.b16 %v1091
    %v1115 = vunpack.c.l.b16 %v1092
    %v1116 = vunpack.c.l.b16 %v1093
    %v1117 = vunpack.c.l.b16 %v1094
    %v1118 = vunpack.c.l.b16 %v1095
    %v1119 = vunpack.c.l.b16 %v1096
    %v1120 = vunpack.c.l.b16 %v1097
    %v1121 = vpack.c.b16 %v1114, %v1113
    %v1122 = vpack.c.b16 %v1116, %v1115
    %v1123 = vpack.c.b16 %v1118, %v1117
    %v1124 = vpack.c.b16 %v1120, %v1119
    %vm1129 = vcmask 523264
    %v1131 = vsel %vm1129, %v1089, 0
    %1133 = vmatprep.subr.bf16.mxu0 0
    %1134 = vmatpush1.bf16.msra.mxu0 0
    %1135 = vmatprep.subr.bf16.mxu0 0
    %1136 = vmatpush1.bf16.msra.mxu0 0
    %1137 = vmatprep.subr.bf16.mxu0 0
    %1138 = vmatpush1.bf16.msra.mxu0 0
    %1139 = vmatprep.subr.bf16.mxu0 0
    %1140 = vmatpush1.bf16.msra.mxu0 0
    %1141 = vmatprep.subr.bf16.mxu0 0
    %1142 = vmatpush1.bf16.msra.mxu0 %v1124
    %1143 = vmatprep.subr.bf16.mxu0 0
    %1144 = vmatpush1.bf16.msra.mxu0 %v1123
    %1145 = vmatprep.subr.bf16.mxu0 0
    %1146 = vmatpush1.bf16.msra.mxu0 %v1122
    %1147 = vmatprep.subr.bf16.mxu0 0
    %1148 = vmatpush1.bf16.msra.mxu0 %v1121
    %1149 = vmatprep.subr.bf16.mxu0 0
    %1150 = vmatpush2.bf16.msra.mxu0 0
    %1151 = vmatprep.subr.bf16.mxu0 0
    %1152 = vmatpush2.bf16.msra.mxu0 0
    %1153 = vmatprep.subr.bf16.mxu0 0
    %1154 = vmatpush2.bf16.msra.mxu0 0
    %1155 = vmatprep.subr.bf16.mxu0 0
    %1156 = vmatpush2.bf16.msra.mxu0 0
    %1157 = vmatprep.subr.bf16.mxu0 0
    %1158 = vmatpush2.bf16.msra.mxu0 0
    %1159 = vmatprep.subr.bf16.mxu0 0
    %1160 = vmatpush2.bf16.msra.mxu0 0
    %1161 = vmatprep.subr.bf16.mxu0 0
    %1162 = vmatpush2.bf16.msra.mxu0 0
    %1163 = vmatprep.subr.bf16.mxu0 0
    %1164 = vmatpush2.bf16.msra.mxu0 0
    %1165 = vmatprep.mubr.bf16.mxu0 0
    %1166 = vmatmul.mubr.bf16.gmra.mxu0 %v1131
    %v1167 = vpop.f32.mrf.mxu0
    %v1168 = vadd.f32 %v1103, %v1167
    %v1169 = vpop.f32.mrf.mxu0
    %v1170 = vpop.f32.mrf.mxu0
    %v1171 = vadd.f32 %v1103, %v1170
    %v1172 = vpop.f32.mrf.mxu0
    %1173 = vdwg.mxu0
    %v1174 = vadd.f32 %v1001, %v1168
    %v1175 = vadd.f32 %v1002, %v1171
    %v1176 = vld [vmem:[%s15] sm:$0x1]
    %v1177 = vld [vmem:[%s16] sm:$0x1]
    %v1178 = vsel %vm130, %v1174, 0.0
    %1179 = vadd.xlane.f32.xlu0 %v1178
    %v1180 = vpop.xlane.xlu0 %1179
    %v1181 = vsel %vm130, %v1175, 0.0
    %1182 = vadd.xlane.f32.xlu0 %v1181
    %v1183 = vpop.xlane.xlu0 %1182
    %v1184 = vmul.f32 %v1180, %v137
    %v1185 = vmul.f32 %v1183, %v137
    %v1186 = vsub.f32 %v1174, %v1184
    %v1187 = vsub.f32 %v1175, %v1185
    %v1188 = vmul.f32 %v1186, %v1186
    %v1189 = vmul.f32 %v1187, %v1187
    %v1190 = vsel %vm130, %v1188, 0.0
    %1191 = vadd.xlane.f32.xlu0 %v1190
    %v1192 = vpop.xlane.xlu0 %1191
    %v1193 = vsel %vm130, %v1189, 0.0
    %1194 = vadd.xlane.f32.xlu0 %v1193
    %v1195 = vpop.xlane.xlu0 %1194
    %v1196 = vmul.f32 %v1192, %v137
    %v1197 = vmul.f32 %v1195, %v137
    %v1198 = vadd.f32 %v1196, 1e-05
    %v1199 = vadd.f32 %v1197, 1e-05
    %v1200 = vrsqrt.pop %v1198
    %v1201 = vrsqrt.pop %v1199
    %v1202 = vmul.f32 %v1186, %v1200
    %v1203 = vmul.f32 %v1187, %v1201
    %v1205 = vlaneseq
    %v1206 = vshrl.u32 %v1205, 7
    %v1207 = vsub.s32 0, %v1206
    %v1208 = vrot.slane %v1176, %v1207
    %v1210 = vmul.f32 %v1202, %v1208
    %v1211 = vmul.f32 %v1203, %v1208
    %v1213 = vlaneseq
    %v1214 = vshrl.u32 %v1213, 7
    %v1215 = vsub.s32 0, %v1214
    %v1216 = vrot.slane %v1177, %v1215
    %v1218 = vadd.f32 %v1210, %v1216
    %v1219 = vadd.f32 %v1211, %v1216
    %v1220 = vpack.c.bf16 %v1219, %v1218
    %s1221 = scalar_lea.vmem %s5, 16
    %v1222 = vld [vmem:[%s1221] sm:$0xf]
    %v1223 = vld [vmem:[%s1221 + $0x4] sm:$0xf]
    %v1224 = vld [vmem:[%s1221 + $0x8] sm:$0xf]
    %v1225 = vld [vmem:[%s1221 + $0xc] sm:$0xf]
    %s1226 = scalar_lea.vmem %s6, 1
    %v1227 = vld [vmem:[%s1226] sm:$0x1]
    %v1229 = vlaneseq
    %v1230 = vshrl.u32 %v1229, 7
    %v1231 = vsub.s32 0, %v1230
    %v1232 = vrot.slane %v1227, %v1231
    %v1238 = vunpack.c.l.b16 %v1222
    %v1239 = vunpack.c.l.b16 %v1223
    %v1240 = vunpack.c.l.b16 %v1224
    %v1241 = vunpack.c.l.b16 %v1225
    %v1242 = vpack.c.b16 %v1239, %v1238
    %v1243 = vpack.c.b16 %v1241, %v1240
    %v1247 = vsel %vm130, %v1220, 0
    %1249 = vmatprep.subr.bf16.mxu0 0
    %1250 = vmatpush1.bf16.msra.mxu0 0
    %1251 = vmatprep.subr.bf16.mxu0 0
    %1252 = vmatpush1.bf16.msra.mxu0 0
    %1253 = vmatprep.subr.bf16.mxu0 0
    %1254 = vmatpush1.bf16.msra.mxu0 0
    %1255 = vmatprep.subr.bf16.mxu0 0
    %1256 = vmatpush1.bf16.msra.mxu0 0
    %1257 = vmatprep.subr.bf16.mxu0 0
    %1258 = vmatpush1.bf16.msra.mxu0 0
    %1259 = vmatprep.subr.bf16.mxu0 0
    %1260 = vmatpush1.bf16.msra.mxu0 0
    %1261 = vmatprep.subr.bf16.mxu0 0
    %1262 = vmatpush1.bf16.msra.mxu0 %v1243
    %1263 = vmatprep.subr.bf16.mxu0 0
    %1264 = vmatpush1.bf16.msra.mxu0 %v1242
    %1265 = vmatprep.subr.bf16.mxu0 0
    %1266 = vmatpush2.bf16.msra.mxu0 0
    %1267 = vmatprep.subr.bf16.mxu0 0
    %1268 = vmatpush2.bf16.msra.mxu0 0
    %1269 = vmatprep.subr.bf16.mxu0 0
    %1270 = vmatpush2.bf16.msra.mxu0 0
    %1271 = vmatprep.subr.bf16.mxu0 0
    %1272 = vmatpush2.bf16.msra.mxu0 0
    %1273 = vmatprep.subr.bf16.mxu0 0
    %1274 = vmatpush2.bf16.msra.mxu0 0
    %1275 = vmatprep.subr.bf16.mxu0 0
    %1276 = vmatpush2.bf16.msra.mxu0 0
    %1277 = vmatprep.subr.bf16.mxu0 0
    %1278 = vmatpush2.bf16.msra.mxu0 0
    %1279 = vmatprep.subr.bf16.mxu0 0
    %1280 = vmatpush2.bf16.msra.mxu0 0
    %1281 = vmatprep.mubr.bf16.mxu0 0
    %1282 = vmatmul.mubr.bf16.gmra.mxu0 %v1247
    %v1283 = vpop.f32.mrf.mxu0
    %v1284 = vadd.f32 %v1232, %v1283
    %v1285 = vpop.f32.mrf.mxu0
    %v1286 = vpop.f32.mrf.mxu0
    %v1287 = vadd.f32 %v1232, %v1286
    %v1288 = vpop.f32.mrf.mxu0
    %1289 = vdwg.mxu0
    %v1290 = vpack.c.bf16 %v1287, %v1284
    %1292 = vrot.lane.b32.xlu0 %v1290, 96
    %v1293 = vpop.permute.xlu0 %1292
    %v1295 = vsel %vm246, %v1290, 0
    %v1298 = vsel %vm246, %v1293, 0
    %1300 = vmatprep.subr.bf16.mxu0 0
    %1301 = vmatpush1.bf16.xpose.msra.mxu0 0
    %1302 = vmatprep.subr.bf16.mxu0 0
    %1303 = vmatpush1.bf16.xpose.msra.mxu0 0
    %1304 = vmatprep.subr.bf16.mxu0 0
    %1305 = vmatpush1.bf16.xpose.msra.mxu0 0
    %1306 = vmatprep.subr.bf16.mxu0 0
    %1307 = vmatpush1.bf16.xpose.msra.mxu0 0
    %1308 = vmatprep.subr.bf16.mxu0 0
    %1309 = vmatpush1.bf16.xpose.msra.mxu0 0
    %1310 = vmatprep.subr.bf16.mxu0 0
    %1311 = vmatpush1.bf16.xpose.msra.mxu0 0
    %1312 = vmatprep.subr.bf16.mxu0 0
    %1313 = vmatpush1.bf16.xpose.msra.mxu0 0
    %1314 = vmatprep.subr.bf16.mxu0 0
    %1315 = vmatpush1.bf16.xpose.msra.mxu0 %v1298
    %1316 = vmatprep.subr.bf16.mxu0 0
    %1317 = vmatpush2.bf16.xpose.msra.mxu0 0
    %1318 = vmatprep.subr.bf16.mxu0 0
    %1319 = vmatpush2.bf16.xpose.msra.mxu0 0
    %1320 = vmatprep.subr.bf16.mxu0 0
    %1321 = vmatpush2.bf16.xpose.msra.mxu0 0
    %1322 = vmatprep.subr.bf16.mxu0 0
    %1323 = vmatpush2.bf16.xpose.msra.mxu0 0
    %1324 = vmatprep.subr.bf16.mxu0 0
    %1325 = vmatpush2.bf16.xpose.msra.mxu0 0
    %1326 = vmatprep.subr.bf16.mxu0 0
    %1327 = vmatpush2.bf16.xpose.msra.mxu0 0
    %1328 = vmatprep.subr.bf16.mxu0 0
    %1329 = vmatpush2.bf16.xpose.msra.mxu0 0
    %1330 = vmatprep.subr.bf16.mxu0 0
    %1331 = vmatpush2.bf16.xpose.msra.mxu0 0
    %1332 = vmatprep.mubr.bf16.mxu0 0
    %1333 = vmatmul.mubr.bf16.gmra.mxu0 %v1295
    %v1334 = vpop.f32.mrf.mxu0
    %v1335 = vadd.f32 0.0, %v1334
    %v1336 = vpop.f32.mrf.mxu0
    %v1337 = vpop.f32.mrf.mxu0
    %v1338 = vadd.f32 0.0, %v1337
    %v1339 = vpop.f32.mrf.mxu0
    %1340 = vdwg.mxu0
    %v1341 = vmul.f32 %v1335, 0.35355338
    %v1342 = vmul.f32 %v1338, 0.35355338
    %v1343 = vadd.f32 %v1341, %v126
    %v1344 = vadd.f32 %v1342, %v127
    %v1345 = vsel %vm298, %v1343, -inf
    %1346 = vmax.xlane.f32.xlu0 %v1345
    %v1347 = vpop.xlane.xlu0 %1346
    %v1348 = vsel %vm298, %v1344, -inf
    %1349 = vmax.xlane.f32.xlu0 %v1348
    %v1350 = vpop.xlane.xlu0 %1349
    %v1351 = vsub.f32 %v1343, %v1347
    %v1352 = vsub.f32 %v1344, %v1350
    %v1353 = vmul.f32 %v1351, 1.442695
    %v1354 = vpow.pop %v1353
    %v1355 = vmul.f32 %v1352, 1.442695
    %v1356 = vpow.pop %v1355
    %v1357 = vsel %vm298, %v1354, 0.0
    %1358 = vadd.xlane.f32.xlu0 %v1357
    %v1359 = vpop.xlane.xlu0 %1358
    %v1360 = vsel %vm298, %v1356, 0.0
    %1361 = vadd.xlane.f32.xlu0 %v1360
    %v1362 = vpop.xlane.xlu0 %1361
    %v1363 = vrcp.pop %v1359
    %v1364 = vrcp.pop %v1362
    %v1365 = vmul.f32 %v1354, %v1363
    %v1366 = vmul.f32 %v1356, %v1364
    %v1367 = vpack.c.bf16 %v1366, %v1365
    %1368 = vrot.lane.b32.xlu0 %v1290, 64
    %v1369 = vpop.permute.xlu0 %1368
    %v1372 = vsel %vm298, %v1367, 0
    %1374 = vmatprep.subr.bf16.mxu0 0
    %1375 = vmatpush1.bf16.msra.mxu0 0
    %1376 = vmatprep.subr.bf16.mxu0 0
    %1377 = vmatpush1.bf16.msra.mxu0 0
    %1378 = vmatprep.subr.bf16.mxu0 0
    %1379 = vmatpush1.bf16.msra.mxu0 0
    %1380 = vmatprep.subr.bf16.mxu0 0
    %1381 = vmatpush1.bf16.msra.mxu0 0
    %1382 = vmatprep.subr.bf16.mxu0 0
    %1383 = vmatpush1.bf16.msra.mxu0 0
    %1384 = vmatprep.subr.bf16.mxu0 0
    %1385 = vmatpush1.bf16.msra.mxu0 0
    %1386 = vmatprep.subr.bf16.mxu0 0
    %1387 = vmatpush1.bf16.msra.mxu0 0
    %1388 = vmatprep.subr.bf16.mxu0 0
    %1389 = vmatpush1.bf16.msra.mxu0 %v1369
    %1390 = vmatprep.subr.bf16.mxu0 0
    %1391 = vmatpush2.bf16.msra.mxu0 0
    %1392 = vmatprep.subr.bf16.mxu0 0
    %1393 = vmatpush2.bf16.msra.mxu0 0
    %1394 = vmatprep.subr.bf16.mxu0 0
    %1395 = vmatpush2.bf16.msra.mxu0 0
    %1396 = vmatprep.subr.bf16.mxu0 0
    %1397 = vmatpush2.bf16.msra.mxu0 0
    %1398 = vmatprep.subr.bf16.mxu0 0
    %1399 = vmatpush2.bf16.msra.mxu0 0
    %1400 = vmatprep.subr.bf16.mxu0 0
    %1401 = vmatpush2.bf16.msra.mxu0 0
    %1402 = vmatprep.subr.bf16.mxu0 0
    %1403 = vmatpush2.bf16.msra.mxu0 0
    %1404 = vmatprep.subr.bf16.mxu0 0
    %1405 = vmatpush2.bf16.msra.mxu0 0
    %1406 = vmatprep.mubr.bf16.mxu0 0
    %1407 = vmatmul.mubr.bf16.gmra.mxu0 %v1372
    %v1408 = vpop.f32.mrf.mxu0
    %v1409 = vadd.f32 0.0, %v1408
    %v1410 = vpop.f32.mrf.mxu0
    %v1411 = vpop.f32.mrf.mxu0
    %v1412 = vadd.f32 0.0, %v1411
    %v1413 = vpop.f32.mrf.mxu0
    %1414 = vdwg.mxu0
    %v1415 = vpack.c.bf16 %v1412, %v1409
    %s1416 = scalar_lea.vmem %s7, 16
    %v1417 = vld [vmem:[%s1416] sm:$0xf]
    %1418 = vrot.lane.b32.xlu0 %v1290, 120
    %v1419 = vpop.permute.xlu0 %1418
    %1420 = vrot.lane.b32.xlu0 %v1290, 88
    %v1421 = vpop.permute.xlu0 %1420
    %v1423 = vsel %vm246, %v1419, 0
    %v1426 = vsel %vm246, %v1421, 0
    %1428 = vmatprep.subr.bf16.mxu0 0
    %1429 = vmatpush1.bf16.xpose.msra.mxu0 0
    %1430 = vmatprep.subr.bf16.mxu0 0
    %1431 = vmatpush1.bf16.xpose.msra.mxu0 0
    %1432 = vmatprep.subr.bf16.mxu0 0
    %1433 = vmatpush1.bf16.xpose.msra.mxu0 0
    %1434 = vmatprep.subr.bf16.mxu0 0
    %1435 = vmatpush1.bf16.xpose.msra.mxu0 0
    %1436 = vmatprep.subr.bf16.mxu0 0
    %1437 = vmatpush1.bf16.xpose.msra.mxu0 0
    %1438 = vmatprep.subr.bf16.mxu0 0
    %1439 = vmatpush1.bf16.xpose.msra.mxu0 0
    %1440 = vmatprep.subr.bf16.mxu0 0
    %1441 = vmatpush1.bf16.xpose.msra.mxu0 0
    %1442 = vmatprep.subr.bf16.mxu0 0
    %1443 = vmatpush1.bf16.xpose.msra.mxu0 %v1426
    %1444 = vmatprep.subr.bf16.mxu0 0
    %1445 = vmatpush2.bf16.xpose.msra.mxu0 0
    %1446 = vmatprep.subr.bf16.mxu0 0
    %1447 = vmatpush2.bf16.xpose.msra.mxu0 0
    %1448 = vmatprep.subr.bf16.mxu0 0
    %1449 = vmatpush2.bf16.xpose.msra.mxu0 0
    %1450 = vmatprep.subr.bf16.mxu0 0
    %1451 = vmatpush2.bf16.xpose.msra.mxu0 0
    %1452 = vmatprep.subr.bf16.mxu0 0
    %1453 = vmatpush2.bf16.xpose.msra.mxu0 0
    %1454 = vmatprep.subr.bf16.mxu0 0
    %1455 = vmatpush2.bf16.xpose.msra.mxu0 0
    %1456 = vmatprep.subr.bf16.mxu0 0
    %1457 = vmatpush2.bf16.xpose.msra.mxu0 0
    %1458 = vmatprep.subr.bf16.mxu0 0
    %1459 = vmatpush2.bf16.xpose.msra.mxu0 0
    %1460 = vmatprep.mubr.bf16.mxu0 0
    %1461 = vmatmul.mubr.bf16.gmra.mxu0 %v1423
    %v1462 = vpop.f32.mrf.mxu0
    %v1463 = vadd.f32 0.0, %v1462
    %v1464 = vpop.f32.mrf.mxu0
    %v1465 = vpop.f32.mrf.mxu0
    %v1466 = vadd.f32 0.0, %v1465
    %v1467 = vpop.f32.mrf.mxu0
    %1468 = vdwg.mxu0
    %v1469 = vmul.f32 %v1463, 0.35355338
    %v1470 = vmul.f32 %v1466, 0.35355338
    %v1471 = vadd.f32 %v1469, %v126
    %v1472 = vadd.f32 %v1470, %v127
    %v1473 = vsel %vm298, %v1471, -inf
    %1474 = vmax.xlane.f32.xlu0 %v1473
    %v1475 = vpop.xlane.xlu0 %1474
    %v1476 = vsel %vm298, %v1472, -inf
    %1477 = vmax.xlane.f32.xlu0 %v1476
    %v1478 = vpop.xlane.xlu0 %1477
    %v1479 = vsub.f32 %v1471, %v1475
    %v1480 = vsub.f32 %v1472, %v1478
    %v1481 = vmul.f32 %v1479, 1.442695
    %v1482 = vpow.pop %v1481
    %v1483 = vmul.f32 %v1480, 1.442695
    %v1484 = vpow.pop %v1483
    %v1485 = vsel %vm298, %v1482, 0.0
    %1486 = vadd.xlane.f32.xlu0 %v1485
    %v1487 = vpop.xlane.xlu0 %1486
    %v1488 = vsel %vm298, %v1484, 0.0
    %1489 = vadd.xlane.f32.xlu0 %v1488
    %v1490 = vpop.xlane.xlu0 %1489
    %v1491 = vrcp.pop %v1487
    %v1492 = vrcp.pop %v1490
    %v1493 = vmul.f32 %v1482, %v1491
    %v1494 = vmul.f32 %v1484, %v1492
    %v1495 = vpack.c.bf16 %v1494, %v1493
    %1496 = vrot.lane.b32.xlu0 %v1290, 56
    %v1497 = vpop.permute.xlu0 %1496
    %v1500 = vsel %vm298, %v1495, 0
    %1502 = vmatprep.subr.bf16.mxu0 0
    %1503 = vmatpush1.bf16.msra.mxu0 0
    %1504 = vmatprep.subr.bf16.mxu0 0
    %1505 = vmatpush1.bf16.msra.mxu0 0
    %1506 = vmatprep.subr.bf16.mxu0 0
    %1507 = vmatpush1.bf16.msra.mxu0 0
    %1508 = vmatprep.subr.bf16.mxu0 0
    %1509 = vmatpush1.bf16.msra.mxu0 0
    %1510 = vmatprep.subr.bf16.mxu0 0
    %1511 = vmatpush1.bf16.msra.mxu0 0
    %1512 = vmatprep.subr.bf16.mxu0 0
    %1513 = vmatpush1.bf16.msra.mxu0 0
    %1514 = vmatprep.subr.bf16.mxu0 0
    %1515 = vmatpush1.bf16.msra.mxu0 0
    %1516 = vmatprep.subr.bf16.mxu0 0
    %1517 = vmatpush1.bf16.msra.mxu0 %v1497
    %1518 = vmatprep.subr.bf16.mxu0 0
    %1519 = vmatpush2.bf16.msra.mxu0 0
    %1520 = vmatprep.subr.bf16.mxu0 0
    %1521 = vmatpush2.bf16.msra.mxu0 0
    %1522 = vmatprep.subr.bf16.mxu0 0
    %1523 = vmatpush2.bf16.msra.mxu0 0
    %1524 = vmatprep.subr.bf16.mxu0 0
    %1525 = vmatpush2.bf16.msra.mxu0 0
    %1526 = vmatprep.subr.bf16.mxu0 0
    %1527 = vmatpush2.bf16.msra.mxu0 0
    %1528 = vmatprep.subr.bf16.mxu0 0
    %1529 = vmatpush2.bf16.msra.mxu0 0
    %1530 = vmatprep.subr.bf16.mxu0 0
    %1531 = vmatpush2.bf16.msra.mxu0 0
    %1532 = vmatprep.subr.bf16.mxu0 0
    %1533 = vmatpush2.bf16.msra.mxu0 0
    %1534 = vmatprep.mubr.bf16.mxu0 0
    %1535 = vmatmul.mubr.bf16.gmra.mxu0 %v1500
    %v1536 = vpop.f32.mrf.mxu0
    %v1537 = vadd.f32 0.0, %v1536
    %v1538 = vpop.f32.mrf.mxu0
    %v1539 = vpop.f32.mrf.mxu0
    %v1540 = vadd.f32 0.0, %v1539
    %v1541 = vpop.f32.mrf.mxu0
    %1542 = vdwg.mxu0
    %v1543 = vpack.c.bf16 %v1540, %v1537
    %s1544 = scalar_lea.vmem %s7, 20
    %v1545 = vld [vmem:[%s1544] sm:$0xf]
    %v1547 = vsel %vm246, %v1543, 0
    %v1550 = vsel %vm502, %v1545, 0
    %1552 = vmatprep.subr.bf16.mxu0 0
    %1553 = vmatpush1.bf16.msra.mxu0 0
    %1554 = vmatprep.subr.bf16.mxu0 0
    %1555 = vmatpush1.bf16.msra.mxu0 0
    %1556 = vmatprep.subr.bf16.mxu0 0
    %1557 = vmatpush1.bf16.msra.mxu0 0
    %1558 = vmatprep.subr.bf16.mxu0 0
    %1559 = vmatpush1.bf16.msra.mxu0 0
    %1560 = vmatprep.subr.bf16.mxu0 0
    %1561 = vmatpush1.bf16.msra.mxu0 0
    %1562 = vmatprep.subr.bf16.mxu0 0
    %1563 = vmatpush1.bf16.msra.mxu0 0
    %1564 = vmatprep.subr.bf16.mxu0 0
    %1565 = vmatpush1.bf16.msra.mxu0 0
    %1566 = vmatprep.subr.bf16.mxu0 0
    %1567 = vmatpush1.bf16.msra.mxu0 %v1550
    %1568 = vmatprep.subr.bf16.mxu0 0
    %1569 = vmatpush2.bf16.msra.mxu0 0
    %1570 = vmatprep.subr.bf16.mxu0 0
    %1571 = vmatpush2.bf16.msra.mxu0 0
    %1572 = vmatprep.subr.bf16.mxu0 0
    %1573 = vmatpush2.bf16.msra.mxu0 0
    %1574 = vmatprep.subr.bf16.mxu0 0
    %1575 = vmatpush2.bf16.msra.mxu0 0
    %1576 = vmatprep.subr.bf16.mxu0 0
    %1577 = vmatpush2.bf16.msra.mxu0 0
    %1578 = vmatprep.subr.bf16.mxu0 0
    %1579 = vmatpush2.bf16.msra.mxu0 0
    %1580 = vmatprep.subr.bf16.mxu0 0
    %1581 = vmatpush2.bf16.msra.mxu0 0
    %1582 = vmatprep.subr.bf16.mxu0 0
    %1583 = vmatpush2.bf16.msra.mxu0 0
    %1584 = vmatprep.mubr.bf16.mxu0 0
    %1585 = vmatmul.mubr.bf16.gmra.mxu0 %v1547
    %v1586 = vpop.f32.mrf.mxu0
    %v1587 = vadd.f32 0.0, %v1586
    %v1588 = vpop.f32.mrf.mxu0
    %v1589 = vpop.f32.mrf.mxu0
    %v1590 = vadd.f32 0.0, %v1589
    %v1591 = vpop.f32.mrf.mxu0
    %1592 = vdwg.mxu0
    %v1594 = vsel %vm246, %v1415, 0
    %v1597 = vsel %vm502, %v1417, 0
    %1599 = vmatprep.subr.bf16.mxu0 0
    %1600 = vmatpush1.bf16.msra.mxu0 0
    %1601 = vmatprep.subr.bf16.mxu0 0
    %1602 = vmatpush1.bf16.msra.mxu0 0
    %1603 = vmatprep.subr.bf16.mxu0 0
    %1604 = vmatpush1.bf16.msra.mxu0 0
    %1605 = vmatprep.subr.bf16.mxu0 0
    %1606 = vmatpush1.bf16.msra.mxu0 0
    %1607 = vmatprep.subr.bf16.mxu0 0
    %1608 = vmatpush1.bf16.msra.mxu0 0
    %1609 = vmatprep.subr.bf16.mxu0 0
    %1610 = vmatpush1.bf16.msra.mxu0 0
    %1611 = vmatprep.subr.bf16.mxu0 0
    %1612 = vmatpush1.bf16.msra.mxu0 0
    %1613 = vmatprep.subr.bf16.mxu0 0
    %1614 = vmatpush1.bf16.msra.mxu0 %v1597
    %1615 = vmatprep.subr.bf16.mxu0 0
    %1616 = vmatpush2.bf16.msra.mxu0 0
    %1617 = vmatprep.subr.bf16.mxu0 0
    %1618 = vmatpush2.bf16.msra.mxu0 0
    %1619 = vmatprep.subr.bf16.mxu0 0
    %1620 = vmatpush2.bf16.msra.mxu0 0
    %1621 = vmatprep.subr.bf16.mxu0 0
    %1622 = vmatpush2.bf16.msra.mxu0 0
    %1623 = vmatprep.subr.bf16.mxu0 0
    %1624 = vmatpush2.bf16.msra.mxu0 0
    %1625 = vmatprep.subr.bf16.mxu0 0
    %1626 = vmatpush2.bf16.msra.mxu0 0
    %1627 = vmatprep.subr.bf16.mxu0 0
    %1628 = vmatpush2.bf16.msra.mxu0 0
    %1629 = vmatprep.subr.bf16.mxu0 0
    %1630 = vmatpush2.bf16.msra.mxu0 0
    %1631 = vmatprep.mubr.bf16.mxu0 0
    %1632 = vmatmul.mubr.bf16.gmra.mxu0 %v1594
    %v1633 = vpop.f32.mrf.mxu0
    %v1634 = vadd.f32 %v1587, %v1633
    %v1635 = vpop.f32.mrf.mxu0
    %v1636 = vpop.f32.mrf.mxu0
    %v1637 = vadd.f32 %v1590, %v1636
    %v1638 = vpop.f32.mrf.mxu0
    %1639 = vdwg.mxu0
    %1640 = vrot.lane.b32.xlu0 %v1290, 112
    %v1641 = vpop.permute.xlu0 %1640
    %1642 = vrot.lane.b32.xlu0 %v1290, 80
    %v1643 = vpop.permute.xlu0 %1642
    %v1645 = vsel %vm246, %v1641, 0
    %v1648 = vsel %vm246, %v1643, 0
    %1650 = vmatprep.subr.bf16.mxu0 0
    %1651 = vmatpush1.bf16.xpose.msra.mxu0 0
    %1652 = vmatprep.subr.bf16.mxu0 0
    %1653 = vmatpush1.bf16.xpose.msra.mxu0 0
    %1654 = vmatprep.subr.bf16.mxu0 0
    %1655 = vmatpush1.bf16.xpose.msra.mxu0 0
    %1656 = vmatprep.subr.bf16.mxu0 0
    %1657 = vmatpush1.bf16.xpose.msra.mxu0 0
    %1658 = vmatprep.subr.bf16.mxu0 0
    %1659 = vmatpush1.bf16.xpose.msra.mxu0 0
    %1660 = vmatprep.subr.bf16.mxu0 0
    %1661 = vmatpush1.bf16.xpose.msra.mxu0 0
    %1662 = vmatprep.subr.bf16.mxu0 0
    %1663 = vmatpush1.bf16.xpose.msra.mxu0 0
    %1664 = vmatprep.subr.bf16.mxu0 0
    %1665 = vmatpush1.bf16.xpose.msra.mxu0 %v1648
    %1666 = vmatprep.subr.bf16.mxu0 0
    %1667 = vmatpush2.bf16.xpose.msra.mxu0 0
    %1668 = vmatprep.subr.bf16.mxu0 0
    %1669 = vmatpush2.bf16.xpose.msra.mxu0 0
    %1670 = vmatprep.subr.bf16.mxu0 0
    %1671 = vmatpush2.bf16.xpose.msra.mxu0 0
    %1672 = vmatprep.subr.bf16.mxu0 0
    %1673 = vmatpush2.bf16.xpose.msra.mxu0 0
    %1674 = vmatprep.subr.bf16.mxu0 0
    %1675 = vmatpush2.bf16.xpose.msra.mxu0 0
    %1676 = vmatprep.subr.bf16.mxu0 0
    %1677 = vmatpush2.bf16.xpose.msra.mxu0 0
    %1678 = vmatprep.subr.bf16.mxu0 0
    %1679 = vmatpush2.bf16.xpose.msra.mxu0 0
    %1680 = vmatprep.subr.bf16.mxu0 0
    %1681 = vmatpush2.bf16.xpose.msra.mxu0 0
    %1682 = vmatprep.mubr.bf16.mxu0 0
    %1683 = vmatmul.mubr.bf16.gmra.mxu0 %v1645
    %v1684 = vpop.f32.mrf.mxu0
    %v1685 = vadd.f32 0.0, %v1684
    %v1686 = vpop.f32.mrf.mxu0
    %v1687 = vpop.f32.mrf.mxu0
    %v1688 = vadd.f32 0.0, %v1687
    %v1689 = vpop.f32.mrf.mxu0
    %1690 = vdwg.mxu0
    %v1691 = vmul.f32 %v1685, 0.35355338
    %v1692 = vmul.f32 %v1688, 0.35355338
    %v1693 = vadd.f32 %v1691, %v126
    %v1694 = vadd.f32 %v1692, %v127
    %v1695 = vsel %vm298, %v1693, -inf
    %1696 = vmax.xlane.f32.xlu0 %v1695
    %v1697 = vpop.xlane.xlu0 %1696
    %v1698 = vsel %vm298, %v1694, -inf
    %1699 = vmax.xlane.f32.xlu0 %v1698
    %v1700 = vpop.xlane.xlu0 %1699
    %v1701 = vsub.f32 %v1693, %v1697
    %v1702 = vsub.f32 %v1694, %v1700
    %v1703 = vmul.f32 %v1701, 1.442695
    %v1704 = vpow.pop %v1703
    %v1705 = vmul.f32 %v1702, 1.442695
    %v1706 = vpow.pop %v1705
    %v1707 = vsel %vm298, %v1704, 0.0
    %1708 = vadd.xlane.f32.xlu0 %v1707
    %v1709 = vpop.xlane.xlu0 %1708
    %v1710 = vsel %vm298, %v1706, 0.0
    %1711 = vadd.xlane.f32.xlu0 %v1710
    %v1712 = vpop.xlane.xlu0 %1711
    %v1713 = vrcp.pop %v1709
    %v1714 = vrcp.pop %v1712
    %v1715 = vmul.f32 %v1704, %v1713
    %v1716 = vmul.f32 %v1706, %v1714
    %v1717 = vpack.c.bf16 %v1716, %v1715
    %1718 = vrot.lane.b32.xlu0 %v1290, 48
    %v1719 = vpop.permute.xlu0 %1718
    %v1722 = vsel %vm298, %v1717, 0
    %1724 = vmatprep.subr.bf16.mxu0 0
    %1725 = vmatpush1.bf16.msra.mxu0 0
    %1726 = vmatprep.subr.bf16.mxu0 0
    %1727 = vmatpush1.bf16.msra.mxu0 0
    %1728 = vmatprep.subr.bf16.mxu0 0
    %1729 = vmatpush1.bf16.msra.mxu0 0
    %1730 = vmatprep.subr.bf16.mxu0 0
    %1731 = vmatpush1.bf16.msra.mxu0 0
    %1732 = vmatprep.subr.bf16.mxu0 0
    %1733 = vmatpush1.bf16.msra.mxu0 0
    %1734 = vmatprep.subr.bf16.mxu0 0
    %1735 = vmatpush1.bf16.msra.mxu0 0
    %1736 = vmatprep.subr.bf16.mxu0 0
    %1737 = vmatpush1.bf16.msra.mxu0 0
    %1738 = vmatprep.subr.bf16.mxu0 0
    %1739 = vmatpush1.bf16.msra.mxu0 %v1719
    %1740 = vmatprep.subr.bf16.mxu0 0
    %1741 = vmatpush2.bf16.msra.mxu0 0
    %1742 = vmatprep.subr.bf16.mxu0 0
    %1743 = vmatpush2.bf16.msra.mxu0 0
    %1744 = vmatprep.subr.bf16.mxu0 0
    %1745 = vmatpush2.bf16.msra.mxu0 0
    %1746 = vmatprep.subr.bf16.mxu0 0
    %1747 = vmatpush2.bf16.msra.mxu0 0
    %1748 = vmatprep.subr.bf16.mxu0 0
    %1749 = vmatpush2.bf16.msra.mxu0 0
    %1750 = vmatprep.subr.bf16.mxu0 0
    %1751 = vmatpush2.bf16.msra.mxu0 0
    %1752 = vmatprep.subr.bf16.mxu0 0
    %1753 = vmatpush2.bf16.msra.mxu0 0
    %1754 = vmatprep.subr.bf16.mxu0 0
    %1755 = vmatpush2.bf16.msra.mxu0 0
    %1756 = vmatprep.mubr.bf16.mxu0 0
    %1757 = vmatmul.mubr.bf16.gmra.mxu0 %v1722
    %v1758 = vpop.f32.mrf.mxu0
    %v1759 = vadd.f32 0.0, %v1758
    %v1760 = vpop.f32.mrf.mxu0
    %v1761 = vpop.f32.mrf.mxu0
    %v1762 = vadd.f32 0.0, %v1761
    %v1763 = vpop.f32.mrf.mxu0
    %1764 = vdwg.mxu0
    %v1765 = vpack.c.bf16 %v1762, %v1759
    %s1766 = scalar_lea.vmem %s7, 24
    %v1767 = vld [vmem:[%s1766] sm:$0xf]
    %v1769 = vsel %vm246, %v1765, 0
    %v1772 = vsel %vm502, %v1767, 0
    %1774 = vmatprep.subr.bf16.mxu0 0
    %1775 = vmatpush1.bf16.msra.mxu0 0
    %1776 = vmatprep.subr.bf16.mxu0 0
    %1777 = vmatpush1.bf16.msra.mxu0 0
    %1778 = vmatprep.subr.bf16.mxu0 0
    %1779 = vmatpush1.bf16.msra.mxu0 0
    %1780 = vmatprep.subr.bf16.mxu0 0
    %1781 = vmatpush1.bf16.msra.mxu0 0
    %1782 = vmatprep.subr.bf16.mxu0 0
    %1783 = vmatpush1.bf16.msra.mxu0 0
    %1784 = vmatprep.subr.bf16.mxu0 0
    %1785 = vmatpush1.bf16.msra.mxu0 0
    %1786 = vmatprep.subr.bf16.mxu0 0
    %1787 = vmatpush1.bf16.msra.mxu0 0
    %1788 = vmatprep.subr.bf16.mxu0 0
    %1789 = vmatpush1.bf16.msra.mxu0 %v1772
    %1790 = vmatprep.subr.bf16.mxu0 0
    %1791 = vmatpush2.bf16.msra.mxu0 0
    %1792 = vmatprep.subr.bf16.mxu0 0
    %1793 = vmatpush2.bf16.msra.mxu0 0
    %1794 = vmatprep.subr.bf16.mxu0 0
    %1795 = vmatpush2.bf16.msra.mxu0 0
    %1796 = vmatprep.subr.bf16.mxu0 0
    %1797 = vmatpush2.bf16.msra.mxu0 0
    %1798 = vmatprep.subr.bf16.mxu0 0
    %1799 = vmatpush2.bf16.msra.mxu0 0
    %1800 = vmatprep.subr.bf16.mxu0 0
    %1801 = vmatpush2.bf16.msra.mxu0 0
    %1802 = vmatprep.subr.bf16.mxu0 0
    %1803 = vmatpush2.bf16.msra.mxu0 0
    %1804 = vmatprep.subr.bf16.mxu0 0
    %1805 = vmatpush2.bf16.msra.mxu0 0
    %1806 = vmatprep.mubr.bf16.mxu0 0
    %1807 = vmatmul.mubr.bf16.gmra.mxu0 %v1769
    %v1808 = vpop.f32.mrf.mxu0
    %v1809 = vadd.f32 0.0, %v1808
    %v1810 = vpop.f32.mrf.mxu0
    %v1811 = vpop.f32.mrf.mxu0
    %v1812 = vadd.f32 0.0, %v1811
    %v1813 = vpop.f32.mrf.mxu0
    %1814 = vdwg.mxu0
    %v1815 = vadd.f32 %v1634, %v1809
    %v1816 = vadd.f32 %v1637, %v1812
    %1817 = vrot.lane.b32.xlu0 %v1290, 104
    %v1818 = vpop.permute.xlu0 %1817
    %1819 = vrot.lane.b32.xlu0 %v1290, 72
    %v1820 = vpop.permute.xlu0 %1819
    %v1822 = vsel %vm246, %v1818, 0
    %v1825 = vsel %vm246, %v1820, 0
    %1827 = vmatprep.subr.bf16.mxu0 0
    %1828 = vmatpush1.bf16.xpose.msra.mxu0 0
    %1829 = vmatprep.subr.bf16.mxu0 0
    %1830 = vmatpush1.bf16.xpose.msra.mxu0 0
    %1831 = vmatprep.subr.bf16.mxu0 0
    %1832 = vmatpush1.bf16.xpose.msra.mxu0 0
    %1833 = vmatprep.subr.bf16.mxu0 0
    %1834 = vmatpush1.bf16.xpose.msra.mxu0 0
    %1835 = vmatprep.subr.bf16.mxu0 0
    %1836 = vmatpush1.bf16.xpose.msra.mxu0 0
    %1837 = vmatprep.subr.bf16.mxu0 0
    %1838 = vmatpush1.bf16.xpose.msra.mxu0 0
    %1839 = vmatprep.subr.bf16.mxu0 0
    %1840 = vmatpush1.bf16.xpose.msra.mxu0 0
    %1841 = vmatprep.subr.bf16.mxu0 0
    %1842 = vmatpush1.bf16.xpose.msra.mxu0 %v1825
    %1843 = vmatprep.subr.bf16.mxu0 0
    %1844 = vmatpush2.bf16.xpose.msra.mxu0 0
    %1845 = vmatprep.subr.bf16.mxu0 0
    %1846 = vmatpush2.bf16.xpose.msra.mxu0 0
    %1847 = vmatprep.subr.bf16.mxu0 0
    %1848 = vmatpush2.bf16.xpose.msra.mxu0 0
    %1849 = vmatprep.subr.bf16.mxu0 0
    %1850 = vmatpush2.bf16.xpose.msra.mxu0 0
    %1851 = vmatprep.subr.bf16.mxu0 0
    %1852 = vmatpush2.bf16.xpose.msra.mxu0 0
    %1853 = vmatprep.subr.bf16.mxu0 0
    %1854 = vmatpush2.bf16.xpose.msra.mxu0 0
    %1855 = vmatprep.subr.bf16.mxu0 0
    %1856 = vmatpush2.bf16.xpose.msra.mxu0 0
    %1857 = vmatprep.subr.bf16.mxu0 0
    %1858 = vmatpush2.bf16.xpose.msra.mxu0 0
    %1859 = vmatprep.mubr.bf16.mxu0 0
    %1860 = vmatmul.mubr.bf16.gmra.mxu0 %v1822
    %v1861 = vpop.f32.mrf.mxu0
    %v1862 = vadd.f32 0.0, %v1861
    %v1863 = vpop.f32.mrf.mxu0
    %v1864 = vpop.f32.mrf.mxu0
    %v1865 = vadd.f32 0.0, %v1864
    %v1866 = vpop.f32.mrf.mxu0
    %1867 = vdwg.mxu0
    %v1868 = vmul.f32 %v1862, 0.35355338
    %v1869 = vmul.f32 %v1865, 0.35355338
    %v1870 = vadd.f32 %v1868, %v126
    %v1871 = vadd.f32 %v1869, %v127
    %v1872 = vsel %vm298, %v1870, -inf
    %1873 = vmax.xlane.f32.xlu0 %v1872
    %v1874 = vpop.xlane.xlu0 %1873
    %v1875 = vsel %vm298, %v1871, -inf
    %1876 = vmax.xlane.f32.xlu0 %v1875
    %v1877 = vpop.xlane.xlu0 %1876
    %v1878 = vsub.f32 %v1870, %v1874
    %v1879 = vsub.f32 %v1871, %v1877
    %v1880 = vmul.f32 %v1878, 1.442695
    %v1881 = vpow.pop %v1880
    %v1882 = vmul.f32 %v1879, 1.442695
    %v1883 = vpow.pop %v1882
    %v1884 = vsel %vm298, %v1881, 0.0
    %1885 = vadd.xlane.f32.xlu0 %v1884
    %v1886 = vpop.xlane.xlu0 %1885
    %v1887 = vsel %vm298, %v1883, 0.0
    %1888 = vadd.xlane.f32.xlu0 %v1887
    %v1889 = vpop.xlane.xlu0 %1888
    %v1890 = vrcp.pop %v1886
    %v1891 = vrcp.pop %v1889
    %v1892 = vmul.f32 %v1881, %v1890
    %v1893 = vmul.f32 %v1883, %v1891
    %v1894 = vpack.c.bf16 %v1893, %v1892
    %1895 = vrot.lane.b32.xlu0 %v1290, 40
    %v1896 = vpop.permute.xlu0 %1895
    %v1899 = vsel %vm298, %v1894, 0
    %1901 = vmatprep.subr.bf16.mxu0 0
    %1902 = vmatpush1.bf16.msra.mxu0 0
    %1903 = vmatprep.subr.bf16.mxu0 0
    %1904 = vmatpush1.bf16.msra.mxu0 0
    %1905 = vmatprep.subr.bf16.mxu0 0
    %1906 = vmatpush1.bf16.msra.mxu0 0
    %1907 = vmatprep.subr.bf16.mxu0 0
    %1908 = vmatpush1.bf16.msra.mxu0 0
    %1909 = vmatprep.subr.bf16.mxu0 0
    %1910 = vmatpush1.bf16.msra.mxu0 0
    %1911 = vmatprep.subr.bf16.mxu0 0
    %1912 = vmatpush1.bf16.msra.mxu0 0
    %1913 = vmatprep.subr.bf16.mxu0 0
    %1914 = vmatpush1.bf16.msra.mxu0 0
    %1915 = vmatprep.subr.bf16.mxu0 0
    %1916 = vmatpush1.bf16.msra.mxu0 %v1896
    %1917 = vmatprep.subr.bf16.mxu0 0
    %1918 = vmatpush2.bf16.msra.mxu0 0
    %1919 = vmatprep.subr.bf16.mxu0 0
    %1920 = vmatpush2.bf16.msra.mxu0 0
    %1921 = vmatprep.subr.bf16.mxu0 0
    %1922 = vmatpush2.bf16.msra.mxu0 0
    %1923 = vmatprep.subr.bf16.mxu0 0
    %1924 = vmatpush2.bf16.msra.mxu0 0
    %1925 = vmatprep.subr.bf16.mxu0 0
    %1926 = vmatpush2.bf16.msra.mxu0 0
    %1927 = vmatprep.subr.bf16.mxu0 0
    %1928 = vmatpush2.bf16.msra.mxu0 0
    %1929 = vmatprep.subr.bf16.mxu0 0
    %1930 = vmatpush2.bf16.msra.mxu0 0
    %1931 = vmatprep.subr.bf16.mxu0 0
    %1932 = vmatpush2.bf16.msra.mxu0 0
    %1933 = vmatprep.mubr.bf16.mxu0 0
    %1934 = vmatmul.mubr.bf16.gmra.mxu0 %v1899
    %v1935 = vpop.f32.mrf.mxu0
    %v1936 = vadd.f32 0.0, %v1935
    %v1937 = vpop.f32.mrf.mxu0
    %v1938 = vpop.f32.mrf.mxu0
    %v1939 = vadd.f32 0.0, %v1938
    %v1940 = vpop.f32.mrf.mxu0
    %1941 = vdwg.mxu0
    %v1942 = vpack.c.bf16 %v1939, %v1936
    %s1943 = scalar_lea.vmem %s7, 28
    %v1944 = vld [vmem:[%s1943] sm:$0xf]
    %v1946 = vsel %vm246, %v1942, 0
    %v1949 = vsel %vm502, %v1944, 0
    %1951 = vmatprep.subr.bf16.mxu0 0
    %1952 = vmatpush1.bf16.msra.mxu0 0
    %1953 = vmatprep.subr.bf16.mxu0 0
    %1954 = vmatpush1.bf16.msra.mxu0 0
    %1955 = vmatprep.subr.bf16.mxu0 0
    %1956 = vmatpush1.bf16.msra.mxu0 0
    %1957 = vmatprep.subr.bf16.mxu0 0
    %1958 = vmatpush1.bf16.msra.mxu0 0
    %1959 = vmatprep.subr.bf16.mxu0 0
    %1960 = vmatpush1.bf16.msra.mxu0 0
    %1961 = vmatprep.subr.bf16.mxu0 0
    %1962 = vmatpush1.bf16.msra.mxu0 0
    %1963 = vmatprep.subr.bf16.mxu0 0
    %1964 = vmatpush1.bf16.msra.mxu0 0
    %1965 = vmatprep.subr.bf16.mxu0 0
    %1966 = vmatpush1.bf16.msra.mxu0 %v1949
    %1967 = vmatprep.subr.bf16.mxu0 0
    %1968 = vmatpush2.bf16.msra.mxu0 0
    %1969 = vmatprep.subr.bf16.mxu0 0
    %1970 = vmatpush2.bf16.msra.mxu0 0
    %1971 = vmatprep.subr.bf16.mxu0 0
    %1972 = vmatpush2.bf16.msra.mxu0 0
    %1973 = vmatprep.subr.bf16.mxu0 0
    %1974 = vmatpush2.bf16.msra.mxu0 0
    %1975 = vmatprep.subr.bf16.mxu0 0
    %1976 = vmatpush2.bf16.msra.mxu0 0
    %1977 = vmatprep.subr.bf16.mxu0 0
    %1978 = vmatpush2.bf16.msra.mxu0 0
    %1979 = vmatprep.subr.bf16.mxu0 0
    %1980 = vmatpush2.bf16.msra.mxu0 0
    %1981 = vmatprep.subr.bf16.mxu0 0
    %1982 = vmatpush2.bf16.msra.mxu0 0
    %1983 = vmatprep.mubr.bf16.mxu0 0
    %1984 = vmatmul.mubr.bf16.gmra.mxu0 %v1946
    %v1985 = vpop.f32.mrf.mxu0
    %v1986 = vadd.f32 0.0, %v1985
    %v1987 = vpop.f32.mrf.mxu0
    %v1988 = vpop.f32.mrf.mxu0
    %v1989 = vadd.f32 0.0, %v1988
    %v1990 = vpop.f32.mrf.mxu0
    %1991 = vdwg.mxu0
    %v1992 = vadd.f32 %v1815, %v1986
    %v1993 = vadd.f32 %v1816, %v1989
    %s1994 = scalar_lea.vmem %s8, 1
    %v1995 = vld [vmem:[%s1994] sm:$0x1]
    %v1997 = vlaneseq
    %v1998 = vshrl.u32 %v1997, 7
    %v1999 = vsub.s32 0, %v1998
    %v2000 = vrot.slane %v1995, %v1999
    %v2002 = vadd.f32 %v1992, %v2000
    %v2003 = vadd.f32 %v1993, %v2000
    %v2004 = vadd.f32 %v1218, %v2002
    %v2005 = vadd.f32 %v1219, %v2003
    %s2006 = scalar_lea.vmem %s9, 1
    %v2007 = vld [vmem:[%s2006] sm:$0x1]
    %s2008 = scalar_lea.vmem %s10, 1
    %v2009 = vld [vmem:[%s2008] sm:$0x1]
    %v2010 = vsel %vm130, %v2004, 0.0
    %2011 = vadd.xlane.f32.xlu0 %v2010
    %v2012 = vpop.xlane.xlu0 %2011
    %v2013 = vsel %vm130, %v2005, 0.0
    %2014 = vadd.xlane.f32.xlu0 %v2013
    %v2015 = vpop.xlane.xlu0 %2014
    %v2016 = vmul.f32 %v2012, %v137
    %v2017 = vmul.f32 %v2015, %v137
    %v2018 = vsub.f32 %v2004, %v2016
    %v2019 = vsub.f32 %v2005, %v2017
    %v2020 = vmul.f32 %v2018, %v2018
    %v2021 = vmul.f32 %v2019, %v2019
    %v2022 = vsel %vm130, %v2020, 0.0
    %2023 = vadd.xlane.f32.xlu0 %v2022
    %v2024 = vpop.xlane.xlu0 %2023
    %v2025 = vsel %vm130, %v2021, 0.0
    %2026 = vadd.xlane.f32.xlu0 %v2025
    %v2027 = vpop.xlane.xlu0 %2026
    %v2028 = vmul.f32 %v2024, %v137
    %v2029 = vmul.f32 %v2027, %v137
    %v2030 = vadd.f32 %v2028, 1e-05
    %v2031 = vadd.f32 %v2029, 1e-05
    %v2032 = vrsqrt.pop %v2030
    %v2033 = vrsqrt.pop %v2031
    %v2034 = vmul.f32 %v2018, %v2032
    %v2035 = vmul.f32 %v2019, %v2033
    %v2037 = vlaneseq
    %v2038 = vshrl.u32 %v2037, 7
    %v2039 = vsub.s32 0, %v2038
    %v2040 = vrot.slane %v2007, %v2039
    %v2042 = vmul.f32 %v2034, %v2040
    %v2043 = vmul.f32 %v2035, %v2040
    %v2045 = vlaneseq
    %v2046 = vshrl.u32 %v2045, 7
    %v2047 = vsub.s32 0, %v2046
    %v2048 = vrot.slane %v2009, %v2047
    %v2050 = vadd.f32 %v2042, %v2048
    %v2051 = vadd.f32 %v2043, %v2048
    %v2052 = vpack.c.bf16 %v2051, %v2050
    %s2053 = scalar_lea.vmem %s11, 16
    %v2054 = vld [vmem:[%s2053] sm:$0xf]
    %v2055 = vld [vmem:[%s2053 + $0x4] sm:$0xf]
    %v2056 = vld [vmem:[%s2053 + $0x8] sm:$0xf]
    %v2057 = vld [vmem:[%s2053 + $0xc] sm:$0xf]
    %s2058 = scalar_lea.vmem [#allocation10], 1
    %v2059 = vld [vmem:[%s2058] sm:$0x1]
    %v2061 = vlaneseq
    %v2062 = vshrl.u32 %v2061, 7
    %v2063 = vsub.s32 0, %v2062
    %v2064 = vrot.slane %v2059, %v2063
    %v2070 = vunpack.c.l.b16 %v2054
    %v2071 = vunpack.c.l.b16 %v2055
    %v2072 = vunpack.c.l.b16 %v2056
    %v2073 = vunpack.c.l.b16 %v2057
    %v2074 = vpack.c.b16 %v2071, %v2070
    %v2075 = vpack.c.b16 %v2073, %v2072
    %v2079 = vsel %vm130, %v2052, 0
    %2081 = vmatprep.subr.bf16.mxu0 0
    %2082 = vmatpush1.bf16.msra.mxu0 0
    %2083 = vmatprep.subr.bf16.mxu0 0
    %2084 = vmatpush1.bf16.msra.mxu0 0
    %2085 = vmatprep.subr.bf16.mxu0 0
    %2086 = vmatpush1.bf16.msra.mxu0 0
    %2087 = vmatprep.subr.bf16.mxu0 0
    %2088 = vmatpush1.bf16.msra.mxu0 0
    %2089 = vmatprep.subr.bf16.mxu0 0
    %2090 = vmatpush1.bf16.msra.mxu0 0
    %2091 = vmatprep.subr.bf16.mxu0 0
    %2092 = vmatpush1.bf16.msra.mxu0 0
    %2093 = vmatprep.subr.bf16.mxu0 0
    %2094 = vmatpush1.bf16.msra.mxu0 %v2075
    %2095 = vmatprep.subr.bf16.mxu0 0
    %2096 = vmatpush1.bf16.msra.mxu0 %v2074
    %2097 = vmatprep.subr.bf16.mxu0 0
    %2098 = vmatpush2.bf16.msra.mxu0 0
    %2099 = vmatprep.subr.bf16.mxu0 0
    %2100 = vmatpush2.bf16.msra.mxu0 0
    %2101 = vmatprep.subr.bf16.mxu0 0
    %2102 = vmatpush2.bf16.msra.mxu0 0
    %2103 = vmatprep.subr.bf16.mxu0 0
    %2104 = vmatpush2.bf16.msra.mxu0 0
    %2105 = vmatprep.subr.bf16.mxu0 0
    %2106 = vmatpush2.bf16.msra.mxu0 0
    %2107 = vmatprep.subr.bf16.mxu0 0
    %2108 = vmatpush2.bf16.msra.mxu0 0
    %2109 = vmatprep.subr.bf16.mxu0 0
    %2110 = vmatpush2.bf16.msra.mxu0 0
    %2111 = vmatprep.subr.bf16.mxu0 0
    %2112 = vmatpush2.bf16.msra.mxu0 0
    %2113 = vmatprep.mubr.bf16.mxu0 0
    %2114 = vmatmul.mubr.bf16.gmra.mxu0 %v2079
    %v2115 = vpop.f32.mrf.mxu0
    %v2116 = vadd.f32 %v2064, %v2115
    %v2117 = vpop.f32.mrf.mxu0
    %v2118 = vpop.f32.mrf.mxu0
    %v2119 = vadd.f32 %v2064, %v2118
    %v2120 = vpop.f32.mrf.mxu0
    %2121 = vdwg.mxu0
    %v2122 = vmul.f32 %v2116, %v2116
    %v2123 = vmul.f32 %v2119, %v2119
    %v2124 = vmul.f32 %v2116, %v2122
    %v2125 = vmul.f32 %v2119, %v2123
    %v2126 = vmul.f32 %v2124, 0.044715
    %v2127 = vmul.f32 %v2125, 0.044715
    %v2128 = vadd.f32 %v2116, %v2126
    %v2129 = vadd.f32 %v2119, %v2127
    %v2130 = vmul.f32 %v2128, 0.7978846
    %v2131 = vmul.f32 %v2129, 0.7978846
    %v2132 = vtanh.pop %v2130
    %v2133 = vtanh.pop %v2131
    %v2134 = vadd.f32 %v2132, 1.0
    %v2135 = vadd.f32 %v2133, 1.0
    %v2136 = vmul.f32 %v2134, 0.5
    %v2137 = vmul.f32 %v2135, 0.5
    %v2138 = vmul.f32 %v2116, %v2136
    %v2139 = vmul.f32 %v2119, %v2137
    %v2140 = vpack.c.bf16 %v2139, %v2138
    %s2141 = scalar_lea.vmem %s13, 32
    %v2142 = vld [vmem:[%s2141] sm:$0xf]
    %v2143 = vld [vmem:[%s2141 + $0x4] sm:$0xf]
    %v2144 = vld [vmem:[%s2141 + $0x8] sm:$0xf]
    %v2145 = vld [vmem:[%s2141 + $0xc] sm:$0xf]
    %v2146 = vld [vmem:[%s2141 + $0x10] sm:$0xf]
    %v2147 = vld [vmem:[%s2141 + $0x14] sm:$0xf]
    %v2148 = vld [vmem:[%s2141 + $0x18] sm:$0xf]
    %v2149 = vld [vmem:[%s2141 + $0x1c] sm:$0xf]
    %s2150 = scalar_lea.vmem %s14, 1
    %v2151 = vld [vmem:[%s2150] sm:$0x1]
    %v2153 = vlaneseq
    %v2154 = vshrl.u32 %v2153, 7
    %v2155 = vsub.s32 0, %v2154
    %v2156 = vrot.slane %v2151, %v2155
    %v2166 = vunpack.c.l.b16 %v2142
    %v2167 = vunpack.c.l.b16 %v2143
    %v2168 = vunpack.c.l.b16 %v2144
    %v2169 = vunpack.c.l.b16 %v2145
    %v2170 = vunpack.c.l.b16 %v2146
    %v2171 = vunpack.c.l.b16 %v2147
    %v2172 = vunpack.c.l.b16 %v2148
    %v2173 = vunpack.c.l.b16 %v2149
    %v2174 = vpack.c.b16 %v2167, %v2166
    %v2175 = vpack.c.b16 %v2169, %v2168
    %v2176 = vpack.c.b16 %v2171, %v2170
    %v2177 = vpack.c.b16 %v2173, %v2172
    %v2183 = vsel %vm1129, %v2140, 0
    %2185 = vmatprep.subr.bf16.mxu0 0
    %2186 = vmatpush1.bf16.msra.mxu0 0
    %2187 = vmatprep.subr.bf16.mxu0 0
    %2188 = vmatpush1.bf16.msra.mxu0 0
    %2189 = vmatprep.subr.bf16.mxu0 0
    %2190 = vmatpush1.bf16.msra.mxu0 0
    %2191 = vmatprep.subr.bf16.mxu0 0
    %2192 = vmatpush1.bf16.msra.mxu0 0
    %2193 = vmatprep.subr.bf16.mxu0 0
    %2194 = vmatpush1.bf16.msra.mxu0 %v2177
    %2195 = vmatprep.subr.bf16.mxu0 0
    %2196 = vmatpush1.bf16.msra.mxu0 %v2176
    %2197 = vmatprep.subr.bf16.mxu0 0
    %2198 = vmatpush1.bf16.msra.mxu0 %v2175
    %2199 = vmatprep.subr.bf16.mxu0 0
    %2200 = vmatpush1.bf16.msra.mxu0 %v2174
    %2201 = vmatprep.subr.bf16.mxu0 0
    %2202 = vmatpush2.bf16.msra.mxu0 0
    %2203 = vmatprep.subr.bf16.mxu0 0
    %2204 = vmatpush2.bf16.msra.mxu0 0
    %2205 = vmatprep.subr.bf16.mxu0 0
    %2206 = vmatpush2.bf16.msra.mxu0 0
    %2207 = vmatprep.subr.bf16.mxu0 0
    %2208 = vmatpush2.bf16.msra.mxu0 0
    %2209 = vmatprep.subr.bf16.mxu0 0
    %2210 = vmatpush2.bf16.msra.mxu0 0
    %2211 = vmatprep.subr.bf16.mxu0 0
    %2212 = vmatpush2.bf16.msra.mxu0 0
    %2213 = vmatprep.subr.bf16.mxu0 0
    %2214 = vmatpush2.bf16.msra.mxu0 0
    %2215 = vmatprep.subr.bf16.mxu0 0
    %2216 = vmatpush2.bf16.msra.mxu0 0
    %2217 = vmatprep.mubr.bf16.mxu0 0
    %2218 = vmatmul.mubr.bf16.gmra.mxu0 %v2183
    %v2219 = vpop.f32.mrf.mxu0
    %v2220 = vadd.f32 %v2156, %v2219
    %v2221 = vpop.f32.mrf.mxu0
    %v2222 = vpop.f32.mrf.mxu0
    %v2223 = vadd.f32 %v2156, %v2222
    %v2224 = vpop.f32.mrf.mxu0
    %2225 = vdwg.mxu0
    %v2226 = vadd.f32 %v2050, %v2220
    %v2227 = vadd.f32 %v2051, %v2223
    %s2228 = scalar_lea.vmem %s15, 1
    %v2229 = vld [vmem:[%s2228] sm:$0x1]
    %s2230 = scalar_lea.vmem %s16, 1
    %v2231 = vld [vmem:[%s2230] sm:$0x1]
    %v2232 = vsel %vm130, %v2226, 0.0
    %2233 = vadd.xlane.f32.xlu0 %v2232
    %v2234 = vpop.xlane.xlu0 %2233
    %v2235 = vsel %vm130, %v2227, 0.0
    %2236 = vadd.xlane.f32.xlu0 %v2235
    %v2237 = vpop.xlane.xlu0 %2236
    %v2238 = vmul.f32 %v2234, %v137
    %v2239 = vmul.f32 %v2237, %v137
    %v2240 = vsub.f32 %v2226, %v2238
    %v2241 = vsub.f32 %v2227, %v2239
    %v2242 = vmul.f32 %v2240, %v2240
    %v2243 = vmul.f32 %v2241, %v2241
    %v2244 = vsel %vm130, %v2242, 0.0
    %2245 = vadd.xlane.f32.xlu0 %v2244
    %v2246 = vpop.xlane.xlu0 %2245
    %v2247 = vsel %vm130, %v2243, 0.0
    %2248 = vadd.xlane.f32.xlu0 %v2247
    %v2249 = vpop.xlane.xlu0 %2248
    %v2250 = vmul.f32 %v2246, %v137
    %v2251 = vmul.f32 %v2249, %v137
    %v2252 = vadd.f32 %v2250, 1e-05
    %v2253 = vadd.f32 %v2251, 1e-05
    %v2254 = vrsqrt.pop %v2252
    %v2255 = vrsqrt.pop %v2253
    %v2256 = vmul.f32 %v2240, %v2254
    %v2257 = vmul.f32 %v2241, %v2255
    %v2259 = vlaneseq
    %v2260 = vshrl.u32 %v2259, 7
    %v2261 = vsub.s32 0, %v2260
    %v2262 = vrot.slane %v2229, %v2261
    %v2264 = vmul.f32 %v2256, %v2262
    %v2265 = vmul.f32 %v2257, %v2262
    %v2267 = vlaneseq
    %v2268 = vshrl.u32 %v2267, 7
    %v2269 = vsub.s32 0, %v2268
    %v2270 = vrot.slane %v2231, %v2269
    %v2272 = vadd.f32 %v2264, %v2270
    %v2273 = vadd.f32 %v2265, %v2270
    %2275 = vset.pattern.permute.xlu0 0
    %2276 = vperm.xlu0 %2275, %v124
    %v2277 = vpop.permute.xlu0 %2276
    %2280 = vset.pattern.permute.xlu0 0
    %2281 = vperm.xlu0 %2280, %v125
    %v2282 = vpop.permute.xlu0 %2281
    %v2284 = vmul.f32 %v2272, %v2277
    %v2285 = vmul.f32 %v2273, %v2282
    %2286 = vst.msk [vmem:[#allocation11] sm:$0xff] %vm130, %v2284
    %2287 = vst.msk [vmem:[#allocation11 + $0x8] sm:$0xff] %vm130, %v2285
    // Predicated region
    $region90: #{tpu_custom_call.1} parent=1 // pred_check
      _
    $region91: #{tpu_custom_call.1} parent=1 // pred_check_branch
      %2289 = sbr.rel (0) target = $region93
    $region92: #{tpu_custom_call.1} parent=1 // pred_region
      %s2291 = ssub.s32 256, 256
      %2292 = vsyncadd [#allocation4], %s2291
      %s2293 = sshll.u32 [#allocation11], 4
      %s2294 = int_to_ptr.vmem [resolvable:$true] %s2293
      %2299 = dma.vmem_to_hbm [thread:$0]  %s2294, 256, %s17, [#allocation4], 128, 128, 8
    $region93: #{tpu_custom_call.1} parent=1 // pred_fallthru
      _
    // Predicated region
    $region94: #{tpu_custom_call.1} parent=1 // pred_check
      _
    $region95: #{tpu_custom_call.1} parent=1 // pred_check_branch
      %2301 = sbr.rel (0) target = $region97
    $region96: #{tpu_custom_call.1} parent=1 // pred_region
      %2302 = dma.done [#allocation4], 256
    $region97: #{tpu_custom_call.1} parent=1 // pred_fallthru
      _
    %2303 = vsyncpa [#allocation3], 1
    %2304 = vsyncpa [#allocation6], 1
    %2305 = vsyncpa [#allocation9], 1
    %2306 = vsyncpa [#allocation4], 1

</llo_original>
